<compile_context>
chip_gen: v5e
topology: v5e:2x2
jax: 0.10.0
libtpu: 0.0.40
codegen_flags: <defaults>
</compile_context>

<pallas_src>
import functools
import math

import jax
import jax.numpy as jnp
import numpy as np
from jax import lax
from jax.experimental import pallas as pl
from jax.experimental.pallas import tpu as pltpu


def _swap01(t):
    """[A, M, d] -> [M, A, d]; lane-layout-aware path via pltpu.einshape."""
    if hasattr(pltpu, "einshape"):
        return pltpu.einshape("mhd->hmd", t)
    return jnp.swapaxes(t, 0, 1)


def _layer_norm(h, gamma, beta, eps=1e-5):
    mu = jnp.mean(h, axis=-1, keepdims=True)
    var = jnp.mean(jnp.square(h - mu), axis=-1, keepdims=True)
    return (h - mu) * lax.rsqrt(var + eps) * gamma + beta


def _decoder_block_kernel(B, L, Lk, H, causal, cdt, approx, *refs):
    # refs = (x2d, enc2d, [neg_la3,] neg_pad3, 20 weight refs, out)
    if causal:
        x_ref, enc_ref, pad_ref = refs[0], refs[1], refs[2]
        la_ref = None
        w_refs = refs[3:-1]
    else:
        x_ref, enc_ref, la_ref, pad_ref = refs[0], refs[1], refs[2], refs[3]
        w_refs = refs[4:-1]
    out_ref = refs[-1]
    (wqkv1_ref, bqkv1_ref, wo1_ref, bo1_ref, g1_ref, be1_ref,
     wq2_ref, bq2_ref, wkv2_ref, bkv2_ref, wo2_ref, bo2_ref, g2_ref, be2_ref,
     wf1_ref, bf1_ref, wf2_ref, bf2_ref, g3_ref, be3_ref) = w_refs

    x = x_ref[...]            # [B*L, D]  f32
    enc = enc_ref[...]        # [B*Lk, D] f32
    D = x.shape[-1]
    dh = D // H

    # ---- masks (additive, f32, broadcastable to [*, B, Lq, Lk]) ----
    if causal:
        row = lax.broadcasted_iota(jnp.int32, (L, L), 0)
        col = lax.broadcasted_iota(jnp.int32, (L, L), 1)
        neg_la = jnp.where(row >= col, jnp.float32(0.0),
                           jnp.float32(-1e9))[None]          # [1, L, L]
    else:
        neg_la = la_ref[...]                                  # [mb, mq, L]
    neg_pad = pad_ref[...]                                    # [pb, pq, Lk]

    def attn(q2d, k2d, v2d, mask3, Lq, Lkv):
        # q2d: [B*Lq, D]; k2d/v2d: [B*Lkv, D]  (f32, already projected + biased)
        def heads(t, Lx):
            t = t.reshape(B * Lx, H, dh)       # split lanes into (H, dh)
            t = _swap01(t)                     # [H, B*Lx, dh]
            return t.reshape(H * B, Lx, dh)    # z = h*B + b  (leading batch)

        qh, kh, vh = heads(q2d, Lq), heads(k2d, Lkv), heads(v2d, Lkv)
        s = jnp.einsum("zqd,zkd->zqk", qh.astype(cdt), kh.astype(cdt),
                       preferred_element_type=jnp.float32)    # [H*B, Lq, Lkv]
        s = (s.reshape(H, B, Lq, Lkv) + mask3[None]).reshape(H * B, Lq, Lkv)
        s = s - jnp.max(s, axis=-1, keepdims=True)
        e = jnp.exp(s)
        denom = jnp.sum(e, axis=-1, keepdims=True)
        p = e * pl.reciprocal(denom, approx=approx)
        ctx = jnp.einsum("zqk,zkd->zqd", p.astype(cdt), vh.astype(cdt),
                         preferred_element_type=jnp.float32)  # [H*B, Lq, dh]
        ctx = _swap01(ctx.reshape(H, B * Lq, dh))             # [B*Lq, H, dh]
        return ctx.reshape(B * Lq, H * dh)                    # back to [B*Lq, D]

    # ---- self attention (fused QKV matmul; scale folded into Wq) ----
    qkv = jnp.dot(x.astype(cdt), wqkv1_ref[...],
                  preferred_element_type=jnp.float32) + bqkv1_ref[...]
    ctx1 = attn(qkv[:, :D], qkv[:, D:2 * D], qkv[:, 2 * D:], neg_la, L, L)
    attn1 = jnp.dot(ctx1.astype(cdt), wo1_ref[...],
                    preferred_element_type=jnp.float32) + bo1_ref[...]
    h1 = _layer_norm(x + attn1, g1_ref[...], be1_ref[...])

    # ---- cross attention (fused K/V matmul on encoder output) ----
    q2 = jnp.dot(h1.astype(cdt), wq2_ref[...],
                 preferred_element_type=jnp.float32) + bq2_ref[...]
    kv2 = jnp.dot(enc.astype(cdt), wkv2_ref[...],
                  preferred_element_type=jnp.float32) + bkv2_ref[...]
    ctx2 = attn(q2, kv2[:, :D], kv2[:, D:], neg_pad, L, Lk)
    attn2 = jnp.dot(ctx2.astype(cdt), wo2_ref[...],
                    preferred_element_type=jnp.float32) + bo2_ref[...]
    h2 = _layer_norm(h1 + attn2, g2_ref[...], be2_ref[...])

    # ---- feed forward ----
    ff = jnp.dot(h2.astype(cdt), wf1_ref[...],
                 preferred_element_type=jnp.float32) + bf1_ref[...]
    ff = jnp.maximum(ff, 0.0)
    ff = jnp.dot(ff.astype(cdt), wf2_ref[...],
                 preferred_element_type=jnp.float32) + bf2_ref[...]
    h3 = _layer_norm(h2 + ff, g3_ref[...], be3_ref[...])

    out_ref[...] = h3.astype(out_ref.dtype)


def _normalize_additive_mask(mask, Lq, Lk):
    """Normalize 1=keep / 0=masked masks to a small additive [mb, mq, Lk] mask."""
    m = jnp.asarray(mask, jnp.float32)
    if m.ndim == 4:            # [B, 1|H, 1|Lq, Lk] -> drop head axis
        m = m[:, 0]
    if m.ndim == 1:            # [Lk]           (per-key)
        m = m[None, None, :]
    elif m.ndim == 2:          # [1|Lq, Lk]     (shared across batch, as in the module)
        m = m[None]
    assert m.ndim == 3 and m.shape[-1] == Lk, f"bad mask shape {m.shape}"
    return (1.0 - m) * jnp.float32(-1e9)


def decoder_block_forward(x, enc_output, look_ahead_mask, padding_mask, params,
                          num_heads, compute_dtype=jnp.bfloat16,
                          approx_recip=True, causal=True,
                          vmem_limit_bytes=64 * 1024 * 1024):
    B, L, D = x.shape
    Lk = enc_output.shape[1]
    dh = D // num_heads
    scale = 1.0 / math.sqrt(dh)
    cdt = compute_dtype
    f32 = jnp.float32

    # Fold batch into the row axis (contiguous reshape, outside the kernel).
    x2d = x.astype(f32).reshape(B * L, D)
    enc2d = enc_output.astype(f32).reshape(B * Lk, D)

    # ---- weight prep (plain JAX, hoisted out of the kernel) ----
    wqkv1 = jnp.concatenate([params["wq1"] * scale, params["wk1"],
                             params["wv1"]], axis=1).astype(cdt)          # [D, 3D]
    bqkv1 = jnp.concatenate([params["bq1"] * scale, params["bk1"],
                             params["bv1"]], axis=1).astype(f32)          # [1, 3D]
    wq2 = (params["wq2"] * scale).astype(cdt)
    bq2 = (params["bq2"] * scale).astype(f32)
    wkv2 = jnp.concatenate([params["wk2"], params["wv2"]], axis=1).astype(cdt)
    bkv2 = jnp.concatenate([params["bk2"], params["bv2"]], axis=1).astype(f32)

    weights = [
        wqkv1, bqkv1, params["wo1"].astype(cdt), params["bo1"].astype(f32),
        params["g1"].astype(f32), params["be1"].astype(f32),
        wq2, bq2, wkv2, bkv2, params["wo2"].astype(cdt), params["bo2"].astype(f32),
        params["g2"].astype(f32), params["be2"].astype(f32),
        params["wf1"].astype(cdt), params["bf1"].astype(f32),
        params["wf2"].astype(cdt), params["bf2"].astype(f32),
        params["g3"].astype(f32), params["be3"].astype(f32),
    ]

    operands = [x2d, enc2d]
    if not causal:
        operands.append(_normalize_additive_mask(look_ahead_mask, L, L))
    operands.append(_normalize_additive_mask(padding_mask, L, Lk))
    operands.extend(weights)

    kernel = functools.partial(_decoder_block_kernel, B, L, Lk, num_heads,
                               causal, cdt, approx_recip)
    vmem_spec = pl.BlockSpec(memory_space=pltpu.MemorySpace.VMEM)

    out = pl.pallas_call(
        kernel,
        out_shape=jax.ShapeDtypeStruct((B * L, D), jnp.float32),
        in_specs=[vmem_spec] * len(operands),
        out_specs=vmem_spec,
        compiler_params=pltpu.CompilerParams(vmem_limit_bytes=vmem_limit_bytes),
    )(*operands)
    return out.reshape(B, L, D)


# -------------------- pure-JAX reference (for verification) --------------------
def _ref_forward(x, enc, la, pad, p, num_heads):
    def mha(q_in, kv_in, mask, wq, bq, wk, bk, wv, bv, wo, bo):
        D = q_in.shape[-1]
        dh = D // num_heads
        Q = q_in @ wq + bq
        K = kv_in @ wk + bk
        V = kv_in @ wv + bv
        heads = []
        for h in range(num_heads):
            qh = Q[..., h * dh:(h + 1) * dh]
            kh = K[..., h * dh:(h + 1) * dh]
            vh = V[..., h * dh:(h + 1) * dh]
            s = jnp.einsum("bqd,bkd->bqk", qh, kh) / math.sqrt(dh)
            s = s + (1.0 - mask)[None] * (-1e9)
            a = jax.nn.softmax(s, axis=-1)
            heads.append(jnp.einsum("bqk,bkd->bqd", a, vh))
        return jnp.concatenate(heads, axis=-1) @ wo + bo

    def ln(h, g, b):
        mu = jnp.mean(h, -1, keepdims=True)
        var = jnp.mean((h - mu) ** 2, -1, keepdims=True)
        return (h - mu) / jnp.sqrt(var + 1e-5) * g + b

    a1 = mha(x, x, la, p["wq1"], p["bq1"], p["wk1"], p["bk1"],
             p["wv1"], p["bv1"], p["wo1"], p["bo1"])
    h1 = ln(x + a1, p["g1"], p["be1"])
    a2 = mha(h1, enc, pad, p["wq2"], p["bq2"], p["wk2"], p["bk2"],
             p["wv2"], p["bv2"], p["wo2"], p["bo2"])
    h2 = ln(h1 + a2, p["g2"], p["be2"])
    ff = jnp.maximum(h2 @ p["wf1"] + p["bf1"], 0.0) @ p["wf2"] + p["bf2"]
    return ln(h2 + ff, p["g3"], p["be3"])


if __name__ == "__main__":
    B, L, Lk = 2, 8, 8
    d_model, num_heads, dff = 32, 4, 64

    key = jax.random.PRNGKey(0)
    ks = iter(jax.random.split(key, 32))

    def init_w(shape, scale=0.1):
        return (scale * jax.random.normal(next(ks), shape)).astype(jnp.float32)

    params = {}
    for tag in ("1", "2"):  # self-attn, cross-attn
        for name in ("wq", "wk", "wv", "wo"):
            params[name + tag] = init_w((d_model, d_model))
            params["b" + name[1] + tag] = init_w((1, d_model))
        params["g" + tag] = jnp.ones((1, d_model), jnp.float32)
        params["be" + tag] = jnp.zeros((1, d_model), jnp.float32)
    params["wf1"] = init_w((d_model, dff))
    params["bf1"] = init_w((1, dff))
    params["wf2"] = init_w((dff, d_model))
    params["bf2"] = init_w((1, d_model))
    params["g3"] = jnp.ones((1, d_model), jnp.float32)
    params["be3"] = jnp.zeros((1, d_model), jnp.float32)

    x = jax.random.normal(next(ks), (B, L, d_model), jnp.float32)
    enc_output = jax.random.normal(next(ks), (B, Lk, d_model), jnp.float32)
    # causal (look-ahead) mask: 1 = attend, 0 = masked
    look_ahead_mask = jnp.tril(jnp.ones((L, L), jnp.float32))
    # padding mask: mask out the last two encoder positions
    padding_mask = jnp.ones((L, Lk), jnp.float32).at[:, Lk - 2:].set(0.0)

    ref = _ref_forward(x, enc_output, look_ahead_mask, padding_mask,
                       params, num_heads)

    # 1) Exact-parity configuration, causal mask generated in-kernel (iota).
    out = decoder_block_forward(x, enc_output, look_ahead_mask, padding_mask,
                                params, num_heads,
                                compute_dtype=jnp.float32, approx_recip=False,
                                causal=True)
    out = jax.block_until_ready(out)
    np.testing.assert_allclose(np.asarray(out), np.asarray(ref),
                               rtol=1e-4, atol=1e-4)

    # 2) Exact-parity configuration, explicit (non-causal) mask path.
    out_m = decoder_block_forward(x, enc_output, look_ahead_mask, padding_mask,
                                  params, num_heads,
                                  compute_dtype=jnp.float32, approx_recip=False,
                                  causal=False)
    out_m = jax.block_until_ready(out_m)
    np.testing.assert_allclose(np.asarray(out_m), np.asarray(ref),
                               rtol=1e-4, atol=1e-4)

    # 3) Fast defaults: bf16 MXU operands + approximate EUP reciprocal.
    out_fast = decoder_block_forward(x, enc_output, look_ahead_mask,
                                     padding_mask, params, num_heads)
    out_fast = jax.block_until_ready(out_fast)
    np.testing.assert_allclose(np.asarray(out_fast), np.asarray(ref),
                               rtol=2e-1, atol=2e-1)

    print("KERNEL_OK")
</pallas_src>

<mosaic_0001>
module attributes {stable_mosaic.version = 11 : i64} {
  func.func @_decoder_block_kernel(%arg0: memref<16x32xf32, #tpu.memory_space<vmem>>, %arg1: memref<16x32xf32, #tpu.memory_space<vmem>>, %arg2: memref<1x8x8xf32, #tpu.memory_space<vmem>>, %arg3: memref<32x96xf32, #tpu.memory_space<vmem>>, %arg4: memref<1x96xf32, #tpu.memory_space<vmem>>, %arg5: memref<32x32xf32, #tpu.memory_space<vmem>>, %arg6: memref<1x32xf32, #tpu.memory_space<vmem>>, %arg7: memref<1x32xf32, #tpu.memory_space<vmem>>, %arg8: memref<1x32xf32, #tpu.memory_space<vmem>>, %arg9: memref<32x32xf32, #tpu.memory_space<vmem>>, %arg10: memref<1x32xf32, #tpu.memory_space<vmem>>, %arg11: memref<32x64xf32, #tpu.memory_space<vmem>>, %arg12: memref<1x64xf32, #tpu.memory_space<vmem>>, %arg13: memref<32x32xf32, #tpu.memory_space<vmem>>, %arg14: memref<1x32xf32, #tpu.memory_space<vmem>>, %arg15: memref<1x32xf32, #tpu.memory_space<vmem>>, %arg16: memref<1x32xf32, #tpu.memory_space<vmem>>, %arg17: memref<32x64xf32, #tpu.memory_space<vmem>>, %arg18: memref<1x64xf32, #tpu.memory_space<vmem>>, %arg19: memref<64x32xf32, #tpu.memory_space<vmem>>, %arg20: memref<1x32xf32, #tpu.memory_space<vmem>>, %arg21: memref<1x32xf32, #tpu.memory_space<vmem>>, %arg22: memref<1x32xf32, #tpu.memory_space<vmem>>, %arg23: memref<16x32xf32, #tpu.memory_space<vmem>>) attributes {dimension_semantics = [], scalar_prefetch = 0 : i64, scratch_operands = 0 : i64, tpu.core_type = #tpu.core_type<tc>} {
    %c0 = arith.constant 0 : index
    %c0_0 = arith.constant 0 : index
    %0 = vector.load %arg0[%c0, %c0_0] : memref<16x32xf32, #tpu.memory_space<vmem>>, vector<16x32xf32>
    %c0_1 = arith.constant 0 : index
    %c0_2 = arith.constant 0 : index
    %1 = vector.load %arg1[%c0_1, %c0_2] : memref<16x32xf32, #tpu.memory_space<vmem>>, vector<16x32xf32>
    %2 = tpu.iota {dimensions = array<i32: 0>} : vector<8x8xi32>
    %3 = tpu.iota {dimensions = array<i32: 1>} : vector<8x8xi32>
    %4 = arith.cmpi sge, %2, %3 : vector<8x8xi32>
    %cst = arith.constant 0.000000e+00 : f32
    %cst_3 = arith.constant -1.000000e+09 : f32
    %5 = vector.broadcast %cst : f32 to vector<8x8xf32>
    %6 = vector.broadcast %cst_3 : f32 to vector<8x8xf32>
    %7 = arith.select %4, %5, %6 : vector<8x8xi1>, vector<8x8xf32>
    %8 = vector.shape_cast %7 : vector<8x8xf32> to vector<1x8x8xf32>
    %c0_4 = arith.constant 0 : index
    %c0_5 = arith.constant 0 : index
    %c0_6 = arith.constant 0 : index
    %9 = vector.load %arg2[%c0_4, %c0_5, %c0_6] : memref<1x8x8xf32, #tpu.memory_space<vmem>>, vector<1x8x8xf32>
    %c0_7 = arith.constant 0 : index
    %c0_8 = arith.constant 0 : index
    %10 = vector.load %arg3[%c0_7, %c0_8] : memref<32x96xf32, #tpu.memory_space<vmem>>, vector<32x96xf32>
    %cst_9 = arith.constant dense<0.000000e+00> : vector<16x96xf32>
    %11 = tpu.matmul %0, %10, %cst_9 {dimension_numbers = #tpu.dot_dimension_numbers<[1], [0], [0], [1], [0, 0, 1, 1], [], []>} : vector<16x32xf32>, vector<32x96xf32>, vector<16x96xf32> -> vector<16x96xf32>
    %c0_10 = arith.constant 0 : index
    %c0_11 = arith.constant 0 : index
    %12 = vector.load %arg4[%c0_10, %c0_11] : memref<1x96xf32, #tpu.memory_space<vmem>>, vector<1x96xf32>
    %13 = vector.broadcast %12 : vector<1x96xf32> to vector<16x96xf32>
    %14 = arith.addf %11, %13 : vector<16x96xf32>
    %15 = vector.extract_strided_slice %14 {offsets = [0, 0], sizes = [16, 32], strides = [1, 1]} : vector<16x96xf32> to vector<16x32xf32>
    %16 = vector.extract_strided_slice %14 {offsets = [0, 32], sizes = [16, 32], strides = [1, 1]} : vector<16x96xf32> to vector<16x32xf32>
    %17 = vector.extract_strided_slice %14 {offsets = [0, 64], sizes = [16, 32], strides = [1, 1]} : vector<16x96xf32> to vector<16x32xf32>
    %18 = vector.shape_cast %15 : vector<16x32xf32> to vector<16x4x8xf32>
    %19 = tpu.transpose %18, [1, 0, 2] : vector<16x4x8xf32> -> vector<4x16x8xf32>
    %20 = vector.shape_cast %19 : vector<4x16x8xf32> to vector<8x8x8xf32>
    %21 = vector.shape_cast %16 : vector<16x32xf32> to vector<16x4x8xf32>
    %22 = tpu.transpose %21, [1, 0, 2] : vector<16x4x8xf32> -> vector<4x16x8xf32>
    %23 = vector.shape_cast %22 : vector<4x16x8xf32> to vector<8x8x8xf32>
    %24 = vector.shape_cast %17 : vector<16x32xf32> to vector<16x4x8xf32>
    %25 = tpu.transpose %24, [1, 0, 2] : vector<16x4x8xf32> -> vector<4x16x8xf32>
    %26 = vector.shape_cast %25 : vector<4x16x8xf32> to vector<8x8x8xf32>
    "tpu.trace_start"() <{level = 10 : i32, message = "zqd,zkd->zqk"}> : () -> ()
    %cst_12 = arith.constant dense<0.000000e+00> : vector<8x8x8xf32>
    %27 = tpu.matmul %20, %23, %cst_12 {dimension_numbers = #tpu.dot_dimension_numbers<[2], [2], [1], [1], [0, 0, 0, 1, 1, 1], [0], [0]>} : vector<8x8x8xf32>, vector<8x8x8xf32>, vector<8x8x8xf32> -> vector<8x8x8xf32>
    "tpu.trace_stop"() : () -> ()
    %28 = vector.shape_cast %27 : vector<8x8x8xf32> to vector<4x2x8x8xf32>
    %29 = vector.shape_cast %8 : vector<1x8x8xf32> to vector<1x1x8x8xf32>
    %30 = vector.broadcast %29 : vector<1x1x8x8xf32> to vector<4x2x8x8xf32>
    %31 = arith.addf %28, %30 : vector<4x2x8x8xf32>
    %32 = vector.shape_cast %31 : vector<4x2x8x8xf32> to vector<8x8x8xf32>
    %cst_13 = arith.constant dense<0xFF800000> : vector<8x8xf32>
    %33 = vector.multi_reduction <maximumf>, %32, %cst_13 [2] : vector<8x8x8xf32> to vector<8x8xf32>
    %34 = vector.shape_cast %33 : vector<8x8xf32> to vector<8x8x1xf32>
    %35 = vector.broadcast %34 : vector<8x8x1xf32> to vector<8x8x8xf32>
    %36 = arith.subf %32, %35 : vector<8x8x8xf32>
    %37 = math.exp %36 : vector<8x8x8xf32>
    %cst_14 = arith.constant dense<0.000000e+00> : vector<8x8xf32>
    %38 = vector.multi_reduction <add>, %37, %cst_14 [2] : vector<8x8x8xf32> to vector<8x8xf32>
    %39 = vector.shape_cast %38 : vector<8x8xf32> to vector<8x8x1xf32>
    %40 = tpu.reciprocal %39 : vector<8x8x1xf32> -> vector<8x8x1xf32>
    %41 = vector.broadcast %40 : vector<8x8x1xf32> to vector<8x8x8xf32>
    %42 = arith.mulf %37, %41 : vector<8x8x8xf32>
    "tpu.trace_start"() <{level = 10 : i32, message = "zqk,zkd->zqd"}> : () -> ()
    %cst_15 = arith.constant dense<0.000000e+00> : vector<8x8x8xf32>
    %43 = tpu.matmul %42, %26, %cst_15 {dimension_numbers = #tpu.dot_dimension_numbers<[2], [1], [1], [2], [0, 0, 0, 1, 1, 2], [0], [0]>} : vector<8x8x8xf32>, vector<8x8x8xf32>, vector<8x8x8xf32> -> vector<8x8x8xf32>
    "tpu.trace_stop"() : () -> ()
    %44 = vector.shape_cast %43 : vector<8x8x8xf32> to vector<4x16x8xf32>
    %45 = tpu.transpose %44, [1, 0, 2] : vector<4x16x8xf32> -> vector<16x4x8xf32>
    %46 = vector.shape_cast %45 : vector<16x4x8xf32> to vector<16x32xf32>
    %c0_16 = arith.constant 0 : index
    %c0_17 = arith.constant 0 : index
    %47 = vector.load %arg5[%c0_16, %c0_17] : memref<32x32xf32, #tpu.memory_space<vmem>>, vector<32x32xf32>
    %cst_18 = arith.constant dense<0.000000e+00> : vector<16x32xf32>
    %48 = tpu.matmul %46, %47, %cst_18 {dimension_numbers = #tpu.dot_dimension_numbers<[1], [0], [0], [1], [0, 0, 1, 1], [], []>} : vector<16x32xf32>, vector<32x32xf32>, vector<16x32xf32> -> vector<16x32xf32>
    %c0_19 = arith.constant 0 : index
    %c0_20 = arith.constant 0 : index
    %49 = vector.load %arg6[%c0_19, %c0_20] : memref<1x32xf32, #tpu.memory_space<vmem>>, vector<1x32xf32>
    %50 = vector.broadcast %49 : vector<1x32xf32> to vector<16x32xf32>
    %51 = arith.addf %48, %50 : vector<16x32xf32>
    %52 = arith.addf %0, %51 : vector<16x32xf32>
    %c0_21 = arith.constant 0 : index
    %c0_22 = arith.constant 0 : index
    %53 = vector.load %arg7[%c0_21, %c0_22] : memref<1x32xf32, #tpu.memory_space<vmem>>, vector<1x32xf32>
    %c0_23 = arith.constant 0 : index
    %c0_24 = arith.constant 0 : index
    %54 = vector.load %arg8[%c0_23, %c0_24] : memref<1x32xf32, #tpu.memory_space<vmem>>, vector<1x32xf32>
    %cst_25 = arith.constant dense<0.000000e+00> : vector<16xf32>
    %55 = vector.multi_reduction <add>, %52, %cst_25 [1] : vector<16x32xf32> to vector<16xf32>
    %56 = vector.shape_cast %55 : vector<16xf32> to vector<16x1xf32>
    %cst_26 = arith.constant 3.200000e+01 : f32
    %57 = vector.broadcast %cst_26 : f32 to vector<16x1xf32>
    %58 = arith.divf %56, %57 : vector<16x1xf32>
    %59 = vector.broadcast %58 : vector<16x1xf32> to vector<16x32xf32>
    %60 = arith.subf %52, %59 : vector<16x32xf32>
    %61 = arith.mulf %60, %60 : vector<16x32xf32>
    %cst_27 = arith.constant dense<0.000000e+00> : vector<16xf32>
    %62 = vector.multi_reduction <add>, %61, %cst_27 [1] : vector<16x32xf32> to vector<16xf32>
    %63 = vector.shape_cast %62 : vector<16xf32> to vector<16x1xf32>
    %cst_28 = arith.constant 3.200000e+01 : f32
    %64 = vector.broadcast %cst_28 : f32 to vector<16x1xf32>
    %65 = arith.divf %63, %64 : vector<16x1xf32>
    %66 = vector.broadcast %58 : vector<16x1xf32> to vector<16x32xf32>
    %67 = arith.subf %52, %66 : vector<16x32xf32>
    %cst_29 = arith.constant 9.99999974E-6 : f32
    %68 = vector.broadcast %cst_29 : f32 to vector<16x1xf32>
    %69 = arith.addf %65, %68 : vector<16x1xf32>
    %70 = math.rsqrt %69 : vector<16x1xf32>
    %71 = vector.broadcast %70 : vector<16x1xf32> to vector<16x32xf32>
    %72 = arith.mulf %67, %71 : vector<16x32xf32>
    %73 = vector.broadcast %53 : vector<1x32xf32> to vector<16x32xf32>
    %74 = arith.mulf %72, %73 : vector<16x32xf32>
    %75 = vector.broadcast %54 : vector<1x32xf32> to vector<16x32xf32>
    %76 = arith.addf %74, %75 : vector<16x32xf32>
    %c0_30 = arith.constant 0 : index
    %c0_31 = arith.constant 0 : index
    %77 = vector.load %arg9[%c0_30, %c0_31] : memref<32x32xf32, #tpu.memory_space<vmem>>, vector<32x32xf32>
    %cst_32 = arith.constant dense<0.000000e+00> : vector<16x32xf32>
    %78 = tpu.matmul %76, %77, %cst_32 {dimension_numbers = #tpu.dot_dimension_numbers<[1], [0], [0], [1], [0, 0, 1, 1], [], []>} : vector<16x32xf32>, vector<32x32xf32>, vector<16x32xf32> -> vector<16x32xf32>
    %c0_33 = arith.constant 0 : index
    %c0_34 = arith.constant 0 : index
    %79 = vector.load %arg10[%c0_33, %c0_34] : memref<1x32xf32, #tpu.memory_space<vmem>>, vector<1x32xf32>
    %80 = vector.broadcast %79 : vector<1x32xf32> to vector<16x32xf32>
    %81 = arith.addf %78, %80 : vector<16x32xf32>
    %c0_35 = arith.constant 0 : index
    %c0_36 = arith.constant 0 : index
    %82 = vector.load %arg11[%c0_35, %c0_36] : memref<32x64xf32, #tpu.memory_space<vmem>>, vector<32x64xf32>
    %cst_37 = arith.constant dense<0.000000e+00> : vector<16x64xf32>
    %83 = tpu.matmul %1, %82, %cst_37 {dimension_numbers = #tpu.dot_dimension_numbers<[1], [0], [0], [1], [0, 0, 1, 1], [], []>} : vector<16x32xf32>, vector<32x64xf32>, vector<16x64xf32> -> vector<16x64xf32>
    %c0_38 = arith.constant 0 : index
    %c0_39 = arith.constant 0 : index
    %84 = vector.load %arg12[%c0_38, %c0_39] : memref<1x64xf32, #tpu.memory_space<vmem>>, vector<1x64xf32>
    %85 = vector.broadcast %84 : vector<1x64xf32> to vector<16x64xf32>
    %86 = arith.addf %83, %85 : vector<16x64xf32>
    %87 = vector.extract_strided_slice %86 {offsets = [0, 0], sizes = [16, 32], strides = [1, 1]} : vector<16x64xf32> to vector<16x32xf32>
    %88 = vector.extract_strided_slice %86 {offsets = [0, 32], sizes = [16, 32], strides = [1, 1]} : vector<16x64xf32> to vector<16x32xf32>
    %89 = vector.shape_cast %81 : vector<16x32xf32> to vector<16x4x8xf32>
    %90 = tpu.transpose %89, [1, 0, 2] : vector<16x4x8xf32> -> vector<4x16x8xf32>
    %91 = vector.shape_cast %90 : vector<4x16x8xf32> to vector<8x8x8xf32>
    %92 = vector.shape_cast %87 : vector<16x32xf32> to vector<16x4x8xf32>
    %93 = tpu.transpose %92, [1, 0, 2] : vector<16x4x8xf32> -> vector<4x16x8xf32>
    %94 = vector.shape_cast %93 : vector<4x16x8xf32> to vector<8x8x8xf32>
    %95 = vector.shape_cast %88 : vector<16x32xf32> to vector<16x4x8xf32>
    %96 = tpu.transpose %95, [1, 0, 2] : vector<16x4x8xf32> -> vector<4x16x8xf32>
    %97 = vector.shape_cast %96 : vector<4x16x8xf32> to vector<8x8x8xf32>
    "tpu.trace_start"() <{level = 10 : i32, message = "zqd,zkd->zqk"}> : () -> ()
    %cst_40 = arith.constant dense<0.000000e+00> : vector<8x8x8xf32>
    %98 = tpu.matmul %91, %94, %cst_40 {dimension_numbers = #tpu.dot_dimension_numbers<[2], [2], [1], [1], [0, 0, 0, 1, 1, 1], [0], [0]>} : vector<8x8x8xf32>, vector<8x8x8xf32>, vector<8x8x8xf32> -> vector<8x8x8xf32>
    "tpu.trace_stop"() : () -> ()
    %99 = vector.shape_cast %98 : vector<8x8x8xf32> to vector<4x2x8x8xf32>
    %100 = vector.shape_cast %9 : vector<1x8x8xf32> to vector<1x1x8x8xf32>
    %101 = vector.broadcast %100 : vector<1x1x8x8xf32> to vector<4x2x8x8xf32>
    %102 = arith.addf %99, %101 : vector<4x2x8x8xf32>
    %103 = vector.shape_cast %102 : vector<4x2x8x8xf32> to vector<8x8x8xf32>
    %cst_41 = arith.constant dense<0xFF800000> : vector<8x8xf32>
    %104 = vector.multi_reduction <maximumf>, %103, %cst_41 [2] : vector<8x8x8xf32> to vector<8x8xf32>
    %105 = vector.shape_cast %104 : vector<8x8xf32> to vector<8x8x1xf32>
    %106 = vector.broadcast %105 : vector<8x8x1xf32> to vector<8x8x8xf32>
    %107 = arith.subf %103, %106 : vector<8x8x8xf32>
    %108 = math.exp %107 : vector<8x8x8xf32>
    %cst_42 = arith.constant dense<0.000000e+00> : vector<8x8xf32>
    %109 = vector.multi_reduction <add>, %108, %cst_42 [2] : vector<8x8x8xf32> to vector<8x8xf32>
    %110 = vector.shape_cast %109 : vector<8x8xf32> to vector<8x8x1xf32>
    %111 = tpu.reciprocal %110 : vector<8x8x1xf32> -> vector<8x8x1xf32>
    %112 = vector.broadcast %111 : vector<8x8x1xf32> to vector<8x8x8xf32>
    %113 = arith.mulf %108, %112 : vector<8x8x8xf32>
    "tpu.trace_start"() <{level = 10 : i32, message = "zqk,zkd->zqd"}> : () -> ()
    %cst_43 = arith.constant dense<0.000000e+00> : vector<8x8x8xf32>
    %114 = tpu.matmul %113, %97, %cst_43 {dimension_numbers = #tpu.dot_dimension_numbers<[2], [1], [1], [2], [0, 0, 0, 1, 1, 2], [0], [0]>} : vector<8x8x8xf32>, vector<8x8x8xf32>, vector<8x8x8xf32> -> vector<8x8x8xf32>
    "tpu.trace_stop"() : () -> ()
    %115 = vector.shape_cast %114 : vector<8x8x8xf32> to vector<4x16x8xf32>
    %116 = tpu.transpose %115, [1, 0, 2] : vector<4x16x8xf32> -> vector<16x4x8xf32>
    %117 = vector.shape_cast %116 : vector<16x4x8xf32> to vector<16x32xf32>
    %c0_44 = arith.constant 0 : index
    %c0_45 = arith.constant 0 : index
    %118 = vector.load %arg13[%c0_44, %c0_45] : memref<32x32xf32, #tpu.memory_space<vmem>>, vector<32x32xf32>
    %cst_46 = arith.constant dense<0.000000e+00> : vector<16x32xf32>
    %119 = tpu.matmul %117, %118, %cst_46 {dimension_numbers = #tpu.dot_dimension_numbers<[1], [0], [0], [1], [0, 0, 1, 1], [], []>} : vector<16x32xf32>, vector<32x32xf32>, vector<16x32xf32> -> vector<16x32xf32>
    %c0_47 = arith.constant 0 : index
    %c0_48 = arith.constant 0 : index
    %120 = vector.load %arg14[%c0_47, %c0_48] : memref<1x32xf32, #tpu.memory_space<vmem>>, vector<1x32xf32>
    %121 = vector.broadcast %120 : vector<1x32xf32> to vector<16x32xf32>
    %122 = arith.addf %119, %121 : vector<16x32xf32>
    %123 = arith.addf %76, %122 : vector<16x32xf32>
    %c0_49 = arith.constant 0 : index
    %c0_50 = arith.constant 0 : index
    %124 = vector.load %arg15[%c0_49, %c0_50] : memref<1x32xf32, #tpu.memory_space<vmem>>, vector<1x32xf32>
    %c0_51 = arith.constant 0 : index
    %c0_52 = arith.constant 0 : index
    %125 = vector.load %arg16[%c0_51, %c0_52] : memref<1x32xf32, #tpu.memory_space<vmem>>, vector<1x32xf32>
    %cst_53 = arith.constant dense<0.000000e+00> : vector<16xf32>
    %126 = vector.multi_reduction <add>, %123, %cst_53 [1] : vector<16x32xf32> to vector<16xf32>
    %127 = vector.shape_cast %126 : vector<16xf32> to vector<16x1xf32>
    %cst_54 = arith.constant 3.200000e+01 : f32
    %128 = vector.broadcast %cst_54 : f32 to vector<16x1xf32>
    %129 = arith.divf %127, %128 : vector<16x1xf32>
    %130 = vector.broadcast %129 : vector<16x1xf32> to vector<16x32xf32>
    %131 = arith.subf %123, %130 : vector<16x32xf32>
    %132 = arith.mulf %131, %131 : vector<16x32xf32>
    %cst_55 = arith.constant dense<0.000000e+00> : vector<16xf32>
    %133 = vector.multi_reduction <add>, %132, %cst_55 [1] : vector<16x32xf32> to vector<16xf32>
    %134 = vector.shape_cast %133 : vector<16xf32> to vector<16x1xf32>
    %cst_56 = arith.constant 3.200000e+01 : f32
    %135 = vector.broadcast %cst_56 : f32 to vector<16x1xf32>
    %136 = arith.divf %134, %135 : vector<16x1xf32>
    %137 = vector.broadcast %129 : vector<16x1xf32> to vector<16x32xf32>
    %138 = arith.subf %123, %137 : vector<16x32xf32>
    %cst_57 = arith.constant 9.99999974E-6 : f32
    %139 = vector.broadcast %cst_57 : f32 to vector<16x1xf32>
    %140 = arith.addf %136, %139 : vector<16x1xf32>
    %141 = math.rsqrt %140 : vector<16x1xf32>
    %142 = vector.broadcast %141 : vector<16x1xf32> to vector<16x32xf32>
    %143 = arith.mulf %138, %142 : vector<16x32xf32>
    %144 = vector.broadcast %124 : vector<1x32xf32> to vector<16x32xf32>
    %145 = arith.mulf %143, %144 : vector<16x32xf32>
    %146 = vector.broadcast %125 : vector<1x32xf32> to vector<16x32xf32>
    %147 = arith.addf %145, %146 : vector<16x32xf32>
    %c0_58 = arith.constant 0 : index
    %c0_59 = arith.constant 0 : index
    %148 = vector.load %arg17[%c0_58, %c0_59] : memref<32x64xf32, #tpu.memory_space<vmem>>, vector<32x64xf32>
    %cst_60 = arith.constant dense<0.000000e+00> : vector<16x64xf32>
    %149 = tpu.matmul %147, %148, %cst_60 {dimension_numbers = #tpu.dot_dimension_numbers<[1], [0], [0], [1], [0, 0, 1, 1], [], []>} : vector<16x32xf32>, vector<32x64xf32>, vector<16x64xf32> -> vector<16x64xf32>
    %c0_61 = arith.constant 0 : index
    %c0_62 = arith.constant 0 : index
    %150 = vector.load %arg18[%c0_61, %c0_62] : memref<1x64xf32, #tpu.memory_space<vmem>>, vector<1x64xf32>
    %151 = vector.broadcast %150 : vector<1x64xf32> to vector<16x64xf32>
    %152 = arith.addf %149, %151 : vector<16x64xf32>
    %cst_63 = arith.constant 0.000000e+00 : f32
    %153 = vector.broadcast %cst_63 : f32 to vector<16x64xf32>
    %154 = arith.maximumf %152, %153 : vector<16x64xf32>
    %c0_64 = arith.constant 0 : index
    %c0_65 = arith.constant 0 : index
    %155 = vector.load %arg19[%c0_64, %c0_65] : memref<64x32xf32, #tpu.memory_space<vmem>>, vector<64x32xf32>
    %cst_66 = arith.constant dense<0.000000e+00> : vector<16x32xf32>
    %156 = tpu.matmul %154, %155, %cst_66 {dimension_numbers = #tpu.dot_dimension_numbers<[1], [0], [0], [1], [0, 0, 1, 1], [], []>} : vector<16x64xf32>, vector<64x32xf32>, vector<16x32xf32> -> vector<16x32xf32>
    %c0_67 = arith.constant 0 : index
    %c0_68 = arith.constant 0 : index
    %157 = vector.load %arg20[%c0_67, %c0_68] : memref<1x32xf32, #tpu.memory_space<vmem>>, vector<1x32xf32>
    %158 = vector.broadcast %157 : vector<1x32xf32> to vector<16x32xf32>
    %159 = arith.addf %156, %158 : vector<16x32xf32>
    %160 = arith.addf %147, %159 : vector<16x32xf32>
    %c0_69 = arith.constant 0 : index
    %c0_70 = arith.constant 0 : index
    %161 = vector.load %arg21[%c0_69, %c0_70] : memref<1x32xf32, #tpu.memory_space<vmem>>, vector<1x32xf32>
    %c0_71 = arith.constant 0 : index
    %c0_72 = arith.constant 0 : index
    %162 = vector.load %arg22[%c0_71, %c0_72] : memref<1x32xf32, #tpu.memory_space<vmem>>, vector<1x32xf32>
    %cst_73 = arith.constant dense<0.000000e+00> : vector<16xf32>
    %163 = vector.multi_reduction <add>, %160, %cst_73 [1] : vector<16x32xf32> to vector<16xf32>
    %164 = vector.shape_cast %163 : vector<16xf32> to vector<16x1xf32>
    %cst_74 = arith.constant 3.200000e+01 : f32
    %165 = vector.broadcast %cst_74 : f32 to vector<16x1xf32>
    %166 = arith.divf %164, %165 : vector<16x1xf32>
    %167 = vector.broadcast %166 : vector<16x1xf32> to vector<16x32xf32>
    %168 = arith.subf %160, %167 : vector<16x32xf32>
    %169 = arith.mulf %168, %168 : vector<16x32xf32>
    %cst_75 = arith.constant dense<0.000000e+00> : vector<16xf32>
    %170 = vector.multi_reduction <add>, %169, %cst_75 [1] : vector<16x32xf32> to vector<16xf32>
    %171 = vector.shape_cast %170 : vector<16xf32> to vector<16x1xf32>
    %cst_76 = arith.constant 3.200000e+01 : f32
    %172 = vector.broadcast %cst_76 : f32 to vector<16x1xf32>
    %173 = arith.divf %171, %172 : vector<16x1xf32>
    %174 = vector.broadcast %166 : vector<16x1xf32> to vector<16x32xf32>
    %175 = arith.subf %160, %174 : vector<16x32xf32>
    %cst_77 = arith.constant 9.99999974E-6 : f32
    %176 = vector.broadcast %cst_77 : f32 to vector<16x1xf32>
    %177 = arith.addf %173, %176 : vector<16x1xf32>
    %178 = math.rsqrt %177 : vector<16x1xf32>
    %179 = vector.broadcast %178 : vector<16x1xf32> to vector<16x32xf32>
    %180 = arith.mulf %175, %179 : vector<16x32xf32>
    %181 = vector.broadcast %161 : vector<1x32xf32> to vector<16x32xf32>
    %182 = arith.mulf %180, %181 : vector<16x32xf32>
    %183 = vector.broadcast %162 : vector<1x32xf32> to vector<16x32xf32>
    %184 = arith.addf %182, %183 : vector<16x32xf32>
    %c0_78 = arith.constant 0 : index
    %c0_79 = arith.constant 0 : index
    %185 = vector.load %arg23[%c0_78, %c0_79] : memref<16x32xf32, #tpu.memory_space<vmem>>, vector<16x32xf32>
    tpu.vector_store %arg23[%c0_78, %c0_79], %184 {strides = array<i32>} : memref<16x32xf32, #tpu.memory_space<vmem>>, vector<16x32xf32>,
    return
  }
}

</mosaic_0001>

<llo_original>
// kernel: tpu_custom_call.1
$region0: #{tpu_custom_call.1}
  #allocation0 [shape = 'u32[]', space=smem, size = 0x4, offset = 0x4, fixed_abs, tag = 'smem constant byte address 0x4 - core index']
  #allocation1 [shape = 'u32[72,128]{1,0:T(1,128)}', space=vmem, size = 0x9000, scoped, tag = 'internal scratch']
  %s0 = inlined_call_operand.hbm [shape: f32[16,32], index: 0, kind: input, shape index: {}]
  %s1 = inlined_call_operand.hbm [shape: f32[16,32], index: 1, kind: input, shape index: {}]
  %s2 = inlined_call_operand.hbm [shape: f32[1,8,8], index: 2, kind: input, shape index: {}]
  %s3 = inlined_call_operand.vmem [shape: f32[32,96], index: 3, kind: input, shape index: {}]
  %s4 = inlined_call_operand.vmem [shape: f32[1,96], index: 4, kind: input, shape index: {}]
  %s5 = inlined_call_operand.vmem [shape: f32[32,32], index: 5, kind: input, shape index: {}]
  %s6 = inlined_call_operand.vmem [shape: f32[1,32], index: 6, kind: input, shape index: {}]
  %s7 = inlined_call_operand.vmem [shape: f32[1,32], index: 7, kind: input, shape index: {}]
  %s8 = inlined_call_operand.vmem [shape: f32[1,32], index: 8, kind: input, shape index: {}]
  %s9 = inlined_call_operand.vmem [shape: f32[32,32], index: 9, kind: input, shape index: {}]
  %s10 = inlined_call_operand.vmem [shape: f32[1,32], index: 10, kind: input, shape index: {}]
  %s11 = inlined_call_operand.hbm [shape: f32[32,64], index: 11, kind: input, shape index: {}]
  %s12 = inlined_call_operand.vmem [shape: f32[1,64], index: 12, kind: input, shape index: {}]
  %s13 = inlined_call_operand.hbm [shape: f32[32,32], index: 13, kind: input, shape index: {}]
  %s14 = inlined_call_operand.vmem [shape: f32[1,32], index: 14, kind: input, shape index: {}]
  %s15 = inlined_call_operand.vmem [shape: f32[1,32], index: 15, kind: input, shape index: {}]
  %s16 = inlined_call_operand.vmem [shape: f32[1,32], index: 16, kind: input, shape index: {}]
  %s17 = inlined_call_operand.hbm [shape: f32[32,64], index: 17, kind: input, shape index: {}]
  %s18 = inlined_call_operand.vmem [shape: f32[1,64], index: 18, kind: input, shape index: {}]
  %s19 = inlined_call_operand.vmem [shape: f32[64,32], index: 19, kind: input, shape index: {}]
  %s20 = inlined_call_operand.vmem [shape: f32[1,32], index: 20, kind: input, shape index: {}]
  %s21 = inlined_call_operand.vmem [shape: f32[1,32], index: 21, kind: input, shape index: {}]
  %s22 = inlined_call_operand.vmem [shape: f32[1,32], index: 22, kind: input, shape index: {}]
  %s23 = inlined_call_operand.hbm [shape: f32[16,32], index: 23, kind: output, shape index: {}]
  %s24 = sld [smem:[#allocation0]]
  $region126: #{tpu_custom_call.1} parent=0
    _
  %s26 = ssub.s32 1, %s24
  %s27 = scalar_select 0, %s26, %s24
  $region1: #{tpu_custom_call.1} parent=0
    #allocation2 [shape = 'u8[8192]{0}', space=vmem, size = 0x2000, scoped, tag = 'input window, operand 0, single buffered']
    #allocation3 [shape = 's32[1]{0}', space=sflag, size = 0x4, scoped, tag = 'scoped memory for tpu_custom_call.1']
    #allocation4 [shape = 's32[1]{0}', space=sflag, size = 0x4, scoped, tag = 'scoped memory for tpu_custom_call.1']
    #allocation5 [shape = 'u8[8192]{0}', space=vmem, size = 0x2000, scoped, tag = 'input window, operand 1, single buffered']
    #allocation6 [shape = 's32[1]{0}', space=sflag, size = 0x4, scoped, tag = 'scoped memory for tpu_custom_call.1']
    #allocation7 [shape = 'u8[4096]{0}', space=vmem, size = 0x1000, scoped, tag = 'input window, operand 2, single buffered']
    #allocation8 [shape = 'u8[16384]{0}', space=vmem, size = 0x4000, scoped, tag = 'input window, operand 11, single buffered']
    #allocation9 [shape = 's32[1]{0}', space=sflag, size = 0x4, scoped, tag = 'scoped memory for tpu_custom_call.1']
    #allocation10 [shape = 'u8[16384]{0}', space=vmem, size = 0x4000, scoped, tag = 'input window, operand 13, single buffered']
    #allocation11 [shape = 'u8[16384]{0}', space=vmem, size = 0x4000, scoped, tag = 'input window, operand 17, single buffered']
    #allocation12 [shape = 's32[1]{0}', space=sflag, size = 0x4, scoped, tag = 'scoped memory for tpu_custom_call.1']
    #allocation13 [shape = 'u8[8192]{0}', space=vmem, size = 0x2000, scoped, tag = 'output window, operand 0, single buffered']
    %28 = vsyncpa [#allocation3], 0
    %29 = vsyncpa [#allocation6], 0
    %30 = vsyncpa [#allocation9], 0
    %31 = vsyncpa [#allocation12], 0
    %32 = vsyncpa [#allocation4], 0
    // Predicated region
    $region2: #{tpu_custom_call.1} parent=1 // pred_check
      _
    $region3: #{tpu_custom_call.1} parent=1 // pred_check_branch
      %34 = sbr.rel (0) target = $region5
    $region4: #{tpu_custom_call.1} parent=1 // pred_region
      %36 = vsyncadd [#allocation3], 0
      %s37 = sshll.u32 %s0, 4
      %s38 = int_to_ptr.hbm [resolvable:$true] %s37
      %s39 = sshll.u32 [#allocation2], 4
      %s40 = int_to_ptr.vmem [resolvable:$true] %s39
      %45 = dma.hbm_to_vmem [thread:$0]  %s38, 256, %s40, [#allocation3], 128, 128, 8
    $region5: #{tpu_custom_call.1} parent=1 // pred_fallthru
      _
    // Predicated region
    $region6: #{tpu_custom_call.1} parent=1 // pred_check
      _
    $region7: #{tpu_custom_call.1} parent=1 // pred_check_branch
      %47 = sbr.rel (0) target = $region9
    $region8: #{tpu_custom_call.1} parent=1 // pred_region
      %49 = vsyncadd [#allocation6], 0
      %s50 = sshll.u32 %s1, 4
      %s51 = int_to_ptr.hbm [resolvable:$true] %s50
      %s52 = sshll.u32 [#allocation5], 4
      %s53 = int_to_ptr.vmem [resolvable:$true] %s52
      %58 = dma.hbm_to_vmem [thread:$0]  %s51, 256, %s53, [#allocation6], 128, 128, 8
    $region9: #{tpu_custom_call.1} parent=1 // pred_fallthru
      _
    // Predicated region
    $region10: #{tpu_custom_call.1} parent=1 // pred_check
      _
    $region11: #{tpu_custom_call.1} parent=1 // pred_check_branch
      %60 = sbr.rel (0) target = $region13
    $region12: #{tpu_custom_call.1} parent=1 // pred_region
      %62 = vsyncadd [#allocation6], 0
      %s64 = sshll.u32 %s2, 4
      %s65 = int_to_ptr.hbm [resolvable:$true] %s64
      %s66 = sshll.u32 [#allocation7], 4
      %s67 = int_to_ptr.vmem [resolvable:$true] %s66
      %69 = dma.hbm_to_vmem [thread:$0]  %s65, 128, %s67, [#allocation6]
    $region13: #{tpu_custom_call.1} parent=1 // pred_fallthru
      _
    // Predicated region
    $region14: #{tpu_custom_call.1} parent=1 // pred_check
      _
    $region15: #{tpu_custom_call.1} parent=1 // pred_check_branch
      %71 = sbr.rel (0) target = $region17
    $region16: #{tpu_custom_call.1} parent=1 // pred_region
      _
    $region17: #{tpu_custom_call.1} parent=1 // pred_fallthru
      _
    // Predicated region
    $region18: #{tpu_custom_call.1} parent=1 // pred_check
      _
    $region19: #{tpu_custom_call.1} parent=1 // pred_check_branch
      %73 = sbr.rel (0) target = $region21
    $region20: #{tpu_custom_call.1} parent=1 // pred_region
      _
    $region21: #{tpu_custom_call.1} parent=1 // pred_fallthru
      _
    // Predicated region
    $region22: #{tpu_custom_call.1} parent=1 // pred_check
      _
    $region23: #{tpu_custom_call.1} parent=1 // pred_check_branch
      %75 = sbr.rel (0) target = $region25
    $region24: #{tpu_custom_call.1} parent=1 // pred_region
      _
    $region25: #{tpu_custom_call.1} parent=1 // pred_fallthru
      _
    // Predicated region
    $region26: #{tpu_custom_call.1} parent=1 // pred_check
      _
    $region27: #{tpu_custom_call.1} parent=1 // pred_check_branch
      %77 = sbr.rel (0) target = $region29
    $region28: #{tpu_custom_call.1} parent=1 // pred_region
      _
    $region29: #{tpu_custom_call.1} parent=1 // pred_fallthru
      _
    // Predicated region
    $region30: #{tpu_custom_call.1} parent=1 // pred_check
      _
    $region31: #{tpu_custom_call.1} parent=1 // pred_check_branch
      %79 = sbr.rel (0) target = $region33
    $region32: #{tpu_custom_call.1} parent=1 // pred_region
      _
    $region33: #{tpu_custom_call.1} parent=1 // pred_fallthru
      _
    // Predicated region
    $region34: #{tpu_custom_call.1} parent=1 // pred_check
      _
    $region35: #{tpu_custom_call.1} parent=1 // pred_check_branch
      %81 = sbr.rel (0) target = $region37
    $region36: #{tpu_custom_call.1} parent=1 // pred_region
      _
    $region37: #{tpu_custom_call.1} parent=1 // pred_fallthru
      _
    // Predicated region
    $region38: #{tpu_custom_call.1} parent=1 // pred_check
      _
    $region39: #{tpu_custom_call.1} parent=1 // pred_check_branch
      %83 = sbr.rel (0) target = $region41
    $region40: #{tpu_custom_call.1} parent=1 // pred_region
      _
    $region41: #{tpu_custom_call.1} parent=1 // pred_fallthru
      _
    // Predicated region
    $region42: #{tpu_custom_call.1} parent=1 // pred_check
      _
    $region43: #{tpu_custom_call.1} parent=1 // pred_check_branch
      %85 = sbr.rel (0) target = $region45
    $region44: #{tpu_custom_call.1} parent=1 // pred_region
      _
    $region45: #{tpu_custom_call.1} parent=1 // pred_fallthru
      _
    // Predicated region
    $region46: #{tpu_custom_call.1} parent=1 // pred_check
      _
    $region47: #{tpu_custom_call.1} parent=1 // pred_check_branch
      %87 = sbr.rel (0) target = $region49
    $region48: #{tpu_custom_call.1} parent=1 // pred_region
      %89 = vsyncadd [#allocation9], 0
      %s90 = sshll.u32 %s11, 4
      %s91 = int_to_ptr.hbm [resolvable:$true] %s90
      %s92 = sshll.u32 [#allocation8], 4
      %s93 = int_to_ptr.vmem [resolvable:$true] %s92
      %98 = dma.hbm_to_vmem [thread:$0]  %s91, 512, %s93, [#allocation9], 128, 128, 8
    $region49: #{tpu_custom_call.1} parent=1 // pred_fallthru
      _
    // Predicated region
    $region50: #{tpu_custom_call.1} parent=1 // pred_check
      _
    $region51: #{tpu_custom_call.1} parent=1 // pred_check_branch
      %100 = sbr.rel (0) target = $region53
    $region52: #{tpu_custom_call.1} parent=1 // pred_region
      _
    $region53: #{tpu_custom_call.1} parent=1 // pred_fallthru
      _
    // Predicated region
    $region54: #{tpu_custom_call.1} parent=1 // pred_check
      _
    $region55: #{tpu_custom_call.1} parent=1 // pred_check_branch
      %102 = sbr.rel (0) target = $region57
    $region56: #{tpu_custom_call.1} parent=1 // pred_region
      %104 = vsyncadd [#allocation9], 0
      %s105 = sshll.u32 %s13, 4
      %s106 = int_to_ptr.hbm [resolvable:$true] %s105
      %s107 = sshll.u32 [#allocation10], 4
      %s108 = int_to_ptr.vmem [resolvable:$true] %s107
      %113 = dma.hbm_to_vmem [thread:$0]  %s106, 512, %s108, [#allocation9], 128, 128, 8
    $region57: #{tpu_custom_call.1} parent=1 // pred_fallthru
      _
    // Predicated region
    $region58: #{tpu_custom_call.1} parent=1 // pred_check
      _
    $region59: #{tpu_custom_call.1} parent=1 // pred_check_branch
      %115 = sbr.rel (0) target = $region61
    $region60: #{tpu_custom_call.1} parent=1 // pred_region
      _
    $region61: #{tpu_custom_call.1} parent=1 // pred_fallthru
      _
    // Predicated region
    $region62: #{tpu_custom_call.1} parent=1 // pred_check
      _
    $region63: #{tpu_custom_call.1} parent=1 // pred_check_branch
      %117 = sbr.rel (0) target = $region65
    $region64: #{tpu_custom_call.1} parent=1 // pred_region
      _
    $region65: #{tpu_custom_call.1} parent=1 // pred_fallthru
      _
    // Predicated region
    $region66: #{tpu_custom_call.1} parent=1 // pred_check
      _
    $region67: #{tpu_custom_call.1} parent=1 // pred_check_branch
      %119 = sbr.rel (0) target = $region69
    $region68: #{tpu_custom_call.1} parent=1 // pred_region
      _
    $region69: #{tpu_custom_call.1} parent=1 // pred_fallthru
      _
    // Predicated region
    $region70: #{tpu_custom_call.1} parent=1 // pred_check
      _
    $region71: #{tpu_custom_call.1} parent=1 // pred_check_branch
      %121 = sbr.rel (0) target = $region73
    $region72: #{tpu_custom_call.1} parent=1 // pred_region
      %123 = vsyncadd [#allocation12], 0
      %s124 = sshll.u32 %s17, 4
      %s125 = int_to_ptr.hbm [resolvable:$true] %s124
      %s126 = sshll.u32 [#allocation11], 4
      %s127 = int_to_ptr.vmem [resolvable:$true] %s126
      %132 = dma.hbm_to_vmem [thread:$0]  %s125, 512, %s127, [#allocation12], 128, 128, 8
    $region73: #{tpu_custom_call.1} parent=1 // pred_fallthru
      _
    // Predicated region
    $region74: #{tpu_custom_call.1} parent=1 // pred_check
      _
    $region75: #{tpu_custom_call.1} parent=1 // pred_check_branch
      %134 = sbr.rel (0) target = $region77
    $region76: #{tpu_custom_call.1} parent=1 // pred_region
      _
    $region77: #{tpu_custom_call.1} parent=1 // pred_fallthru
      _
    // Predicated region
    $region78: #{tpu_custom_call.1} parent=1 // pred_check
      _
    $region79: #{tpu_custom_call.1} parent=1 // pred_check_branch
      %136 = sbr.rel (0) target = $region81
    $region80: #{tpu_custom_call.1} parent=1 // pred_region
      _
    $region81: #{tpu_custom_call.1} parent=1 // pred_fallthru
      _
    // Predicated region
    $region82: #{tpu_custom_call.1} parent=1 // pred_check
      _
    $region83: #{tpu_custom_call.1} parent=1 // pred_check_branch
      %138 = sbr.rel (0) target = $region85
    $region84: #{tpu_custom_call.1} parent=1 // pred_region
      _
    $region85: #{tpu_custom_call.1} parent=1 // pred_fallthru
      _
    // Predicated region
    $region86: #{tpu_custom_call.1} parent=1 // pred_check
      _
    $region87: #{tpu_custom_call.1} parent=1 // pred_check_branch
      %140 = sbr.rel (0) target = $region89
    $region88: #{tpu_custom_call.1} parent=1 // pred_region
      _
    $region89: #{tpu_custom_call.1} parent=1 // pred_fallthru
      _
    // Predicated region
    $region90: #{tpu_custom_call.1} parent=1 // pred_check
      _
    $region91: #{tpu_custom_call.1} parent=1 // pred_check_branch
      %142 = sbr.rel (0) target = $region93
    $region92: #{tpu_custom_call.1} parent=1 // pred_region
      _
    $region93: #{tpu_custom_call.1} parent=1 // pred_fallthru
      _
    // Predicated region
    $region94: #{tpu_custom_call.1} parent=1 // pred_check
      _
    $region95: #{tpu_custom_call.1} parent=1 // pred_check_branch
      %144 = sbr.rel (0) target = $region97
    $region96: #{tpu_custom_call.1} parent=1 // pred_region
      %146 = dma.done [#allocation3], 256
    $region97: #{tpu_custom_call.1} parent=1 // pred_fallthru
      _
    // Predicated region
    $region98: #{tpu_custom_call.1} parent=1 // pred_check
      _
    $region99: #{tpu_custom_call.1} parent=1 // pred_check_branch
      %148 = sbr.rel (0) target = $region101
    $region100: #{tpu_custom_call.1} parent=1 // pred_region
      %150 = dma.done [#allocation6], 256
    $region101: #{tpu_custom_call.1} parent=1 // pred_fallthru
      _
    // Predicated region
    $region102: #{tpu_custom_call.1} parent=1 // pred_check
      _
    $region103: #{tpu_custom_call.1} parent=1 // pred_check_branch
      %152 = sbr.rel (0) target = $region105
    $region104: #{tpu_custom_call.1} parent=1 // pred_region
      %154 = dma.done [#allocation6], 128
    $region105: #{tpu_custom_call.1} parent=1 // pred_fallthru
      _
    // Predicated region
    $region106: #{tpu_custom_call.1} parent=1 // pred_check
      _
    $region107: #{tpu_custom_call.1} parent=1 // pred_check_branch
      %156 = sbr.rel (0) target = $region109
    $region108: #{tpu_custom_call.1} parent=1 // pred_region
      %158 = dma.done [#allocation9], 512
    $region109: #{tpu_custom_call.1} parent=1 // pred_fallthru
      _
    // Predicated region
    $region110: #{tpu_custom_call.1} parent=1 // pred_check
      _
    $region111: #{tpu_custom_call.1} parent=1 // pred_check_branch
      %160 = sbr.rel (0) target = $region113
    $region112: #{tpu_custom_call.1} parent=1 // pred_region
      %162 = dma.done [#allocation9], 512
    $region113: #{tpu_custom_call.1} parent=1 // pred_fallthru
      _
    // Predicated region
    $region114: #{tpu_custom_call.1} parent=1 // pred_check
      _
    $region115: #{tpu_custom_call.1} parent=1 // pred_check_branch
      %164 = sbr.rel (0) target = $region117
    $region116: #{tpu_custom_call.1} parent=1 // pred_region
      %166 = dma.done [#allocation12], 512
    $region117: #{tpu_custom_call.1} parent=1 // pred_fallthru
      _
    %v167 = vld [vmem:[#allocation2] sm:$0xff]
    %v168 = vld [vmem:[#allocation2 + $0x8] sm:$0xff]
    %v169 = vld [vmem:[#allocation5] sm:$0xff]
    %v170 = vld [vmem:[#allocation5 + $0x8] sm:$0xff]
    %v171 = vlaneseq
    %v172 = vshrl.u32 %v171, 7
    %v173 = vlaneseq
    %v174 = vand.u32 %v173, 127
    %vm175 = vcmp.ge.s32.totalorder %v172, %v174
    %v176 = vsel %vm175, 0.0, -1e+09
    %v177 = vld [vmem:[#allocation7] sm:$0xff]
    %v178 = vld [vmem:[%s3] sm:$0xff]
    %v179 = vld [vmem:[%s3 + $0x8] sm:$0xff]
    %v180 = vld [vmem:[%s3 + $0x10] sm:$0xff]
    %v181 = vld [vmem:[%s3 + $0x18] sm:$0xff]
    %v182 = vld [vmem:[%s4] sm:$0x1]
    %v184 = vperm.slane %v182, 0
    %vm186 = vcmask 261120
    %v188 = vsel %vm186, %v167, 0
    %v191 = vsel %vm186, %v168, 0
    %193 = vmatpush.msra.mxu0 0.0
    %194 = vmatpush.msra.mxu0 0.0
    %195 = vmatpush.msra.mxu0 0.0
    %196 = vmatpush.msra.mxu0 0.0
    %197 = vmatpush.msra.mxu0 0.0
    %198 = vmatpush.msra.mxu0 0.0
    %199 = vmatpush.msra.mxu0 0.0
    %200 = vmatpush.msra.mxu0 0.0
    %201 = vmatpush.msra.mxu0 0.0
    %202 = vmatpush.msra.mxu0 0.0
    %203 = vmatpush.msra.mxu0 0.0
    %204 = vmatpush.msra.mxu0 0.0
    %205 = vmatpush.msra.mxu0 %v181
    %206 = vmatpush.msra.mxu0 %v180
    %207 = vmatpush.msra.mxu0 %v179
    %208 = vmatpush.msra.mxu0 %v178
    %209 = vmatmul.f32.gmra.mxu0 %v188
    %v210 = vpop.f32.mrf.mxu0
    %v211 = vadd.f32 %v184, %v210
    %212 = vmatmul.f32.gmra.mxu0 %v191
    %v213 = vpop.f32.mrf.mxu0
    %v214 = vadd.f32 %v184, %v213
    %215 = vdwg.mxu0
    %218 = vrot.lane.b32.xlu0 %v211, 120
    %v219 = vpop.permute.xlu0 %218
    %220 = vrot.lane.b32.xlu0 %v214, 120
    %v221 = vpop.permute.xlu0 %220
    %224 = vrot.lane.b32.xlu0 %v211, 112
    %v225 = vpop.permute.xlu0 %224
    %226 = vrot.lane.b32.xlu0 %v214, 112
    %v227 = vpop.permute.xlu0 %226
    %230 = vrot.lane.b32.xlu0 %v211, 104
    %v231 = vpop.permute.xlu0 %230
    %232 = vrot.lane.b32.xlu0 %v214, 104
    %v233 = vpop.permute.xlu0 %232
    %v236 = vrot.slane %v225, 4
    %vm237 = vcmask 1047556
    %v238 = vsel %vm237, %v236, %v211
    %v239 = vrot.slane %v211, 4
    %v240 = vsel %vm237, %v225, %v239
    %v242 = vunpack.c.l.s4 1983009808
    %v243 = vunpack.c.0.s8 %v242
    %v244 = vperm.slane %v238, %v243
    %v246 = vunpack.c.l.s4 1983009808
    %v247 = vunpack.c.0.s8 %v246
    %v248 = vperm.slane %v240, %v247
    %v249 = vrot.slane %v231, 4
    %v250 = vsel %vm237, %v249, %v219
    %v251 = vrot.slane %v219, 4
    %v252 = vsel %vm237, %v231, %v251
    %v254 = vunpack.c.l.s4 1983009808
    %v255 = vunpack.c.0.s8 %v254
    %v256 = vperm.slane %v250, %v255
    %v258 = vunpack.c.l.s4 1983009808
    %v259 = vunpack.c.0.s8 %v258
    %v260 = vperm.slane %v252, %v259
    %v261 = vrot.slane %v256, 4
    %v262 = vsel %vm237, %v261, %v244
    %v263 = vrot.slane %v244, 4
    %v264 = vsel %vm237, %v256, %v263
    %v266 = vunpack.c.l.s4 1934713408
    %v267 = vunpack.c.0.s8 %v266
    %v268 = vperm.slane %v262, %v267
    %v270 = vunpack.c.l.s4 1934713408
    %v271 = vunpack.c.0.s8 %v270
    %v272 = vperm.slane %v264, %v271
    %v273 = vrot.slane %v260, 4
    %v274 = vsel %vm237, %v273, %v248
    %v275 = vrot.slane %v248, 4
    %v276 = vsel %vm237, %v260, %v275
    %v278 = vunpack.c.l.s4 1934713408
    %v279 = vunpack.c.0.s8 %v278
    %v280 = vperm.slane %v274, %v279
    %v282 = vunpack.c.l.s4 1934713408
    %v283 = vunpack.c.0.s8 %v282
    %v284 = vperm.slane %v276, %v283
    %v285 = vrot.slane %v268, 4
    %v286 = vsel %vm237, 0.0, %v285
    %v287 = vrot.slane %v272, 4
    %v288 = vsel %vm237, 0.0, %v287
    %v289 = vrot.slane %v280, 4
    %v290 = vsel %vm237, 0.0, %v289
    %v291 = vrot.slane %v284, 4
    %v292 = vsel %vm237, 0.0, %v291
    %v293 = vrot.slane %v227, 4
    %v294 = vsel %vm237, %v293, %v214
    %v295 = vrot.slane %v214, 4
    %v296 = vsel %vm237, %v227, %v295
    %v298 = vunpack.c.l.s4 1983009808
    %v299 = vunpack.c.0.s8 %v298
    %v300 = vperm.slane %v294, %v299
    %v302 = vunpack.c.l.s4 1983009808
    %v303 = vunpack.c.0.s8 %v302
    %v304 = vperm.slane %v296, %v303
    %v305 = vrot.slane %v233, 4
    %v306 = vsel %vm237, %v305, %v221
    %v307 = vrot.slane %v221, 4
    %v308 = vsel %vm237, %v233, %v307
    %v310 = vunpack.c.l.s4 1983009808
    %v311 = vunpack.c.0.s8 %v310
    %v312 = vperm.slane %v306, %v311
    %v314 = vunpack.c.l.s4 1983009808
    %v315 = vunpack.c.0.s8 %v314
    %v316 = vperm.slane %v308, %v315
    %v317 = vrot.slane %v312, 4
    %v318 = vsel %vm237, %v317, %v300
    %v319 = vrot.slane %v300, 4
    %v320 = vsel %vm237, %v312, %v319
    %v322 = vunpack.c.l.s4 1934713408
    %v323 = vunpack.c.0.s8 %v322
    %v324 = vperm.slane %v318, %v323
    %v326 = vunpack.c.l.s4 1934713408
    %v327 = vunpack.c.0.s8 %v326
    %v328 = vperm.slane %v320, %v327
    %v329 = vrot.slane %v316, 4
    %v330 = vsel %vm237, %v329, %v304
    %v331 = vrot.slane %v304, 4
    %v332 = vsel %vm237, %v316, %v331
    %v334 = vunpack.c.l.s4 1934713408
    %v335 = vunpack.c.0.s8 %v334
    %v336 = vperm.slane %v330, %v335
    %v338 = vunpack.c.l.s4 1934713408
    %v339 = vunpack.c.0.s8 %v338
    %v340 = vperm.slane %v332, %v339
    %v341 = vrot.slane %v324, 4
    %v342 = vsel %vm237, 0.0, %v341
    %v343 = vrot.slane %v328, 4
    %v344 = vsel %vm237, 0.0, %v343
    %v345 = vrot.slane %v336, 4
    %v346 = vsel %vm237, 0.0, %v345
    %v347 = vrot.slane %v340, 4
    %v348 = vsel %vm237, 0.0, %v347
    %v349 = vsel %vm237, %v287, %v268
    %v351 = vunpack.c.l.s4 1983009808
    %v352 = vunpack.c.0.s8 %v351
    %v353 = vperm.slane %v349, %v352
    %v354 = vrot.slane %v288, 4
    %v355 = vsel %vm237, %v354, %v286
    %v357 = vunpack.c.l.s4 1983009808
    %v358 = vunpack.c.0.s8 %v357
    %v359 = vperm.slane %v355, %v358
    %v360 = vsel %vm237, %v291, %v280
    %v362 = vunpack.c.l.s4 1983009808
    %v363 = vunpack.c.0.s8 %v362
    %v364 = vperm.slane %v360, %v363
    %v365 = vrot.slane %v292, 4
    %v366 = vsel %vm237, %v365, %v290
    %v368 = vunpack.c.l.s4 1983009808
    %v369 = vunpack.c.0.s8 %v368
    %v370 = vperm.slane %v366, %v369
    %v371 = vrot.slane %v359, 4
    %v372 = vsel %vm237, %v371, %v353
    %v373 = vrot.slane %v353, 4
    %v374 = vsel %vm237, %v359, %v373
    %v376 = vunpack.c.l.s4 1934713408
    %v377 = vunpack.c.0.s8 %v376
    %v378 = vperm.slane %v372, %v377
    %v380 = vunpack.c.l.s4 1934713408
    %v381 = vunpack.c.0.s8 %v380
    %v382 = vperm.slane %v374, %v381
    %v383 = vrot.slane %v370, 4
    %v384 = vsel %vm237, %v383, %v364
    %v385 = vrot.slane %v364, 4
    %v386 = vsel %vm237, %v370, %v385
    %v388 = vunpack.c.l.s4 1934713408
    %v389 = vunpack.c.0.s8 %v388
    %v390 = vperm.slane %v384, %v389
    %v392 = vunpack.c.l.s4 1934713408
    %v393 = vunpack.c.0.s8 %v392
    %v394 = vperm.slane %v386, %v393
    %v395 = vrot.slane %v390, 4
    %v396 = vsel %vm237, %v395, %v378
    %v397 = vrot.slane %v378, 4
    %v398 = vsel %vm237, %v390, %v397
    %v399 = vrot.slane %v394, 4
    %v400 = vsel %vm237, %v399, %v382
    %v401 = vrot.slane %v382, 4
    %v402 = vsel %vm237, %v394, %v401
    %v403 = vsel %vm237, %v343, %v324
    %v405 = vunpack.c.l.s4 1983009808
    %v406 = vunpack.c.0.s8 %v405
    %v407 = vperm.slane %v403, %v406
    %v408 = vrot.slane %v344, 4
    %v409 = vsel %vm237, %v408, %v342
    %v411 = vunpack.c.l.s4 1983009808
    %v412 = vunpack.c.0.s8 %v411
    %v413 = vperm.slane %v409, %v412
    %v414 = vsel %vm237, %v347, %v336
    %v416 = vunpack.c.l.s4 1983009808
    %v417 = vunpack.c.0.s8 %v416
    %v418 = vperm.slane %v414, %v417
    %v419 = vrot.slane %v348, 4
    %v420 = vsel %vm237, %v419, %v346
    %v422 = vunpack.c.l.s4 1983009808
    %v423 = vunpack.c.0.s8 %v422
    %v424 = vperm.slane %v420, %v423
    %v425 = vrot.slane %v413, 4
    %v426 = vsel %vm237, %v425, %v407
    %v427 = vrot.slane %v407, 4
    %v428 = vsel %vm237, %v413, %v427
    %v430 = vunpack.c.l.s4 1934713408
    %v431 = vunpack.c.0.s8 %v430
    %v432 = vperm.slane %v426, %v431
    %v434 = vunpack.c.l.s4 1934713408
    %v435 = vunpack.c.0.s8 %v434
    %v436 = vperm.slane %v428, %v435
    %v437 = vrot.slane %v424, 4
    %v438 = vsel %vm237, %v437, %v418
    %v439 = vrot.slane %v418, 4
    %v440 = vsel %vm237, %v424, %v439
    %v442 = vunpack.c.l.s4 1934713408
    %v443 = vunpack.c.0.s8 %v442
    %v444 = vperm.slane %v438, %v443
    %v446 = vunpack.c.l.s4 1934713408
    %v447 = vunpack.c.0.s8 %v446
    %v448 = vperm.slane %v440, %v447
    %v449 = vrot.slane %v444, 4
    %v450 = vsel %vm237, %v449, %v432
    %v451 = vrot.slane %v432, 4
    %v452 = vsel %vm237, %v444, %v451
    %v453 = vrot.slane %v448, 4
    %v454 = vsel %vm237, %v453, %v436
    %v455 = vrot.slane %v436, 4
    %v456 = vsel %vm237, %v448, %v455
    %457 = vrot.lane.b32.xlu0 %v211, 96
    %v458 = vpop.permute.xlu0 %457
    %459 = vrot.lane.b32.xlu0 %v214, 96
    %v460 = vpop.permute.xlu0 %459
    %461 = vrot.lane.b32.xlu0 %v219, 96
    %v462 = vpop.permute.xlu0 %461
    %463 = vrot.lane.b32.xlu0 %v221, 96
    %v464 = vpop.permute.xlu0 %463
    %465 = vrot.lane.b32.xlu0 %v225, 96
    %v466 = vpop.permute.xlu0 %465
    %467 = vrot.lane.b32.xlu0 %v227, 96
    %v468 = vpop.permute.xlu0 %467
    %469 = vrot.lane.b32.xlu0 %v231, 96
    %v470 = vpop.permute.xlu0 %469
    %471 = vrot.lane.b32.xlu0 %v233, 96
    %v472 = vpop.permute.xlu0 %471
    %v481 = vrot.slane %v466, 4
    %v482 = vsel %vm237, %v481, %v458
    %v483 = vrot.slane %v458, 4
    %v484 = vsel %vm237, %v466, %v483
    %v486 = vunpack.c.l.s4 1983009808
    %v487 = vunpack.c.0.s8 %v486
    %v488 = vperm.slane %v482, %v487
    %v490 = vunpack.c.l.s4 1983009808
    %v491 = vunpack.c.0.s8 %v490
    %v492 = vperm.slane %v484, %v491
    %v493 = vrot.slane %v470, 4
    %v494 = vsel %vm237, %v493, %v462
    %v495 = vrot.slane %v462, 4
    %v496 = vsel %vm237, %v470, %v495
    %v498 = vunpack.c.l.s4 1983009808
    %v499 = vunpack.c.0.s8 %v498
    %v500 = vperm.slane %v494, %v499
    %v502 = vunpack.c.l.s4 1983009808
    %v503 = vunpack.c.0.s8 %v502
    %v504 = vperm.slane %v496, %v503
    %v505 = vrot.slane %v500, 4
    %v506 = vsel %vm237, %v505, %v488
    %v507 = vrot.slane %v488, 4
    %v508 = vsel %vm237, %v500, %v507
    %v510 = vunpack.c.l.s4 1934713408
    %v511 = vunpack.c.0.s8 %v510
    %v512 = vperm.slane %v506, %v511
    %v514 = vunpack.c.l.s4 1934713408
    %v515 = vunpack.c.0.s8 %v514
    %v516 = vperm.slane %v508, %v515
    %v517 = vrot.slane %v504, 4
    %v518 = vsel %vm237, %v517, %v492
    %v519 = vrot.slane %v492, 4
    %v520 = vsel %vm237, %v504, %v519
    %v522 = vunpack.c.l.s4 1934713408
    %v523 = vunpack.c.0.s8 %v522
    %v524 = vperm.slane %v518, %v523
    %v526 = vunpack.c.l.s4 1934713408
    %v527 = vunpack.c.0.s8 %v526
    %v528 = vperm.slane %v520, %v527
    %v529 = vrot.slane %v512, 4
    %v530 = vsel %vm237, 0.0, %v529
    %v531 = vrot.slane %v516, 4
    %v532 = vsel %vm237, 0.0, %v531
    %v533 = vrot.slane %v524, 4
    %v534 = vsel %vm237, 0.0, %v533
    %v535 = vrot.slane %v528, 4
    %v536 = vsel %vm237, 0.0, %v535
    %v537 = vrot.slane %v468, 4
    %v538 = vsel %vm237, %v537, %v460
    %v539 = vrot.slane %v460, 4
    %v540 = vsel %vm237, %v468, %v539
    %v542 = vunpack.c.l.s4 1983009808
    %v543 = vunpack.c.0.s8 %v542
    %v544 = vperm.slane %v538, %v543
    %v546 = vunpack.c.l.s4 1983009808
    %v547 = vunpack.c.0.s8 %v546
    %v548 = vperm.slane %v540, %v547
    %v549 = vrot.slane %v472, 4
    %v550 = vsel %vm237, %v549, %v464
    %v551 = vrot.slane %v464, 4
    %v552 = vsel %vm237, %v472, %v551
    %v554 = vunpack.c.l.s4 1983009808
    %v555 = vunpack.c.0.s8 %v554
    %v556 = vperm.slane %v550, %v555
    %v558 = vunpack.c.l.s4 1983009808
    %v559 = vunpack.c.0.s8 %v558
    %v560 = vperm.slane %v552, %v559
    %v561 = vrot.slane %v556, 4
    %v562 = vsel %vm237, %v561, %v544
    %v563 = vrot.slane %v544, 4
    %v564 = vsel %vm237, %v556, %v563
    %v566 = vunpack.c.l.s4 1934713408
    %v567 = vunpack.c.0.s8 %v566
    %v568 = vperm.slane %v562, %v567
    %v570 = vunpack.c.l.s4 1934713408
    %v571 = vunpack.c.0.s8 %v570
    %v572 = vperm.slane %v564, %v571
    %v573 = vrot.slane %v560, 4
    %v574 = vsel %vm237, %v573, %v548
    %v575 = vrot.slane %v548, 4
    %v576 = vsel %vm237, %v560, %v575
    %v578 = vunpack.c.l.s4 1934713408
    %v579 = vunpack.c.0.s8 %v578
    %v580 = vperm.slane %v574, %v579
    %v582 = vunpack.c.l.s4 1934713408
    %v583 = vunpack.c.0.s8 %v582
    %v584 = vperm.slane %v576, %v583
    %v585 = vrot.slane %v568, 4
    %v586 = vsel %vm237, 0.0, %v585
    %v587 = vrot.slane %v572, 4
    %v588 = vsel %vm237, 0.0, %v587
    %v589 = vrot.slane %v580, 4
    %v590 = vsel %vm237, 0.0, %v589
    %v591 = vrot.slane %v584, 4
    %v592 = vsel %vm237, 0.0, %v591
    %v593 = vsel %vm237, %v531, %v512
    %v595 = vunpack.c.l.s4 1983009808
    %v596 = vunpack.c.0.s8 %v595
    %v597 = vperm.slane %v593, %v596
    %v598 = vrot.slane %v532, 4
    %v599 = vsel %vm237, %v598, %v530
    %v601 = vunpack.c.l.s4 1983009808
    %v602 = vunpack.c.0.s8 %v601
    %v603 = vperm.slane %v599, %v602
    %v604 = vsel %vm237, %v535, %v524
    %v606 = vunpack.c.l.s4 1983009808
    %v607 = vunpack.c.0.s8 %v606
    %v608 = vperm.slane %v604, %v607
    %v609 = vrot.slane %v536, 4
    %v610 = vsel %vm237, %v609, %v534
    %v612 = vunpack.c.l.s4 1983009808
    %v613 = vunpack.c.0.s8 %v612
    %v614 = vperm.slane %v610, %v613
    %v615 = vrot.slane %v603, 4
    %v616 = vsel %vm237, %v615, %v597
    %v617 = vrot.slane %v597, 4
    %v618 = vsel %vm237, %v603, %v617
    %v620 = vunpack.c.l.s4 1934713408
    %v621 = vunpack.c.0.s8 %v620
    %v622 = vperm.slane %v616, %v621
    %v624 = vunpack.c.l.s4 1934713408
    %v625 = vunpack.c.0.s8 %v624
    %v626 = vperm.slane %v618, %v625
    %v627 = vrot.slane %v614, 4
    %v628 = vsel %vm237, %v627, %v608
    %v629 = vrot.slane %v608, 4
    %v630 = vsel %vm237, %v614, %v629
    %v632 = vunpack.c.l.s4 1934713408
    %v633 = vunpack.c.0.s8 %v632
    %v634 = vperm.slane %v628, %v633
    %v636 = vunpack.c.l.s4 1934713408
    %v637 = vunpack.c.0.s8 %v636
    %v638 = vperm.slane %v630, %v637
    %v639 = vrot.slane %v634, 4
    %v640 = vsel %vm237, %v639, %v622
    %v641 = vrot.slane %v622, 4
    %v642 = vsel %vm237, %v634, %v641
    %v643 = vrot.slane %v638, 4
    %v644 = vsel %vm237, %v643, %v626
    %v645 = vrot.slane %v626, 4
    %v646 = vsel %vm237, %v638, %v645
    %v647 = vsel %vm237, %v587, %v568
    %v649 = vunpack.c.l.s4 1983009808
    %v650 = vunpack.c.0.s8 %v649
    %v651 = vperm.slane %v647, %v650
    %v652 = vrot.slane %v588, 4
    %v653 = vsel %vm237, %v652, %v586
    %v655 = vunpack.c.l.s4 1983009808
    %v656 = vunpack.c.0.s8 %v655
    %v657 = vperm.slane %v653, %v656
    %v658 = vsel %vm237, %v591, %v580
    %v660 = vunpack.c.l.s4 1983009808
    %v661 = vunpack.c.0.s8 %v660
    %v662 = vperm.slane %v658, %v661
    %v663 = vrot.slane %v592, 4
    %v664 = vsel %vm237, %v663, %v590
    %v666 = vunpack.c.l.s4 1983009808
    %v667 = vunpack.c.0.s8 %v666
    %v668 = vperm.slane %v664, %v667
    %v669 = vrot.slane %v657, 4
    %v670 = vsel %vm237, %v669, %v651
    %v671 = vrot.slane %v651, 4
    %v672 = vsel %vm237, %v657, %v671
    %v674 = vunpack.c.l.s4 1934713408
    %v675 = vunpack.c.0.s8 %v674
    %v676 = vperm.slane %v670, %v675
    %v678 = vunpack.c.l.s4 1934713408
    %v679 = vunpack.c.0.s8 %v678
    %v680 = vperm.slane %v672, %v679
    %v681 = vrot.slane %v668, 4
    %v682 = vsel %vm237, %v681, %v662
    %v683 = vrot.slane %v662, 4
    %v684 = vsel %vm237, %v668, %v683
    %v686 = vunpack.c.l.s4 1934713408
    %v687 = vunpack.c.0.s8 %v686
    %v688 = vperm.slane %v682, %v687
    %v690 = vunpack.c.l.s4 1934713408
    %v691 = vunpack.c.0.s8 %v690
    %v692 = vperm.slane %v684, %v691
    %v693 = vrot.slane %v688, 4
    %v694 = vsel %vm237, %v693, %v676
    %v695 = vrot.slane %v676, 4
    %v696 = vsel %vm237, %v688, %v695
    %v697 = vrot.slane %v692, 4
    %v698 = vsel %vm237, %v697, %v680
    %v699 = vrot.slane %v680, 4
    %v700 = vsel %vm237, %v692, %v699
    %701 = vrot.lane.b32.xlu0 %v211, 64
    %v702 = vpop.permute.xlu0 %701
    %703 = vrot.lane.b32.xlu0 %v214, 64
    %v704 = vpop.permute.xlu0 %703
    %705 = vrot.lane.b32.xlu0 %v219, 64
    %v706 = vpop.permute.xlu0 %705
    %707 = vrot.lane.b32.xlu0 %v221, 64
    %v708 = vpop.permute.xlu0 %707
    %709 = vrot.lane.b32.xlu0 %v225, 64
    %v710 = vpop.permute.xlu0 %709
    %711 = vrot.lane.b32.xlu0 %v227, 64
    %v712 = vpop.permute.xlu0 %711
    %713 = vrot.lane.b32.xlu0 %v231, 64
    %v714 = vpop.permute.xlu0 %713
    %715 = vrot.lane.b32.xlu0 %v233, 64
    %v716 = vpop.permute.xlu0 %715
    %v725 = vrot.slane %v710, 4
    %v726 = vsel %vm237, %v725, %v702
    %v727 = vrot.slane %v702, 4
    %v728 = vsel %vm237, %v710, %v727
    %v730 = vunpack.c.l.s4 1983009808
    %v731 = vunpack.c.0.s8 %v730
    %v732 = vperm.slane %v726, %v731
    %v734 = vunpack.c.l.s4 1983009808
    %v735 = vunpack.c.0.s8 %v734
    %v736 = vperm.slane %v728, %v735
    %v737 = vrot.slane %v714, 4
    %v738 = vsel %vm237, %v737, %v706
    %v739 = vrot.slane %v706, 4
    %v740 = vsel %vm237, %v714, %v739
    %v742 = vunpack.c.l.s4 1983009808
    %v743 = vunpack.c.0.s8 %v742
    %v744 = vperm.slane %v738, %v743
    %v746 = vunpack.c.l.s4 1983009808
    %v747 = vunpack.c.0.s8 %v746
    %v748 = vperm.slane %v740, %v747
    %v749 = vrot.slane %v744, 4
    %v750 = vsel %vm237, %v749, %v732
    %v751 = vrot.slane %v732, 4
    %v752 = vsel %vm237, %v744, %v751
    %v754 = vunpack.c.l.s4 1934713408
    %v755 = vunpack.c.0.s8 %v754
    %v756 = vperm.slane %v750, %v755
    %v758 = vunpack.c.l.s4 1934713408
    %v759 = vunpack.c.0.s8 %v758
    %v760 = vperm.slane %v752, %v759
    %v761 = vrot.slane %v748, 4
    %v762 = vsel %vm237, %v761, %v736
    %v763 = vrot.slane %v736, 4
    %v764 = vsel %vm237, %v748, %v763
    %v766 = vunpack.c.l.s4 1934713408
    %v767 = vunpack.c.0.s8 %v766
    %v768 = vperm.slane %v762, %v767
    %v770 = vunpack.c.l.s4 1934713408
    %v771 = vunpack.c.0.s8 %v770
    %v772 = vperm.slane %v764, %v771
    %v773 = vrot.slane %v756, 4
    %v774 = vsel %vm237, 0.0, %v773
    %v775 = vrot.slane %v760, 4
    %v776 = vsel %vm237, 0.0, %v775
    %v777 = vrot.slane %v768, 4
    %v778 = vsel %vm237, 0.0, %v777
    %v779 = vrot.slane %v772, 4
    %v780 = vsel %vm237, 0.0, %v779
    %v781 = vrot.slane %v712, 4
    %v782 = vsel %vm237, %v781, %v704
    %v783 = vrot.slane %v704, 4
    %v784 = vsel %vm237, %v712, %v783
    %v786 = vunpack.c.l.s4 1983009808
    %v787 = vunpack.c.0.s8 %v786
    %v788 = vperm.slane %v782, %v787
    %v790 = vunpack.c.l.s4 1983009808
    %v791 = vunpack.c.0.s8 %v790
    %v792 = vperm.slane %v784, %v791
    %v793 = vrot.slane %v716, 4
    %v794 = vsel %vm237, %v793, %v708
    %v795 = vrot.slane %v708, 4
    %v796 = vsel %vm237, %v716, %v795
    %v798 = vunpack.c.l.s4 1983009808
    %v799 = vunpack.c.0.s8 %v798
    %v800 = vperm.slane %v794, %v799
    %v802 = vunpack.c.l.s4 1983009808
    %v803 = vunpack.c.0.s8 %v802
    %v804 = vperm.slane %v796, %v803
    %v805 = vrot.slane %v800, 4
    %v806 = vsel %vm237, %v805, %v788
    %v807 = vrot.slane %v788, 4
    %v808 = vsel %vm237, %v800, %v807
    %v810 = vunpack.c.l.s4 1934713408
    %v811 = vunpack.c.0.s8 %v810
    %v812 = vperm.slane %v806, %v811
    %v814 = vunpack.c.l.s4 1934713408
    %v815 = vunpack.c.0.s8 %v814
    %v816 = vperm.slane %v808, %v815
    %v817 = vrot.slane %v804, 4
    %v818 = vsel %vm237, %v817, %v792
    %v819 = vrot.slane %v792, 4
    %v820 = vsel %vm237, %v804, %v819
    %v822 = vunpack.c.l.s4 1934713408
    %v823 = vunpack.c.0.s8 %v822
    %v824 = vperm.slane %v818, %v823
    %v826 = vunpack.c.l.s4 1934713408
    %v827 = vunpack.c.0.s8 %v826
    %v828 = vperm.slane %v820, %v827
    %v829 = vrot.slane %v812, 4
    %v830 = vsel %vm237, 0.0, %v829
    %v831 = vrot.slane %v816, 4
    %v832 = vsel %vm237, 0.0, %v831
    %v833 = vrot.slane %v824, 4
    %v834 = vsel %vm237, 0.0, %v833
    %v835 = vrot.slane %v828, 4
    %v836 = vsel %vm237, 0.0, %v835
    %v837 = vsel %vm237, %v775, %v756
    %v839 = vunpack.c.l.s4 1983009808
    %v840 = vunpack.c.0.s8 %v839
    %v841 = vperm.slane %v837, %v840
    %v842 = vrot.slane %v776, 4
    %v843 = vsel %vm237, %v842, %v774
    %v845 = vunpack.c.l.s4 1983009808
    %v846 = vunpack.c.0.s8 %v845
    %v847 = vperm.slane %v843, %v846
    %v848 = vsel %vm237, %v779, %v768
    %v850 = vunpack.c.l.s4 1983009808
    %v851 = vunpack.c.0.s8 %v850
    %v852 = vperm.slane %v848, %v851
    %v853 = vrot.slane %v780, 4
    %v854 = vsel %vm237, %v853, %v778
    %v856 = vunpack.c.l.s4 1983009808
    %v857 = vunpack.c.0.s8 %v856
    %v858 = vperm.slane %v854, %v857
    %v859 = vrot.slane %v847, 4
    %v860 = vsel %vm237, %v859, %v841
    %v861 = vrot.slane %v841, 4
    %v862 = vsel %vm237, %v847, %v861
    %v864 = vunpack.c.l.s4 1934713408
    %v865 = vunpack.c.0.s8 %v864
    %v866 = vperm.slane %v860, %v865
    %v868 = vunpack.c.l.s4 1934713408
    %v869 = vunpack.c.0.s8 %v868
    %v870 = vperm.slane %v862, %v869
    %v871 = vrot.slane %v858, 4
    %v872 = vsel %vm237, %v871, %v852
    %v873 = vrot.slane %v852, 4
    %v874 = vsel %vm237, %v858, %v873
    %v876 = vunpack.c.l.s4 1934713408
    %v877 = vunpack.c.0.s8 %v876
    %v878 = vperm.slane %v872, %v877
    %v880 = vunpack.c.l.s4 1934713408
    %v881 = vunpack.c.0.s8 %v880
    %v882 = vperm.slane %v874, %v881
    %v883 = vrot.slane %v878, 4
    %v884 = vsel %vm237, %v883, %v866
    %v885 = vrot.slane %v866, 4
    %v886 = vsel %vm237, %v878, %v885
    %v887 = vrot.slane %v882, 4
    %v888 = vsel %vm237, %v887, %v870
    %v889 = vrot.slane %v870, 4
    %v890 = vsel %vm237, %v882, %v889
    %v891 = vsel %vm237, %v831, %v812
    %v893 = vunpack.c.l.s4 1983009808
    %v894 = vunpack.c.0.s8 %v893
    %v895 = vperm.slane %v891, %v894
    %v896 = vrot.slane %v832, 4
    %v897 = vsel %vm237, %v896, %v830
    %v899 = vunpack.c.l.s4 1983009808
    %v900 = vunpack.c.0.s8 %v899
    %v901 = vperm.slane %v897, %v900
    %v902 = vsel %vm237, %v835, %v824
    %v904 = vunpack.c.l.s4 1983009808
    %v905 = vunpack.c.0.s8 %v904
    %v906 = vperm.slane %v902, %v905
    %v907 = vrot.slane %v836, 4
    %v908 = vsel %vm237, %v907, %v834
    %v910 = vunpack.c.l.s4 1983009808
    %v911 = vunpack.c.0.s8 %v910
    %v912 = vperm.slane %v908, %v911
    %v913 = vrot.slane %v901, 4
    %v914 = vsel %vm237, %v913, %v895
    %v915 = vrot.slane %v895, 4
    %v916 = vsel %vm237, %v901, %v915
    %v918 = vunpack.c.l.s4 1934713408
    %v919 = vunpack.c.0.s8 %v918
    %v920 = vperm.slane %v914, %v919
    %v922 = vunpack.c.l.s4 1934713408
    %v923 = vunpack.c.0.s8 %v922
    %v924 = vperm.slane %v916, %v923
    %v925 = vrot.slane %v912, 4
    %v926 = vsel %vm237, %v925, %v906
    %v927 = vrot.slane %v906, 4
    %v928 = vsel %vm237, %v912, %v927
    %v930 = vunpack.c.l.s4 1934713408
    %v931 = vunpack.c.0.s8 %v930
    %v932 = vperm.slane %v926, %v931
    %v934 = vunpack.c.l.s4 1934713408
    %v935 = vunpack.c.0.s8 %v934
    %v936 = vperm.slane %v928, %v935
    %v937 = vrot.slane %v932, 4
    %v938 = vsel %vm237, %v937, %v920
    %v939 = vrot.slane %v920, 4
    %v940 = vsel %vm237, %v932, %v939
    %v941 = vrot.slane %v936, 4
    %v942 = vsel %vm237, %v941, %v924
    %v943 = vrot.slane %v924, 4
    %v944 = vsel %vm237, %v936, %v943
    %vm945 = vcmask 64512
    %v947 = vsel %vm945, %v396, 0
    %v950 = vsel %vm945, %v640, 0
    %952 = vmatpush.xpose.msra.mxu0 0.0
    %953 = vmatpush.xpose.msra.mxu0 0.0
    %954 = vmatpush.xpose.msra.mxu0 0.0
    %955 = vmatpush.xpose.msra.mxu0 0.0
    %956 = vmatpush.xpose.msra.mxu0 0.0
    %957 = vmatpush.xpose.msra.mxu0 0.0
    %958 = vmatpush.xpose.msra.mxu0 0.0
    %959 = vmatpush.xpose.msra.mxu0 0.0
    %960 = vmatpush.xpose.msra.mxu0 0.0
    %961 = vmatpush.xpose.msra.mxu0 0.0
    %962 = vmatpush.xpose.msra.mxu0 0.0
    %963 = vmatpush.xpose.msra.mxu0 0.0
    %964 = vmatpush.xpose.msra.mxu0 0.0
    %965 = vmatpush.xpose.msra.mxu0 0.0
    %966 = vmatpush.xpose.msra.mxu0 0.0
    %967 = vmatpush.xpose.msra.mxu0 %v950
    %968 = vmatmul.f32.gmra.mxu0 %v947
    %v969 = vpop.f32.mrf.mxu0
    %v970 = vadd.f32 0.0, %v969
    %971 = vdwg.mxu0
    %v973 = vsel %vm945, %v450, 0
    %v976 = vsel %vm945, %v694, 0
    %978 = vmatpush.xpose.msra.mxu0 0.0
    %979 = vmatpush.xpose.msra.mxu0 0.0
    %980 = vmatpush.xpose.msra.mxu0 0.0
    %981 = vmatpush.xpose.msra.mxu0 0.0
    %982 = vmatpush.xpose.msra.mxu0 0.0
    %983 = vmatpush.xpose.msra.mxu0 0.0
    %984 = vmatpush.xpose.msra.mxu0 0.0
    %985 = vmatpush.xpose.msra.mxu0 0.0
    %986 = vmatpush.xpose.msra.mxu0 0.0
    %987 = vmatpush.xpose.msra.mxu0 0.0
    %988 = vmatpush.xpose.msra.mxu0 0.0
    %989 = vmatpush.xpose.msra.mxu0 0.0
    %990 = vmatpush.xpose.msra.mxu0 0.0
    %991 = vmatpush.xpose.msra.mxu0 0.0
    %992 = vmatpush.xpose.msra.mxu0 0.0
    %993 = vmatpush.xpose.msra.mxu0 %v976
    %994 = vmatmul.f32.gmra.mxu0 %v973
    %v995 = vpop.f32.mrf.mxu0
    %v996 = vadd.f32 0.0, %v995
    %997 = vdwg.mxu0
    %v999 = vsel %vm945, %v398, 0
    %v1002 = vsel %vm945, %v642, 0
    %1004 = vmatpush.xpose.msra.mxu0 0.0
    %1005 = vmatpush.xpose.msra.mxu0 0.0
    %1006 = vmatpush.xpose.msra.mxu0 0.0
    %1007 = vmatpush.xpose.msra.mxu0 0.0
    %1008 = vmatpush.xpose.msra.mxu0 0.0
    %1009 = vmatpush.xpose.msra.mxu0 0.0
    %1010 = vmatpush.xpose.msra.mxu0 0.0
    %1011 = vmatpush.xpose.msra.mxu0 0.0
    %1012 = vmatpush.xpose.msra.mxu0 0.0
    %1013 = vmatpush.xpose.msra.mxu0 0.0
    %1014 = vmatpush.xpose.msra.mxu0 0.0
    %1015 = vmatpush.xpose.msra.mxu0 0.0
    %1016 = vmatpush.xpose.msra.mxu0 0.0
    %1017 = vmatpush.xpose.msra.mxu0 0.0
    %1018 = vmatpush.xpose.msra.mxu0 0.0
    %1019 = vmatpush.xpose.msra.mxu0 %v1002
    %1020 = vmatmul.f32.gmra.mxu0 %v999
    %v1021 = vpop.f32.mrf.mxu0
    %v1022 = vadd.f32 0.0, %v1021
    %1023 = vdwg.mxu0
    %v1025 = vsel %vm945, %v452, 0
    %v1028 = vsel %vm945, %v696, 0
    %1030 = vmatpush.xpose.msra.mxu0 0.0
    %1031 = vmatpush.xpose.msra.mxu0 0.0
    %1032 = vmatpush.xpose.msra.mxu0 0.0
    %1033 = vmatpush.xpose.msra.mxu0 0.0
    %1034 = vmatpush.xpose.msra.mxu0 0.0
    %1035 = vmatpush.xpose.msra.mxu0 0.0
    %1036 = vmatpush.xpose.msra.mxu0 0.0
    %1037 = vmatpush.xpose.msra.mxu0 0.0
    %1038 = vmatpush.xpose.msra.mxu0 0.0
    %1039 = vmatpush.xpose.msra.mxu0 0.0
    %1040 = vmatpush.xpose.msra.mxu0 0.0
    %1041 = vmatpush.xpose.msra.mxu0 0.0
    %1042 = vmatpush.xpose.msra.mxu0 0.0
    %1043 = vmatpush.xpose.msra.mxu0 0.0
    %1044 = vmatpush.xpose.msra.mxu0 0.0
    %1045 = vmatpush.xpose.msra.mxu0 %v1028
    %1046 = vmatmul.f32.gmra.mxu0 %v1025
    %v1047 = vpop.f32.mrf.mxu0
    %v1048 = vadd.f32 0.0, %v1047
    %1049 = vdwg.mxu0
    %v1051 = vsel %vm945, %v400, 0
    %v1054 = vsel %vm945, %v644, 0
    %1056 = vmatpush.xpose.msra.mxu0 0.0
    %1057 = vmatpush.xpose.msra.mxu0 0.0
    %1058 = vmatpush.xpose.msra.mxu0 0.0
    %1059 = vmatpush.xpose.msra.mxu0 0.0
    %1060 = vmatpush.xpose.msra.mxu0 0.0
    %1061 = vmatpush.xpose.msra.mxu0 0.0
    %1062 = vmatpush.xpose.msra.mxu0 0.0
    %1063 = vmatpush.xpose.msra.mxu0 0.0
    %1064 = vmatpush.xpose.msra.mxu0 0.0
    %1065 = vmatpush.xpose.msra.mxu0 0.0
    %1066 = vmatpush.xpose.msra.mxu0 0.0
    %1067 = vmatpush.xpose.msra.mxu0 0.0
    %1068 = vmatpush.xpose.msra.mxu0 0.0
    %1069 = vmatpush.xpose.msra.mxu0 0.0
    %1070 = vmatpush.xpose.msra.mxu0 0.0
    %1071 = vmatpush.xpose.msra.mxu0 %v1054
    %1072 = vmatmul.f32.gmra.mxu0 %v1051
    %v1073 = vpop.f32.mrf.mxu0
    %v1074 = vadd.f32 0.0, %v1073
    %1075 = vdwg.mxu0
    %v1077 = vsel %vm945, %v454, 0
    %v1080 = vsel %vm945, %v698, 0
    %1082 = vmatpush.xpose.msra.mxu0 0.0
    %1083 = vmatpush.xpose.msra.mxu0 0.0
    %1084 = vmatpush.xpose.msra.mxu0 0.0
    %1085 = vmatpush.xpose.msra.mxu0 0.0
    %1086 = vmatpush.xpose.msra.mxu0 0.0
    %1087 = vmatpush.xpose.msra.mxu0 0.0
    %1088 = vmatpush.xpose.msra.mxu0 0.0
    %1089 = vmatpush.xpose.msra.mxu0 0.0
    %1090 = vmatpush.xpose.msra.mxu0 0.0
    %1091 = vmatpush.xpose.msra.mxu0 0.0
    %1092 = vmatpush.xpose.msra.mxu0 0.0
    %1093 = vmatpush.xpose.msra.mxu0 0.0
    %1094 = vmatpush.xpose.msra.mxu0 0.0
    %1095 = vmatpush.xpose.msra.mxu0 0.0
    %1096 = vmatpush.xpose.msra.mxu0 0.0
    %1097 = vmatpush.xpose.msra.mxu0 %v1080
    %1098 = vmatmul.f32.gmra.mxu0 %v1077
    %v1099 = vpop.f32.mrf.mxu0
    %v1100 = vadd.f32 0.0, %v1099
    %1101 = vdwg.mxu0
    %v1103 = vsel %vm945, %v402, 0
    %v1106 = vsel %vm945, %v646, 0
    %1108 = vmatpush.xpose.msra.mxu0 0.0
    %1109 = vmatpush.xpose.msra.mxu0 0.0
    %1110 = vmatpush.xpose.msra.mxu0 0.0
    %1111 = vmatpush.xpose.msra.mxu0 0.0
    %1112 = vmatpush.xpose.msra.mxu0 0.0
    %1113 = vmatpush.xpose.msra.mxu0 0.0
    %1114 = vmatpush.xpose.msra.mxu0 0.0
    %1115 = vmatpush.xpose.msra.mxu0 0.0
    %1116 = vmatpush.xpose.msra.mxu0 0.0
    %1117 = vmatpush.xpose.msra.mxu0 0.0
    %1118 = vmatpush.xpose.msra.mxu0 0.0
    %1119 = vmatpush.xpose.msra.mxu0 0.0
    %1120 = vmatpush.xpose.msra.mxu0 0.0
    %1121 = vmatpush.xpose.msra.mxu0 0.0
    %1122 = vmatpush.xpose.msra.mxu0 0.0
    %1123 = vmatpush.xpose.msra.mxu0 %v1106
    %1124 = vmatmul.f32.gmra.mxu0 %v1103
    %v1125 = vpop.f32.mrf.mxu0
    %v1126 = vadd.f32 0.0, %v1125
    %1127 = vdwg.mxu0
    %v1129 = vsel %vm945, %v456, 0
    %v1132 = vsel %vm945, %v700, 0
    %1134 = vmatpush.xpose.msra.mxu0 0.0
    %1135 = vmatpush.xpose.msra.mxu0 0.0
    %1136 = vmatpush.xpose.msra.mxu0 0.0
    %1137 = vmatpush.xpose.msra.mxu0 0.0
    %1138 = vmatpush.xpose.msra.mxu0 0.0
    %1139 = vmatpush.xpose.msra.mxu0 0.0
    %1140 = vmatpush.xpose.msra.mxu0 0.0
    %1141 = vmatpush.xpose.msra.mxu0 0.0
    %1142 = vmatpush.xpose.msra.mxu0 0.0
    %1143 = vmatpush.xpose.msra.mxu0 0.0
    %1144 = vmatpush.xpose.msra.mxu0 0.0
    %1145 = vmatpush.xpose.msra.mxu0 0.0
    %1146 = vmatpush.xpose.msra.mxu0 0.0
    %1147 = vmatpush.xpose.msra.mxu0 0.0
    %1148 = vmatpush.xpose.msra.mxu0 0.0
    %1149 = vmatpush.xpose.msra.mxu0 %v1132
    %1150 = vmatmul.f32.gmra.mxu0 %v1129
    %v1151 = vpop.f32.mrf.mxu0
    %v1152 = vadd.f32 0.0, %v1151
    %1153 = vdwg.mxu0
    %v1154 = vadd.f32 %v970, %v176
    %v1155 = vadd.f32 %v996, %v176
    %v1156 = vadd.f32 %v1022, %v176
    %v1157 = vadd.f32 %v1048, %v176
    %v1158 = vadd.f32 %v1074, %v176
    %v1159 = vadd.f32 %v1100, %v176
    %v1160 = vadd.f32 %v1126, %v176
    %v1161 = vadd.f32 %v1152, %v176
    %v1162 = vsel %vm945, %v1154, -inf
    %1163 = vmax.xlane.f32.xlu0 %v1162
    %v1164 = vpop.xlane.xlu0 %1163
    %v1165 = vsel %vm945, %v1155, -inf
    %1166 = vmax.xlane.f32.xlu0 %v1165
    %v1167 = vpop.xlane.xlu0 %1166
    %v1168 = vsel %vm945, %v1156, -inf
    %1169 = vmax.xlane.f32.xlu0 %v1168
    %v1170 = vpop.xlane.xlu0 %1169
    %v1171 = vsel %vm945, %v1157, -inf
    %1172 = vmax.xlane.f32.xlu0 %v1171
    %v1173 = vpop.xlane.xlu0 %1172
    %v1174 = vsel %vm945, %v1158, -inf
    %1175 = vmax.xlane.f32.xlu0 %v1174
    %v1176 = vpop.xlane.xlu0 %1175
    %v1177 = vsel %vm945, %v1159, -inf
    %1178 = vmax.xlane.f32.xlu0 %v1177
    %v1179 = vpop.xlane.xlu0 %1178
    %v1180 = vsel %vm945, %v1160, -inf
    %1181 = vmax.xlane.f32.xlu0 %v1180
    %v1182 = vpop.xlane.xlu0 %1181
    %v1183 = vsel %vm945, %v1161, -inf
    %1184 = vmax.xlane.f32.xlu0 %v1183
    %v1185 = vpop.xlane.xlu0 %1184
    %v1186 = vsub.f32 %v1154, %v1164
    %v1187 = vsub.f32 %v1155, %v1167
    %v1188 = vsub.f32 %v1156, %v1170
    %v1189 = vsub.f32 %v1157, %v1173
    %v1190 = vsub.f32 %v1158, %v1176
    %v1191 = vsub.f32 %v1159, %v1179
    %v1192 = vsub.f32 %v1160, %v1182
    %v1193 = vsub.f32 %v1161, %v1185
    %v1194 = vmul.f32 %v1186, 1.442695
    %v1195 = vpow.pop %v1194
    %v1196 = vmul.f32 %v1187, 1.442695
    %v1197 = vpow.pop %v1196
    %v1198 = vmul.f32 %v1188, 1.442695
    %v1199 = vpow.pop %v1198
    %v1200 = vmul.f32 %v1189, 1.442695
    %v1201 = vpow.pop %v1200
    %v1202 = vmul.f32 %v1190, 1.442695
    %v1203 = vpow.pop %v1202
    %v1204 = vmul.f32 %v1191, 1.442695
    %v1205 = vpow.pop %v1204
    %v1206 = vmul.f32 %v1192, 1.442695
    %v1207 = vpow.pop %v1206
    %v1208 = vmul.f32 %v1193, 1.442695
    %v1209 = vpow.pop %v1208
    %v1210 = vsel %vm945, %v1195, 0.0
    %1211 = vadd.xlane.f32.xlu0 %v1210
    %v1212 = vpop.xlane.xlu0 %1211
    %v1213 = vsel %vm945, %v1197, 0.0
    %1214 = vadd.xlane.f32.xlu0 %v1213
    %v1215 = vpop.xlane.xlu0 %1214
    %v1216 = vsel %vm945, %v1199, 0.0
    %1217 = vadd.xlane.f32.xlu0 %v1216
    %v1218 = vpop.xlane.xlu0 %1217
    %v1219 = vsel %vm945, %v1201, 0.0
    %1220 = vadd.xlane.f32.xlu0 %v1219
    %v1221 = vpop.xlane.xlu0 %1220
    %v1222 = vsel %vm945, %v1203, 0.0
    %1223 = vadd.xlane.f32.xlu0 %v1222
    %v1224 = vpop.xlane.xlu0 %1223
    %v1225 = vsel %vm945, %v1205, 0.0
    %1226 = vadd.xlane.f32.xlu0 %v1225
    %v1227 = vpop.xlane.xlu0 %1226
    %v1228 = vsel %vm945, %v1207, 0.0
    %1229 = vadd.xlane.f32.xlu0 %v1228
    %v1230 = vpop.xlane.xlu0 %1229
    %v1231 = vsel %vm945, %v1209, 0.0
    %1232 = vadd.xlane.f32.xlu0 %v1231
    %v1233 = vpop.xlane.xlu0 %1232
    %v1234 = vrcp.pop %v1212
    %v1235 = vmul.f32 %v1212, %v1234
    %v1236 = vsub.f32 1.0, %v1235
    %v1237 = vmul.f32 %v1234, %v1236
    %v1238 = vadd.f32 %v1234, %v1237
    %vm1239 = vweird.f32 %v1212
    %vm1240 = vweird.f32 %v1234
    %vm1241 = vmor %vm1239, %vm1240
    %v1242 = vsel %vm1241, %v1234, %v1238
    %v1243 = vand.u32 2147483647, %v1212
    %vm1244 = vcmp.eq.f32.partialorder %v1243, 8.507059e+37
    %v1245 = vand.u32 %v1212, 2147483648
    %v1246 = vor.u32 1.1754944e-38, %v1245
    %v1247 = vsel %vm1244, %v1246, %v1242
    %v1248 = vrcp.pop %v1215
    %v1249 = vmul.f32 %v1215, %v1248
    %v1250 = vsub.f32 1.0, %v1249
    %v1251 = vmul.f32 %v1248, %v1250
    %v1252 = vadd.f32 %v1248, %v1251
    %vm1253 = vweird.f32 %v1215
    %vm1254 = vweird.f32 %v1248
    %vm1255 = vmor %vm1253, %vm1254
    %v1256 = vsel %vm1255, %v1248, %v1252
    %v1257 = vand.u32 2147483647, %v1215
    %vm1258 = vcmp.eq.f32.partialorder %v1257, 8.507059e+37
    %v1259 = vand.u32 %v1215, 2147483648
    %v1260 = vor.u32 1.1754944e-38, %v1259
    %v1261 = vsel %vm1258, %v1260, %v1256
    %v1262 = vrcp.pop %v1218
    %v1263 = vmul.f32 %v1218, %v1262
    %v1264 = vsub.f32 1.0, %v1263
    %v1265 = vmul.f32 %v1262, %v1264
    %v1266 = vadd.f32 %v1262, %v1265
    %vm1267 = vweird.f32 %v1218
    %vm1268 = vweird.f32 %v1262
    %vm1269 = vmor %vm1267, %vm1268
    %v1270 = vsel %vm1269, %v1262, %v1266
    %v1271 = vand.u32 2147483647, %v1218
    %vm1272 = vcmp.eq.f32.partialorder %v1271, 8.507059e+37
    %v1273 = vand.u32 %v1218, 2147483648
    %v1274 = vor.u32 1.1754944e-38, %v1273
    %v1275 = vsel %vm1272, %v1274, %v1270
    %v1276 = vrcp.pop %v1221
    %v1277 = vmul.f32 %v1221, %v1276
    %v1278 = vsub.f32 1.0, %v1277
    %v1279 = vmul.f32 %v1276, %v1278
    %v1280 = vadd.f32 %v1276, %v1279
    %vm1281 = vweird.f32 %v1221
    %vm1282 = vweird.f32 %v1276
    %vm1283 = vmor %vm1281, %vm1282
    %v1284 = vsel %vm1283, %v1276, %v1280
    %v1285 = vand.u32 2147483647, %v1221
    %vm1286 = vcmp.eq.f32.partialorder %v1285, 8.507059e+37
    %v1287 = vand.u32 %v1221, 2147483648
    %v1288 = vor.u32 1.1754944e-38, %v1287
    %v1289 = vsel %vm1286, %v1288, %v1284
    %v1290 = vrcp.pop %v1224
    %v1291 = vmul.f32 %v1224, %v1290
    %v1292 = vsub.f32 1.0, %v1291
    %v1293 = vmul.f32 %v1290, %v1292
    %v1294 = vadd.f32 %v1290, %v1293
    %vm1295 = vweird.f32 %v1224
    %vm1296 = vweird.f32 %v1290
    %vm1297 = vmor %vm1295, %vm1296
    %v1298 = vsel %vm1297, %v1290, %v1294
    %v1299 = vand.u32 2147483647, %v1224
    %vm1300 = vcmp.eq.f32.partialorder %v1299, 8.507059e+37
    %v1301 = vand.u32 %v1224, 2147483648
    %v1302 = vor.u32 1.1754944e-38, %v1301
    %v1303 = vsel %vm1300, %v1302, %v1298
    %v1304 = vrcp.pop %v1227
    %v1305 = vmul.f32 %v1227, %v1304
    %v1306 = vsub.f32 1.0, %v1305
    %v1307 = vmul.f32 %v1304, %v1306
    %v1308 = vadd.f32 %v1304, %v1307
    %vm1309 = vweird.f32 %v1227
    %vm1310 = vweird.f32 %v1304
    %vm1311 = vmor %vm1309, %vm1310
    %v1312 = vsel %vm1311, %v1304, %v1308
    %v1313 = vand.u32 2147483647, %v1227
    %vm1314 = vcmp.eq.f32.partialorder %v1313, 8.507059e+37
    %v1315 = vand.u32 %v1227, 2147483648
    %v1316 = vor.u32 1.1754944e-38, %v1315
    %v1317 = vsel %vm1314, %v1316, %v1312
    %v1318 = vrcp.pop %v1230
    %v1319 = vmul.f32 %v1230, %v1318
    %v1320 = vsub.f32 1.0, %v1319
    %v1321 = vmul.f32 %v1318, %v1320
    %v1322 = vadd.f32 %v1318, %v1321
    %vm1323 = vweird.f32 %v1230
    %vm1324 = vweird.f32 %v1318
    %vm1325 = vmor %vm1323, %vm1324
    %v1326 = vsel %vm1325, %v1318, %v1322
    %v1327 = vand.u32 2147483647, %v1230
    %vm1328 = vcmp.eq.f32.partialorder %v1327, 8.507059e+37
    %v1329 = vand.u32 %v1230, 2147483648
    %v1330 = vor.u32 1.1754944e-38, %v1329
    %v1331 = vsel %vm1328, %v1330, %v1326
    %v1332 = vrcp.pop %v1233
    %v1333 = vmul.f32 %v1233, %v1332
    %v1334 = vsub.f32 1.0, %v1333
    %v1335 = vmul.f32 %v1332, %v1334
    %v1336 = vadd.f32 %v1332, %v1335
    %vm1337 = vweird.f32 %v1233
    %vm1338 = vweird.f32 %v1332
    %vm1339 = vmor %vm1337, %vm1338
    %v1340 = vsel %vm1339, %v1332, %v1336
    %v1341 = vand.u32 2147483647, %v1233
    %vm1342 = vcmp.eq.f32.partialorder %v1341, 8.507059e+37
    %v1343 = vand.u32 %v1233, 2147483648
    %v1344 = vor.u32 1.1754944e-38, %v1343
    %v1345 = vsel %vm1342, %v1344, %v1340
    %v1346 = vmul.f32 %v1195, %v1247
    %v1347 = vmul.f32 %v1197, %v1261
    %v1348 = vmul.f32 %v1199, %v1275
    %v1349 = vmul.f32 %v1201, %v1289
    %v1350 = vmul.f32 %v1203, %v1303
    %v1351 = vmul.f32 %v1205, %v1317
    %v1352 = vmul.f32 %v1207, %v1331
    %v1353 = vmul.f32 %v1209, %v1345
    %v1355 = vsel %vm945, %v1346, 0
    %1357 = vmatpush.msra.mxu0 0.0
    %1358 = vmatpush.msra.mxu0 0.0
    %1359 = vmatpush.msra.mxu0 0.0
    %1360 = vmatpush.msra.mxu0 0.0
    %1361 = vmatpush.msra.mxu0 0.0
    %1362 = vmatpush.msra.mxu0 0.0
    %1363 = vmatpush.msra.mxu0 0.0
    %1364 = vmatpush.msra.mxu0 0.0
    %1365 = vmatpush.msra.mxu0 0.0
    %1366 = vmatpush.msra.mxu0 0.0
    %1367 = vmatpush.msra.mxu0 0.0
    %1368 = vmatpush.msra.mxu0 0.0
    %1369 = vmatpush.msra.mxu0 0.0
    %1370 = vmatpush.msra.mxu0 0.0
    %1371 = vmatpush.msra.mxu0 0.0
    %1372 = vmatpush.msra.mxu0 %v884
    %1373 = vmatmul.f32.gmra.mxu0 %v1355
    %v1374 = vpop.f32.mrf.mxu0
    %v1375 = vadd.f32 0.0, %v1374
    %1376 = vdwg.mxu0
    %v1378 = vsel %vm945, %v1347, 0
    %1380 = vmatpush.msra.mxu0 0.0
    %1381 = vmatpush.msra.mxu0 0.0
    %1382 = vmatpush.msra.mxu0 0.0
    %1383 = vmatpush.msra.mxu0 0.0
    %1384 = vmatpush.msra.mxu0 0.0
    %1385 = vmatpush.msra.mxu0 0.0
    %1386 = vmatpush.msra.mxu0 0.0
    %1387 = vmatpush.msra.mxu0 0.0
    %1388 = vmatpush.msra.mxu0 0.0
    %1389 = vmatpush.msra.mxu0 0.0
    %1390 = vmatpush.msra.mxu0 0.0
    %1391 = vmatpush.msra.mxu0 0.0
    %1392 = vmatpush.msra.mxu0 0.0
    %1393 = vmatpush.msra.mxu0 0.0
    %1394 = vmatpush.msra.mxu0 0.0
    %1395 = vmatpush.msra.mxu0 %v938
    %1396 = vmatmul.f32.gmra.mxu0 %v1378
    %v1397 = vpop.f32.mrf.mxu0
    %v1398 = vadd.f32 0.0, %v1397
    %1399 = vdwg.mxu0
    %v1401 = vsel %vm945, %v1348, 0
    %1403 = vmatpush.msra.mxu0 0.0
    %1404 = vmatpush.msra.mxu0 0.0
    %1405 = vmatpush.msra.mxu0 0.0
    %1406 = vmatpush.msra.mxu0 0.0
    %1407 = vmatpush.msra.mxu0 0.0
    %1408 = vmatpush.msra.mxu0 0.0
    %1409 = vmatpush.msra.mxu0 0.0
    %1410 = vmatpush.msra.mxu0 0.0
    %1411 = vmatpush.msra.mxu0 0.0
    %1412 = vmatpush.msra.mxu0 0.0
    %1413 = vmatpush.msra.mxu0 0.0
    %1414 = vmatpush.msra.mxu0 0.0
    %1415 = vmatpush.msra.mxu0 0.0
    %1416 = vmatpush.msra.mxu0 0.0
    %1417 = vmatpush.msra.mxu0 0.0
    %1418 = vmatpush.msra.mxu0 %v886
    %1419 = vmatmul.f32.gmra.mxu0 %v1401
    %v1420 = vpop.f32.mrf.mxu0
    %v1421 = vadd.f32 0.0, %v1420
    %1422 = vdwg.mxu0
    %v1424 = vsel %vm945, %v1349, 0
    %1426 = vmatpush.msra.mxu0 0.0
    %1427 = vmatpush.msra.mxu0 0.0
    %1428 = vmatpush.msra.mxu0 0.0
    %1429 = vmatpush.msra.mxu0 0.0
    %1430 = vmatpush.msra.mxu0 0.0
    %1431 = vmatpush.msra.mxu0 0.0
    %1432 = vmatpush.msra.mxu0 0.0
    %1433 = vmatpush.msra.mxu0 0.0
    %1434 = vmatpush.msra.mxu0 0.0
    %1435 = vmatpush.msra.mxu0 0.0
    %1436 = vmatpush.msra.mxu0 0.0
    %1437 = vmatpush.msra.mxu0 0.0
    %1438 = vmatpush.msra.mxu0 0.0
    %1439 = vmatpush.msra.mxu0 0.0
    %1440 = vmatpush.msra.mxu0 0.0
    %1441 = vmatpush.msra.mxu0 %v940
    %1442 = vmatmul.f32.gmra.mxu0 %v1424
    %v1443 = vpop.f32.mrf.mxu0
    %v1444 = vadd.f32 0.0, %v1443
    %1445 = vdwg.mxu0
    %v1447 = vsel %vm945, %v1350, 0
    %1449 = vmatpush.msra.mxu0 0.0
    %1450 = vmatpush.msra.mxu0 0.0
    %1451 = vmatpush.msra.mxu0 0.0
    %1452 = vmatpush.msra.mxu0 0.0
    %1453 = vmatpush.msra.mxu0 0.0
    %1454 = vmatpush.msra.mxu0 0.0
    %1455 = vmatpush.msra.mxu0 0.0
    %1456 = vmatpush.msra.mxu0 0.0
    %1457 = vmatpush.msra.mxu0 0.0
    %1458 = vmatpush.msra.mxu0 0.0
    %1459 = vmatpush.msra.mxu0 0.0
    %1460 = vmatpush.msra.mxu0 0.0
    %1461 = vmatpush.msra.mxu0 0.0
    %1462 = vmatpush.msra.mxu0 0.0
    %1463 = vmatpush.msra.mxu0 0.0
    %1464 = vmatpush.msra.mxu0 %v888
    %1465 = vmatmul.f32.gmra.mxu0 %v1447
    %v1466 = vpop.f32.mrf.mxu0
    %v1467 = vadd.f32 0.0, %v1466
    %1468 = vdwg.mxu0
    %v1470 = vsel %vm945, %v1351, 0
    %1472 = vmatpush.msra.mxu0 0.0
    %1473 = vmatpush.msra.mxu0 0.0
    %1474 = vmatpush.msra.mxu0 0.0
    %1475 = vmatpush.msra.mxu0 0.0
    %1476 = vmatpush.msra.mxu0 0.0
    %1477 = vmatpush.msra.mxu0 0.0
    %1478 = vmatpush.msra.mxu0 0.0
    %1479 = vmatpush.msra.mxu0 0.0
    %1480 = vmatpush.msra.mxu0 0.0
    %1481 = vmatpush.msra.mxu0 0.0
    %1482 = vmatpush.msra.mxu0 0.0
    %1483 = vmatpush.msra.mxu0 0.0
    %1484 = vmatpush.msra.mxu0 0.0
    %1485 = vmatpush.msra.mxu0 0.0
    %1486 = vmatpush.msra.mxu0 0.0
    %1487 = vmatpush.msra.mxu0 %v942
    %1488 = vmatmul.f32.gmra.mxu0 %v1470
    %v1489 = vpop.f32.mrf.mxu0
    %v1490 = vadd.f32 0.0, %v1489
    %1491 = vdwg.mxu0
    %v1493 = vsel %vm945, %v1352, 0
    %1495 = vmatpush.msra.mxu0 0.0
    %1496 = vmatpush.msra.mxu0 0.0
    %1497 = vmatpush.msra.mxu0 0.0
    %1498 = vmatpush.msra.mxu0 0.0
    %1499 = vmatpush.msra.mxu0 0.0
    %1500 = vmatpush.msra.mxu0 0.0
    %1501 = vmatpush.msra.mxu0 0.0
    %1502 = vmatpush.msra.mxu0 0.0
    %1503 = vmatpush.msra.mxu0 0.0
    %1504 = vmatpush.msra.mxu0 0.0
    %1505 = vmatpush.msra.mxu0 0.0
    %1506 = vmatpush.msra.mxu0 0.0
    %1507 = vmatpush.msra.mxu0 0.0
    %1508 = vmatpush.msra.mxu0 0.0
    %1509 = vmatpush.msra.mxu0 0.0
    %1510 = vmatpush.msra.mxu0 %v890
    %1511 = vmatmul.f32.gmra.mxu0 %v1493
    %v1512 = vpop.f32.mrf.mxu0
    %v1513 = vadd.f32 0.0, %v1512
    %1514 = vdwg.mxu0
    %v1516 = vsel %vm945, %v1353, 0
    %1518 = vmatpush.msra.mxu0 0.0
    %1519 = vmatpush.msra.mxu0 0.0
    %1520 = vmatpush.msra.mxu0 0.0
    %1521 = vmatpush.msra.mxu0 0.0
    %1522 = vmatpush.msra.mxu0 0.0
    %1523 = vmatpush.msra.mxu0 0.0
    %1524 = vmatpush.msra.mxu0 0.0
    %1525 = vmatpush.msra.mxu0 0.0
    %1526 = vmatpush.msra.mxu0 0.0
    %1527 = vmatpush.msra.mxu0 0.0
    %1528 = vmatpush.msra.mxu0 0.0
    %1529 = vmatpush.msra.mxu0 0.0
    %1530 = vmatpush.msra.mxu0 0.0
    %1531 = vmatpush.msra.mxu0 0.0
    %1532 = vmatpush.msra.mxu0 0.0
    %1533 = vmatpush.msra.mxu0 %v944
    %1534 = vmatmul.f32.gmra.mxu0 %v1516
    %v1535 = vpop.f32.mrf.mxu0
    %v1536 = vadd.f32 0.0, %v1535
    %1537 = vdwg.mxu0
    %v1538 = vrot.slane %v1467, 4
    %v1539 = vsel %vm237, %v1538, %v1375
    %v1540 = vrot.slane %v1375, 4
    %v1541 = vsel %vm237, %v1467, %v1540
    %v1543 = vunpack.c.l.s4 1983009808
    %v1544 = vunpack.c.0.s8 %v1543
    %v1545 = vperm.slane %v1539, %v1544
    %v1547 = vunpack.c.l.s4 1983009808
    %v1548 = vunpack.c.0.s8 %v1547
    %v1549 = vperm.slane %v1541, %v1548
    %v1550 = vrot.slane %v1513, 4
    %v1551 = vsel %vm237, %v1550, %v1421
    %v1552 = vrot.slane %v1421, 4
    %v1553 = vsel %vm237, %v1513, %v1552
    %v1555 = vunpack.c.l.s4 1983009808
    %v1556 = vunpack.c.0.s8 %v1555
    %v1557 = vperm.slane %v1551, %v1556
    %v1559 = vunpack.c.l.s4 1983009808
    %v1560 = vunpack.c.0.s8 %v1559
    %v1561 = vperm.slane %v1553, %v1560
    %v1562 = vrot.slane %v1557, 4
    %v1563 = vsel %vm237, %v1562, %v1545
    %v1564 = vrot.slane %v1545, 4
    %v1565 = vsel %vm237, %v1557, %v1564
    %v1567 = vunpack.c.l.s4 1934713408
    %v1568 = vunpack.c.0.s8 %v1567
    %v1569 = vperm.slane %v1563, %v1568
    %v1571 = vunpack.c.l.s4 1934713408
    %v1572 = vunpack.c.0.s8 %v1571
    %v1573 = vperm.slane %v1565, %v1572
    %v1574 = vrot.slane %v1561, 4
    %v1575 = vsel %vm237, %v1574, %v1549
    %v1576 = vrot.slane %v1549, 4
    %v1577 = vsel %vm237, %v1561, %v1576
    %v1579 = vunpack.c.l.s4 1934713408
    %v1580 = vunpack.c.0.s8 %v1579
    %v1581 = vperm.slane %v1575, %v1580
    %v1583 = vunpack.c.l.s4 1934713408
    %v1584 = vunpack.c.0.s8 %v1583
    %v1585 = vperm.slane %v1577, %v1584
    %v1586 = vrot.slane %v1569, 4
    %v1587 = vsel %vm237, 0.0, %v1586
    %v1588 = vrot.slane %v1573, 4
    %v1589 = vsel %vm237, 0.0, %v1588
    %v1590 = vrot.slane %v1581, 4
    %v1591 = vsel %vm237, 0.0, %v1590
    %v1592 = vrot.slane %v1585, 4
    %v1593 = vsel %vm237, 0.0, %v1592
    %v1594 = vrot.slane %v1490, 4
    %v1595 = vsel %vm237, %v1594, %v1398
    %v1596 = vrot.slane %v1398, 4
    %v1597 = vsel %vm237, %v1490, %v1596
    %v1599 = vunpack.c.l.s4 1983009808
    %v1600 = vunpack.c.0.s8 %v1599
    %v1601 = vperm.slane %v1595, %v1600
    %v1603 = vunpack.c.l.s4 1983009808
    %v1604 = vunpack.c.0.s8 %v1603
    %v1605 = vperm.slane %v1597, %v1604
    %v1606 = vrot.slane %v1536, 4
    %v1607 = vsel %vm237, %v1606, %v1444
    %v1608 = vrot.slane %v1444, 4
    %v1609 = vsel %vm237, %v1536, %v1608
    %v1611 = vunpack.c.l.s4 1983009808
    %v1612 = vunpack.c.0.s8 %v1611
    %v1613 = vperm.slane %v1607, %v1612
    %v1615 = vunpack.c.l.s4 1983009808
    %v1616 = vunpack.c.0.s8 %v1615
    %v1617 = vperm.slane %v1609, %v1616
    %v1618 = vrot.slane %v1613, 4
    %v1619 = vsel %vm237, %v1618, %v1601
    %v1620 = vrot.slane %v1601, 4
    %v1621 = vsel %vm237, %v1613, %v1620
    %v1623 = vunpack.c.l.s4 1934713408
    %v1624 = vunpack.c.0.s8 %v1623
    %v1625 = vperm.slane %v1619, %v1624
    %v1627 = vunpack.c.l.s4 1934713408
    %v1628 = vunpack.c.0.s8 %v1627
    %v1629 = vperm.slane %v1621, %v1628
    %v1630 = vrot.slane %v1617, 4
    %v1631 = vsel %vm237, %v1630, %v1605
    %v1632 = vrot.slane %v1605, 4
    %v1633 = vsel %vm237, %v1617, %v1632
    %v1635 = vunpack.c.l.s4 1934713408
    %v1636 = vunpack.c.0.s8 %v1635
    %v1637 = vperm.slane %v1631, %v1636
    %v1639 = vunpack.c.l.s4 1934713408
    %v1640 = vunpack.c.0.s8 %v1639
    %v1641 = vperm.slane %v1633, %v1640
    %v1642 = vrot.slane %v1625, 4
    %v1643 = vsel %vm237, 0.0, %v1642
    %v1644 = vrot.slane %v1629, 4
    %v1645 = vsel %vm237, 0.0, %v1644
    %v1646 = vrot.slane %v1637, 4
    %v1647 = vsel %vm237, 0.0, %v1646
    %v1648 = vrot.slane %v1641, 4
    %v1649 = vsel %vm237, 0.0, %v1648
    %v1650 = vsel %vm237, %v1588, %v1569
    %v1652 = vunpack.c.l.s4 1983009808
    %v1653 = vunpack.c.0.s8 %v1652
    %v1654 = vperm.slane %v1650, %v1653
    %v1655 = vrot.slane %v1589, 4
    %v1656 = vsel %vm237, %v1655, %v1587
    %v1658 = vunpack.c.l.s4 1983009808
    %v1659 = vunpack.c.0.s8 %v1658
    %v1660 = vperm.slane %v1656, %v1659
    %v1661 = vsel %vm237, %v1592, %v1581
    %v1663 = vunpack.c.l.s4 1983009808
    %v1664 = vunpack.c.0.s8 %v1663
    %v1665 = vperm.slane %v1661, %v1664
    %v1666 = vrot.slane %v1593, 4
    %v1667 = vsel %vm237, %v1666, %v1591
    %v1669 = vunpack.c.l.s4 1983009808
    %v1670 = vunpack.c.0.s8 %v1669
    %v1671 = vperm.slane %v1667, %v1670
    %v1672 = vrot.slane %v1660, 4
    %v1673 = vsel %vm237, %v1672, %v1654
    %v1674 = vrot.slane %v1654, 4
    %v1675 = vsel %vm237, %v1660, %v1674
    %v1677 = vunpack.c.l.s4 1934713408
    %v1678 = vunpack.c.0.s8 %v1677
    %v1679 = vperm.slane %v1673, %v1678
    %v1681 = vunpack.c.l.s4 1934713408
    %v1682 = vunpack.c.0.s8 %v1681
    %v1683 = vperm.slane %v1675, %v1682
    %v1684 = vrot.slane %v1671, 4
    %v1685 = vsel %vm237, %v1684, %v1665
    %v1686 = vrot.slane %v1665, 4
    %v1687 = vsel %vm237, %v1671, %v1686
    %v1689 = vunpack.c.l.s4 1934713408
    %v1690 = vunpack.c.0.s8 %v1689
    %v1691 = vperm.slane %v1685, %v1690
    %v1693 = vunpack.c.l.s4 1934713408
    %v1694 = vunpack.c.0.s8 %v1693
    %v1695 = vperm.slane %v1687, %v1694
    %v1696 = vrot.slane %v1691, 4
    %v1697 = vsel %vm237, %v1696, %v1679
    %v1698 = vrot.slane %v1679, 4
    %v1699 = vsel %vm237, %v1691, %v1698
    %v1700 = vrot.slane %v1695, 4
    %v1701 = vsel %vm237, %v1700, %v1683
    %v1702 = vrot.slane %v1683, 4
    %v1703 = vsel %vm237, %v1695, %v1702
    %v1704 = vsel %vm237, %v1644, %v1625
    %v1706 = vunpack.c.l.s4 1983009808
    %v1707 = vunpack.c.0.s8 %v1706
    %v1708 = vperm.slane %v1704, %v1707
    %v1709 = vrot.slane %v1645, 4
    %v1710 = vsel %vm237, %v1709, %v1643
    %v1712 = vunpack.c.l.s4 1983009808
    %v1713 = vunpack.c.0.s8 %v1712
    %v1714 = vperm.slane %v1710, %v1713
    %v1715 = vsel %vm237, %v1648, %v1637
    %v1717 = vunpack.c.l.s4 1983009808
    %v1718 = vunpack.c.0.s8 %v1717
    %v1719 = vperm.slane %v1715, %v1718
    %v1720 = vrot.slane %v1649, 4
    %v1721 = vsel %vm237, %v1720, %v1647
    %v1723 = vunpack.c.l.s4 1983009808
    %v1724 = vunpack.c.0.s8 %v1723
    %v1725 = vperm.slane %v1721, %v1724
    %v1726 = vrot.slane %v1714, 4
    %v1727 = vsel %vm237, %v1726, %v1708
    %v1728 = vrot.slane %v1708, 4
    %v1729 = vsel %vm237, %v1714, %v1728
    %v1731 = vunpack.c.l.s4 1934713408
    %v1732 = vunpack.c.0.s8 %v1731
    %v1733 = vperm.slane %v1727, %v1732
    %v1735 = vunpack.c.l.s4 1934713408
    %v1736 = vunpack.c.0.s8 %v1735
    %v1737 = vperm.slane %v1729, %v1736
    %v1738 = vrot.slane %v1725, 4
    %v1739 = vsel %vm237, %v1738, %v1719
    %v1740 = vrot.slane %v1719, 4
    %v1741 = vsel %vm237, %v1725, %v1740
    %v1743 = vunpack.c.l.s4 1934713408
    %v1744 = vunpack.c.0.s8 %v1743
    %v1745 = vperm.slane %v1739, %v1744
    %v1747 = vunpack.c.l.s4 1934713408
    %v1748 = vunpack.c.0.s8 %v1747
    %v1749 = vperm.slane %v1741, %v1748
    %v1750 = vrot.slane %v1745, 4
    %v1751 = vsel %vm237, %v1750, %v1733
    %v1752 = vrot.slane %v1733, 4
    %v1753 = vsel %vm237, %v1745, %v1752
    %v1754 = vrot.slane %v1749, 4
    %v1755 = vsel %vm237, %v1754, %v1737
    %v1756 = vrot.slane %v1737, 4
    %v1757 = vsel %vm237, %v1749, %v1756
    %1760 = vrot.lane.b32.xlu0 %v1699, 8
    %v1761 = vpop.permute.xlu0 %1760
    %1762 = vrot.lane.b32.xlu0 %v1753, 8
    %v1763 = vpop.permute.xlu0 %1762
    %1768 = vrot.lane.b32.xlu0 %v1701, 16
    %v1769 = vpop.permute.xlu0 %1768
    %1770 = vrot.lane.b32.xlu0 %v1755, 16
    %v1771 = vpop.permute.xlu0 %1770
    %1776 = vrot.lane.b32.xlu0 %v1703, 24
    %v1777 = vpop.permute.xlu0 %1776
    %1778 = vrot.lane.b32.xlu0 %v1757, 24
    %v1779 = vpop.permute.xlu0 %1778
    %v1782 = vsel %vm945, %v1697, %v1761
    %v1783 = vsel %vm945, %v1751, %v1763
    %vm1784 = vcmask 130048
    %v1785 = vsel %vm1784, %v1782, %v1769
    %v1786 = vsel %vm1784, %v1783, %v1771
    %vm1787 = vcmask 195584
    %v1788 = vsel %vm1787, %v1785, %v1777
    %v1789 = vsel %vm1787, %v1786, %v1779
    %v1790 = vld [vmem:[%s5] sm:$0xff]
    %v1791 = vld [vmem:[%s5 + $0x8] sm:$0xff]
    %v1792 = vld [vmem:[%s5 + $0x10] sm:$0xff]
    %v1793 = vld [vmem:[%s5 + $0x18] sm:$0xff]
    %v1794 = vld [vmem:[%s6] sm:$0x1]
    %v1796 = vperm.slane %v1794, 0
    %v1799 = vsel %vm186, %v1788, 0
    %v1802 = vsel %vm186, %v1789, 0
    %1804 = vmatpush.msra.mxu0 0.0
    %1805 = vmatpush.msra.mxu0 0.0
    %1806 = vmatpush.msra.mxu0 0.0
    %1807 = vmatpush.msra.mxu0 0.0
    %1808 = vmatpush.msra.mxu0 0.0
    %1809 = vmatpush.msra.mxu0 0.0
    %1810 = vmatpush.msra.mxu0 0.0
    %1811 = vmatpush.msra.mxu0 0.0
    %1812 = vmatpush.msra.mxu0 0.0
    %1813 = vmatpush.msra.mxu0 0.0
    %1814 = vmatpush.msra.mxu0 0.0
    %1815 = vmatpush.msra.mxu0 0.0
    %1816 = vmatpush.msra.mxu0 %v1793
    %1817 = vmatpush.msra.mxu0 %v1792
    %1818 = vmatpush.msra.mxu0 %v1791
    %1819 = vmatpush.msra.mxu0 %v1790
    %1820 = vmatmul.f32.gmra.mxu0 %v1799
    %v1821 = vpop.f32.mrf.mxu0
    %v1822 = vadd.f32 %v1796, %v1821
    %1823 = vmatmul.f32.gmra.mxu0 %v1802
    %v1824 = vpop.f32.mrf.mxu0
    %v1825 = vadd.f32 %v1796, %v1824
    %1826 = vdwg.mxu0
    %v1827 = vadd.f32 %v167, %v1822
    %v1828 = vadd.f32 %v168, %v1825
    %v1829 = vld [vmem:[%s7] sm:$0x1]
    %v1830 = vld [vmem:[%s8] sm:$0x1]
    %v1831 = vsel %vm186, %v1827, 0.0
    %1832 = vadd.xlane.f32.xlu0 %v1831
    %v1833 = vpop.xlane.xlu0 %1832
    %v1834 = vsel %vm186, %v1828, 0.0
    %1835 = vadd.xlane.f32.xlu0 %v1834
    %v1836 = vpop.xlane.xlu0 %1835
    %v1837 = vrcp.pop 32.0
    %v1838 = vmul.f32 32.0, %v1837
    %v1839 = vsub.f32 1.0, %v1838
    %v1840 = vmul.f32 %v1837, %v1839
    %v1841 = vadd.f32 %v1837, %v1840
    %vm1842 = vweird.f32 %v1837
    %v1843 = vsel %vm1842, %v1837, %v1841
    %v1844 = vmul.f32 %v1833, %v1843
    %v1845 = vmul.f32 %v1836, %v1843
    %v1846 = vsub.f32 %v1827, %v1844
    %v1847 = vsub.f32 %v1828, %v1845
    %v1848 = vmul.f32 %v1846, %v1846
    %v1849 = vmul.f32 %v1847, %v1847
    %v1850 = vsel %vm186, %v1848, 0.0
    %1851 = vadd.xlane.f32.xlu0 %v1850
    %v1852 = vpop.xlane.xlu0 %1851
    %v1853 = vsel %vm186, %v1849, 0.0
    %1854 = vadd.xlane.f32.xlu0 %v1853
    %v1855 = vpop.xlane.xlu0 %1854
    %v1856 = vmul.f32 %v1852, %v1843
    %v1857 = vmul.f32 %v1855, %v1843
    %v1858 = vadd.f32 %v1856, 1e-05
    %v1859 = vadd.f32 %v1857, 1e-05
    %v1860 = vrsqrt.pop %v1858
    %v1861 = vmul.f32 %v1860, %v1858
    %v1862 = vmul.f32 %v1861, %v1860
    %v1863 = vmul.f32 0.5, %v1862
    %v1864 = vsub.f32 1.5, %v1863
    %v1865 = vmul.f32 %v1860, %v1864
    %vm1866 = vweird.f32 %v1858
    %vm1867 = vweird.f32 %v1860
    %vm1868 = vmor %vm1866, %vm1867
    %v1869 = vsel %vm1868, %v1860, %v1865
    %v1870 = vrsqrt.pop %v1859
    %v1871 = vmul.f32 %v1870, %v1859
    %v1872 = vmul.f32 %v1871, %v1870
    %v1873 = vmul.f32 0.5, %v1872
    %v1874 = vsub.f32 1.5, %v1873
    %v1875 = vmul.f32 %v1870, %v1874
    %vm1876 = vweird.f32 %v1859
    %vm1877 = vweird.f32 %v1870
    %vm1878 = vmor %vm1876, %vm1877
    %v1879 = vsel %vm1878, %v1870, %v1875
    %v1880 = vmul.f32 %v1846, %v1869
    %v1881 = vmul.f32 %v1847, %v1879
    %v1883 = vperm.slane %v1829, 0
    %v1885 = vmul.f32 %v1880, %v1883
    %v1886 = vmul.f32 %v1881, %v1883
    %v1888 = vperm.slane %v1830, 0
    %v1890 = vadd.f32 %v1885, %v1888
    %v1891 = vadd.f32 %v1886, %v1888
    %v1892 = vld [vmem:[%s9] sm:$0xff]
    %v1893 = vld [vmem:[%s9 + $0x8] sm:$0xff]
    %v1894 = vld [vmem:[%s9 + $0x10] sm:$0xff]
    %v1895 = vld [vmem:[%s9 + $0x18] sm:$0xff]
    %v1896 = vld [vmem:[%s10] sm:$0x1]
    %v1898 = vperm.slane %v1896, 0
    %v1901 = vsel %vm186, %v1890, 0
    %v1904 = vsel %vm186, %v1891, 0
    %1906 = vmatpush.msra.mxu0 0.0
    %1907 = vmatpush.msra.mxu0 0.0
    %1908 = vmatpush.msra.mxu0 0.0
    %1909 = vmatpush.msra.mxu0 0.0
    %1910 = vmatpush.msra.mxu0 0.0
    %1911 = vmatpush.msra.mxu0 0.0
    %1912 = vmatpush.msra.mxu0 0.0
    %1913 = vmatpush.msra.mxu0 0.0
    %1914 = vmatpush.msra.mxu0 0.0
    %1915 = vmatpush.msra.mxu0 0.0
    %1916 = vmatpush.msra.mxu0 0.0
    %1917 = vmatpush.msra.mxu0 0.0
    %1918 = vmatpush.msra.mxu0 %v1895
    %1919 = vmatpush.msra.mxu0 %v1894
    %1920 = vmatpush.msra.mxu0 %v1893
    %1921 = vmatpush.msra.mxu0 %v1892
    %1922 = vmatmul.f32.gmra.mxu0 %v1901
    %v1923 = vpop.f32.mrf.mxu0
    %v1924 = vadd.f32 %v1898, %v1923
    %1925 = vmatmul.f32.gmra.mxu0 %v1904
    %v1926 = vpop.f32.mrf.mxu0
    %v1927 = vadd.f32 %v1898, %v1926
    %1928 = vdwg.mxu0
    %v1929 = vld [vmem:[#allocation8] sm:$0xff]
    %v1930 = vld [vmem:[#allocation8 + $0x8] sm:$0xff]
    %v1931 = vld [vmem:[#allocation8 + $0x10] sm:$0xff]
    %v1932 = vld [vmem:[#allocation8 + $0x18] sm:$0xff]
    %v1933 = vld [vmem:[%s12] sm:$0x1]
    %v1935 = vperm.slane %v1933, 0
    %v1938 = vsel %vm186, %v169, 0
    %v1941 = vsel %vm186, %v170, 0
    %1943 = vmatpush.msra.mxu0 0.0
    %1944 = vmatpush.msra.mxu0 0.0
    %1945 = vmatpush.msra.mxu0 0.0
    %1946 = vmatpush.msra.mxu0 0.0
    %1947 = vmatpush.msra.mxu0 0.0
    %1948 = vmatpush.msra.mxu0 0.0
    %1949 = vmatpush.msra.mxu0 0.0
    %1950 = vmatpush.msra.mxu0 0.0
    %1951 = vmatpush.msra.mxu0 0.0
    %1952 = vmatpush.msra.mxu0 0.0
    %1953 = vmatpush.msra.mxu0 0.0
    %1954 = vmatpush.msra.mxu0 0.0
    %1955 = vmatpush.msra.mxu0 %v1932
    %1956 = vmatpush.msra.mxu0 %v1931
    %1957 = vmatpush.msra.mxu0 %v1930
    %1958 = vmatpush.msra.mxu0 %v1929
    %1959 = vmatmul.f32.gmra.mxu0 %v1938
    %v1960 = vpop.f32.mrf.mxu0
    %v1961 = vadd.f32 %v1935, %v1960
    %1962 = vmatmul.f32.gmra.mxu0 %v1941
    %v1963 = vpop.f32.mrf.mxu0
    %v1964 = vadd.f32 %v1935, %v1963
    %1965 = vdwg.mxu0
    %1968 = vrot.lane.b32.xlu0 %v1924, 120
    %v1969 = vpop.permute.xlu0 %1968
    %1970 = vrot.lane.b32.xlu0 %v1927, 120
    %v1971 = vpop.permute.xlu0 %1970
    %1974 = vrot.lane.b32.xlu0 %v1924, 112
    %v1975 = vpop.permute.xlu0 %1974
    %1976 = vrot.lane.b32.xlu0 %v1927, 112
    %v1977 = vpop.permute.xlu0 %1976
    %1980 = vrot.lane.b32.xlu0 %v1924, 104
    %v1981 = vpop.permute.xlu0 %1980
    %1982 = vrot.lane.b32.xlu0 %v1927, 104
    %v1983 = vpop.permute.xlu0 %1982
    %v1986 = vrot.slane %v1975, 4
    %v1987 = vsel %vm237, %v1986, %v1924
    %v1988 = vrot.slane %v1924, 4
    %v1989 = vsel %vm237, %v1975, %v1988
    %v1991 = vunpack.c.l.s4 1983009808
    %v1992 = vunpack.c.0.s8 %v1991
    %v1993 = vperm.slane %v1987, %v1992
    %v1995 = vunpack.c.l.s4 1983009808
    %v1996 = vunpack.c.0.s8 %v1995
    %v1997 = vperm.slane %v1989, %v1996
    %v1998 = vrot.slane %v1981, 4
    %v1999 = vsel %vm237, %v1998, %v1969
    %v2000 = vrot.slane %v1969, 4
    %v2001 = vsel %vm237, %v1981, %v2000
    %v2003 = vunpack.c.l.s4 1983009808
    %v2004 = vunpack.c.0.s8 %v2003
    %v2005 = vperm.slane %v1999, %v2004
    %v2007 = vunpack.c.l.s4 1983009808
    %v2008 = vunpack.c.0.s8 %v2007
    %v2009 = vperm.slane %v2001, %v2008
    %v2010 = vrot.slane %v2005, 4
    %v2011 = vsel %vm237, %v2010, %v1993
    %v2012 = vrot.slane %v1993, 4
    %v2013 = vsel %vm237, %v2005, %v2012
    %v2015 = vunpack.c.l.s4 1934713408
    %v2016 = vunpack.c.0.s8 %v2015
    %v2017 = vperm.slane %v2011, %v2016
    %v2019 = vunpack.c.l.s4 1934713408
    %v2020 = vunpack.c.0.s8 %v2019
    %v2021 = vperm.slane %v2013, %v2020
    %v2022 = vrot.slane %v2009, 4
    %v2023 = vsel %vm237, %v2022, %v1997
    %v2024 = vrot.slane %v1997, 4
    %v2025 = vsel %vm237, %v2009, %v2024
    %v2027 = vunpack.c.l.s4 1934713408
    %v2028 = vunpack.c.0.s8 %v2027
    %v2029 = vperm.slane %v2023, %v2028
    %v2031 = vunpack.c.l.s4 1934713408
    %v2032 = vunpack.c.0.s8 %v2031
    %v2033 = vperm.slane %v2025, %v2032
    %v2034 = vrot.slane %v2017, 4
    %v2035 = vsel %vm237, 0.0, %v2034
    %v2036 = vrot.slane %v2021, 4
    %v2037 = vsel %vm237, 0.0, %v2036
    %v2038 = vrot.slane %v2029, 4
    %v2039 = vsel %vm237, 0.0, %v2038
    %v2040 = vrot.slane %v2033, 4
    %v2041 = vsel %vm237, 0.0, %v2040
    %v2042 = vrot.slane %v1977, 4
    %v2043 = vsel %vm237, %v2042, %v1927
    %v2044 = vrot.slane %v1927, 4
    %v2045 = vsel %vm237, %v1977, %v2044
    %v2047 = vunpack.c.l.s4 1983009808
    %v2048 = vunpack.c.0.s8 %v2047
    %v2049 = vperm.slane %v2043, %v2048
    %v2051 = vunpack.c.l.s4 1983009808
    %v2052 = vunpack.c.0.s8 %v2051
    %v2053 = vperm.slane %v2045, %v2052
    %v2054 = vrot.slane %v1983, 4
    %v2055 = vsel %vm237, %v2054, %v1971
    %v2056 = vrot.slane %v1971, 4
    %v2057 = vsel %vm237, %v1983, %v2056
    %v2059 = vunpack.c.l.s4 1983009808
    %v2060 = vunpack.c.0.s8 %v2059
    %v2061 = vperm.slane %v2055, %v2060
    %v2063 = vunpack.c.l.s4 1983009808
    %v2064 = vunpack.c.0.s8 %v2063
    %v2065 = vperm.slane %v2057, %v2064
    %v2066 = vrot.slane %v2061, 4
    %v2067 = vsel %vm237, %v2066, %v2049
    %v2068 = vrot.slane %v2049, 4
    %v2069 = vsel %vm237, %v2061, %v2068
    %v2071 = vunpack.c.l.s4 1934713408
    %v2072 = vunpack.c.0.s8 %v2071
    %v2073 = vperm.slane %v2067, %v2072
    %v2075 = vunpack.c.l.s4 1934713408
    %v2076 = vunpack.c.0.s8 %v2075
    %v2077 = vperm.slane %v2069, %v2076
    %v2078 = vrot.slane %v2065, 4
    %v2079 = vsel %vm237, %v2078, %v2053
    %v2080 = vrot.slane %v2053, 4
    %v2081 = vsel %vm237, %v2065, %v2080
    %v2083 = vunpack.c.l.s4 1934713408
    %v2084 = vunpack.c.0.s8 %v2083
    %v2085 = vperm.slane %v2079, %v2084
    %v2087 = vunpack.c.l.s4 1934713408
    %v2088 = vunpack.c.0.s8 %v2087
    %v2089 = vperm.slane %v2081, %v2088
    %v2090 = vrot.slane %v2073, 4
    %v2091 = vsel %vm237, 0.0, %v2090
    %v2092 = vrot.slane %v2077, 4
    %v2093 = vsel %vm237, 0.0, %v2092
    %v2094 = vrot.slane %v2085, 4
    %v2095 = vsel %vm237, 0.0, %v2094
    %v2096 = vrot.slane %v2089, 4
    %v2097 = vsel %vm237, 0.0, %v2096
    %v2098 = vsel %vm237, %v2036, %v2017
    %v2100 = vunpack.c.l.s4 1983009808
    %v2101 = vunpack.c.0.s8 %v2100
    %v2102 = vperm.slane %v2098, %v2101
    %v2103 = vrot.slane %v2037, 4
    %v2104 = vsel %vm237, %v2103, %v2035
    %v2106 = vunpack.c.l.s4 1983009808
    %v2107 = vunpack.c.0.s8 %v2106
    %v2108 = vperm.slane %v2104, %v2107
    %v2109 = vsel %vm237, %v2040, %v2029
    %v2111 = vunpack.c.l.s4 1983009808
    %v2112 = vunpack.c.0.s8 %v2111
    %v2113 = vperm.slane %v2109, %v2112
    %v2114 = vrot.slane %v2041, 4
    %v2115 = vsel %vm237, %v2114, %v2039
    %v2117 = vunpack.c.l.s4 1983009808
    %v2118 = vunpack.c.0.s8 %v2117
    %v2119 = vperm.slane %v2115, %v2118
    %v2120 = vrot.slane %v2108, 4
    %v2121 = vsel %vm237, %v2120, %v2102
    %v2122 = vrot.slane %v2102, 4
    %v2123 = vsel %vm237, %v2108, %v2122
    %v2125 = vunpack.c.l.s4 1934713408
    %v2126 = vunpack.c.0.s8 %v2125
    %v2127 = vperm.slane %v2121, %v2126
    %v2129 = vunpack.c.l.s4 1934713408
    %v2130 = vunpack.c.0.s8 %v2129
    %v2131 = vperm.slane %v2123, %v2130
    %v2132 = vrot.slane %v2119, 4
    %v2133 = vsel %vm237, %v2132, %v2113
    %v2134 = vrot.slane %v2113, 4
    %v2135 = vsel %vm237, %v2119, %v2134
    %v2137 = vunpack.c.l.s4 1934713408
    %v2138 = vunpack.c.0.s8 %v2137
    %v2139 = vperm.slane %v2133, %v2138
    %v2141 = vunpack.c.l.s4 1934713408
    %v2142 = vunpack.c.0.s8 %v2141
    %v2143 = vperm.slane %v2135, %v2142
    %v2144 = vrot.slane %v2139, 4
    %v2145 = vsel %vm237, %v2144, %v2127
    %v2146 = vrot.slane %v2127, 4
    %v2147 = vsel %vm237, %v2139, %v2146
    %v2148 = vrot.slane %v2143, 4
    %v2149 = vsel %vm237, %v2148, %v2131
    %v2150 = vrot.slane %v2131, 4
    %v2151 = vsel %vm237, %v2143, %v2150
    %v2152 = vsel %vm237, %v2092, %v2073
    %v2154 = vunpack.c.l.s4 1983009808
    %v2155 = vunpack.c.0.s8 %v2154
    %v2156 = vperm.slane %v2152, %v2155
    %v2157 = vrot.slane %v2093, 4
    %v2158 = vsel %vm237, %v2157, %v2091
    %v2160 = vunpack.c.l.s4 1983009808
    %v2161 = vunpack.c.0.s8 %v2160
    %v2162 = vperm.slane %v2158, %v2161
    %v2163 = vsel %vm237, %v2096, %v2085
    %v2165 = vunpack.c.l.s4 1983009808
    %v2166 = vunpack.c.0.s8 %v2165
    %v2167 = vperm.slane %v2163, %v2166
    %v2168 = vrot.slane %v2097, 4
    %v2169 = vsel %vm237, %v2168, %v2095
    %v2171 = vunpack.c.l.s4 1983009808
    %v2172 = vunpack.c.0.s8 %v2171
    %v2173 = vperm.slane %v2169, %v2172
    %v2174 = vrot.slane %v2162, 4
    %v2175 = vsel %vm237, %v2174, %v2156
    %v2176 = vrot.slane %v2156, 4
    %v2177 = vsel %vm237, %v2162, %v2176
    %v2179 = vunpack.c.l.s4 1934713408
    %v2180 = vunpack.c.0.s8 %v2179
    %v2181 = vperm.slane %v2175, %v2180
    %v2183 = vunpack.c.l.s4 1934713408
    %v2184 = vunpack.c.0.s8 %v2183
    %v2185 = vperm.slane %v2177, %v2184
    %v2186 = vrot.slane %v2173, 4
    %v2187 = vsel %vm237, %v2186, %v2167
    %v2188 = vrot.slane %v2167, 4
    %v2189 = vsel %vm237, %v2173, %v2188
    %v2191 = vunpack.c.l.s4 1934713408
    %v2192 = vunpack.c.0.s8 %v2191
    %v2193 = vperm.slane %v2187, %v2192
    %v2195 = vunpack.c.l.s4 1934713408
    %v2196 = vunpack.c.0.s8 %v2195
    %v2197 = vperm.slane %v2189, %v2196
    %v2198 = vrot.slane %v2193, 4
    %v2199 = vsel %vm237, %v2198, %v2181
    %v2200 = vrot.slane %v2181, 4
    %v2201 = vsel %vm237, %v2193, %v2200
    %v2202 = vrot.slane %v2197, 4
    %v2203 = vsel %vm237, %v2202, %v2185
    %v2204 = vrot.slane %v2185, 4
    %v2205 = vsel %vm237, %v2197, %v2204
    %2208 = vrot.lane.b32.xlu0 %v1961, 120
    %v2209 = vpop.permute.xlu0 %2208
    %2210 = vrot.lane.b32.xlu0 %v1964, 120
    %v2211 = vpop.permute.xlu0 %2210
    %2214 = vrot.lane.b32.xlu0 %v1961, 112
    %v2215 = vpop.permute.xlu0 %2214
    %2216 = vrot.lane.b32.xlu0 %v1964, 112
    %v2217 = vpop.permute.xlu0 %2216
    %2220 = vrot.lane.b32.xlu0 %v1961, 104
    %v2221 = vpop.permute.xlu0 %2220
    %2222 = vrot.lane.b32.xlu0 %v1964, 104
    %v2223 = vpop.permute.xlu0 %2222
    %v2226 = vrot.slane %v2215, 4
    %v2227 = vsel %vm237, %v2226, %v1961
    %v2228 = vrot.slane %v1961, 4
    %v2229 = vsel %vm237, %v2215, %v2228
    %v2231 = vunpack.c.l.s4 1983009808
    %v2232 = vunpack.c.0.s8 %v2231
    %v2233 = vperm.slane %v2227, %v2232
    %v2235 = vunpack.c.l.s4 1983009808
    %v2236 = vunpack.c.0.s8 %v2235
    %v2237 = vperm.slane %v2229, %v2236
    %v2238 = vrot.slane %v2221, 4
    %v2239 = vsel %vm237, %v2238, %v2209
    %v2240 = vrot.slane %v2209, 4
    %v2241 = vsel %vm237, %v2221, %v2240
    %v2243 = vunpack.c.l.s4 1983009808
    %v2244 = vunpack.c.0.s8 %v2243
    %v2245 = vperm.slane %v2239, %v2244
    %v2247 = vunpack.c.l.s4 1983009808
    %v2248 = vunpack.c.0.s8 %v2247
    %v2249 = vperm.slane %v2241, %v2248
    %v2250 = vrot.slane %v2245, 4
    %v2251 = vsel %vm237, %v2250, %v2233
    %v2252 = vrot.slane %v2233, 4
    %v2253 = vsel %vm237, %v2245, %v2252
    %v2255 = vunpack.c.l.s4 1934713408
    %v2256 = vunpack.c.0.s8 %v2255
    %v2257 = vperm.slane %v2251, %v2256
    %v2259 = vunpack.c.l.s4 1934713408
    %v2260 = vunpack.c.0.s8 %v2259
    %v2261 = vperm.slane %v2253, %v2260
    %v2262 = vrot.slane %v2249, 4
    %v2263 = vsel %vm237, %v2262, %v2237
    %v2264 = vrot.slane %v2237, 4
    %v2265 = vsel %vm237, %v2249, %v2264
    %v2267 = vunpack.c.l.s4 1934713408
    %v2268 = vunpack.c.0.s8 %v2267
    %v2269 = vperm.slane %v2263, %v2268
    %v2271 = vunpack.c.l.s4 1934713408
    %v2272 = vunpack.c.0.s8 %v2271
    %v2273 = vperm.slane %v2265, %v2272
    %v2274 = vrot.slane %v2257, 4
    %v2275 = vsel %vm237, 0.0, %v2274
    %v2276 = vrot.slane %v2261, 4
    %v2277 = vsel %vm237, 0.0, %v2276
    %v2278 = vrot.slane %v2269, 4
    %v2279 = vsel %vm237, 0.0, %v2278
    %v2280 = vrot.slane %v2273, 4
    %v2281 = vsel %vm237, 0.0, %v2280
    %v2282 = vrot.slane %v2217, 4
    %v2283 = vsel %vm237, %v2282, %v1964
    %v2284 = vrot.slane %v1964, 4
    %v2285 = vsel %vm237, %v2217, %v2284
    %v2287 = vunpack.c.l.s4 1983009808
    %v2288 = vunpack.c.0.s8 %v2287
    %v2289 = vperm.slane %v2283, %v2288
    %v2291 = vunpack.c.l.s4 1983009808
    %v2292 = vunpack.c.0.s8 %v2291
    %v2293 = vperm.slane %v2285, %v2292
    %v2294 = vrot.slane %v2223, 4
    %v2295 = vsel %vm237, %v2294, %v2211
    %v2296 = vrot.slane %v2211, 4
    %v2297 = vsel %vm237, %v2223, %v2296
    %v2299 = vunpack.c.l.s4 1983009808
    %v2300 = vunpack.c.0.s8 %v2299
    %v2301 = vperm.slane %v2295, %v2300
    %v2303 = vunpack.c.l.s4 1983009808
    %v2304 = vunpack.c.0.s8 %v2303
    %v2305 = vperm.slane %v2297, %v2304
    %v2306 = vrot.slane %v2301, 4
    %v2307 = vsel %vm237, %v2306, %v2289
    %v2308 = vrot.slane %v2289, 4
    %v2309 = vsel %vm237, %v2301, %v2308
    %v2311 = vunpack.c.l.s4 1934713408
    %v2312 = vunpack.c.0.s8 %v2311
    %v2313 = vperm.slane %v2307, %v2312
    %v2315 = vunpack.c.l.s4 1934713408
    %v2316 = vunpack.c.0.s8 %v2315
    %v2317 = vperm.slane %v2309, %v2316
    %v2318 = vrot.slane %v2305, 4
    %v2319 = vsel %vm237, %v2318, %v2293
    %v2320 = vrot.slane %v2293, 4
    %v2321 = vsel %vm237, %v2305, %v2320
    %v2323 = vunpack.c.l.s4 1934713408
    %v2324 = vunpack.c.0.s8 %v2323
    %v2325 = vperm.slane %v2319, %v2324
    %v2327 = vunpack.c.l.s4 1934713408
    %v2328 = vunpack.c.0.s8 %v2327
    %v2329 = vperm.slane %v2321, %v2328
    %v2330 = vrot.slane %v2313, 4
    %v2331 = vsel %vm237, 0.0, %v2330
    %v2332 = vrot.slane %v2317, 4
    %v2333 = vsel %vm237, 0.0, %v2332
    %v2334 = vrot.slane %v2325, 4
    %v2335 = vsel %vm237, 0.0, %v2334
    %v2336 = vrot.slane %v2329, 4
    %v2337 = vsel %vm237, 0.0, %v2336
    %v2338 = vsel %vm237, %v2276, %v2257
    %v2340 = vunpack.c.l.s4 1983009808
    %v2341 = vunpack.c.0.s8 %v2340
    %v2342 = vperm.slane %v2338, %v2341
    %v2343 = vrot.slane %v2277, 4
    %v2344 = vsel %vm237, %v2343, %v2275
    %v2346 = vunpack.c.l.s4 1983009808
    %v2347 = vunpack.c.0.s8 %v2346
    %v2348 = vperm.slane %v2344, %v2347
    %v2349 = vsel %vm237, %v2280, %v2269
    %v2351 = vunpack.c.l.s4 1983009808
    %v2352 = vunpack.c.0.s8 %v2351
    %v2353 = vperm.slane %v2349, %v2352
    %v2354 = vrot.slane %v2281, 4
    %v2355 = vsel %vm237, %v2354, %v2279
    %v2357 = vunpack.c.l.s4 1983009808
    %v2358 = vunpack.c.0.s8 %v2357
    %v2359 = vperm.slane %v2355, %v2358
    %v2360 = vrot.slane %v2348, 4
    %v2361 = vsel %vm237, %v2360, %v2342
    %v2362 = vrot.slane %v2342, 4
    %v2363 = vsel %vm237, %v2348, %v2362
    %v2365 = vunpack.c.l.s4 1934713408
    %v2366 = vunpack.c.0.s8 %v2365
    %v2367 = vperm.slane %v2361, %v2366
    %v2369 = vunpack.c.l.s4 1934713408
    %v2370 = vunpack.c.0.s8 %v2369
    %v2371 = vperm.slane %v2363, %v2370
    %v2372 = vrot.slane %v2359, 4
    %v2373 = vsel %vm237, %v2372, %v2353
    %v2374 = vrot.slane %v2353, 4
    %v2375 = vsel %vm237, %v2359, %v2374
    %v2377 = vunpack.c.l.s4 1934713408
    %v2378 = vunpack.c.0.s8 %v2377
    %v2379 = vperm.slane %v2373, %v2378
    %v2381 = vunpack.c.l.s4 1934713408
    %v2382 = vunpack.c.0.s8 %v2381
    %v2383 = vperm.slane %v2375, %v2382
    %v2384 = vrot.slane %v2379, 4
    %v2385 = vsel %vm237, %v2384, %v2367
    %v2386 = vrot.slane %v2367, 4
    %v2387 = vsel %vm237, %v2379, %v2386
    %v2388 = vrot.slane %v2383, 4
    %v2389 = vsel %vm237, %v2388, %v2371
    %v2390 = vrot.slane %v2371, 4
    %v2391 = vsel %vm237, %v2383, %v2390
    %v2392 = vsel %vm237, %v2332, %v2313
    %v2394 = vunpack.c.l.s4 1983009808
    %v2395 = vunpack.c.0.s8 %v2394
    %v2396 = vperm.slane %v2392, %v2395
    %v2397 = vrot.slane %v2333, 4
    %v2398 = vsel %vm237, %v2397, %v2331
    %v2400 = vunpack.c.l.s4 1983009808
    %v2401 = vunpack.c.0.s8 %v2400
    %v2402 = vperm.slane %v2398, %v2401
    %v2403 = vsel %vm237, %v2336, %v2325
    %v2405 = vunpack.c.l.s4 1983009808
    %v2406 = vunpack.c.0.s8 %v2405
    %v2407 = vperm.slane %v2403, %v2406
    %v2408 = vrot.slane %v2337, 4
    %v2409 = vsel %vm237, %v2408, %v2335
    %v2411 = vunpack.c.l.s4 1983009808
    %v2412 = vunpack.c.0.s8 %v2411
    %v2413 = vperm.slane %v2409, %v2412
    %v2414 = vrot.slane %v2402, 4
    %v2415 = vsel %vm237, %v2414, %v2396
    %v2416 = vrot.slane %v2396, 4
    %v2417 = vsel %vm237, %v2402, %v2416
    %v2419 = vunpack.c.l.s4 1934713408
    %v2420 = vunpack.c.0.s8 %v2419
    %v2421 = vperm.slane %v2415, %v2420
    %v2423 = vunpack.c.l.s4 1934713408
    %v2424 = vunpack.c.0.s8 %v2423
    %v2425 = vperm.slane %v2417, %v2424
    %v2426 = vrot.slane %v2413, 4
    %v2427 = vsel %vm237, %v2426, %v2407
    %v2428 = vrot.slane %v2407, 4
    %v2429 = vsel %vm237, %v2413, %v2428
    %v2431 = vunpack.c.l.s4 1934713408
    %v2432 = vunpack.c.0.s8 %v2431
    %v2433 = vperm.slane %v2427, %v2432
    %v2435 = vunpack.c.l.s4 1934713408
    %v2436 = vunpack.c.0.s8 %v2435
    %v2437 = vperm.slane %v2429, %v2436
    %v2438 = vrot.slane %v2433, 4
    %v2439 = vsel %vm237, %v2438, %v2421
    %v2440 = vrot.slane %v2421, 4
    %v2441 = vsel %vm237, %v2433, %v2440
    %v2442 = vrot.slane %v2437, 4
    %v2443 = vsel %vm237, %v2442, %v2425
    %v2444 = vrot.slane %v2425, 4
    %v2445 = vsel %vm237, %v2437, %v2444
    %2446 = vrot.lane.b32.xlu0 %v1961, 96
    %v2447 = vpop.permute.xlu0 %2446
    %2448 = vrot.lane.b32.xlu0 %v1964, 96
    %v2449 = vpop.permute.xlu0 %2448
    %2450 = vrot.lane.b32.xlu0 %v2209, 96
    %v2451 = vpop.permute.xlu0 %2450
    %2452 = vrot.lane.b32.xlu0 %v2211, 96
    %v2453 = vpop.permute.xlu0 %2452
    %2454 = vrot.lane.b32.xlu0 %v2215, 96
    %v2455 = vpop.permute.xlu0 %2454
    %2456 = vrot.lane.b32.xlu0 %v2217, 96
    %v2457 = vpop.permute.xlu0 %2456
    %2458 = vrot.lane.b32.xlu0 %v2221, 96
    %v2459 = vpop.permute.xlu0 %2458
    %2460 = vrot.lane.b32.xlu0 %v2223, 96
    %v2461 = vpop.permute.xlu0 %2460
    %v2470 = vrot.slane %v2455, 4
    %v2471 = vsel %vm237, %v2470, %v2447
    %v2472 = vrot.slane %v2447, 4
    %v2473 = vsel %vm237, %v2455, %v2472
    %v2475 = vunpack.c.l.s4 1983009808
    %v2476 = vunpack.c.0.s8 %v2475
    %v2477 = vperm.slane %v2471, %v2476
    %v2479 = vunpack.c.l.s4 1983009808
    %v2480 = vunpack.c.0.s8 %v2479
    %v2481 = vperm.slane %v2473, %v2480
    %v2482 = vrot.slane %v2459, 4
    %v2483 = vsel %vm237, %v2482, %v2451
    %v2484 = vrot.slane %v2451, 4
    %v2485 = vsel %vm237, %v2459, %v2484
    %v2487 = vunpack.c.l.s4 1983009808
    %v2488 = vunpack.c.0.s8 %v2487
    %v2489 = vperm.slane %v2483, %v2488
    %v2491 = vunpack.c.l.s4 1983009808
    %v2492 = vunpack.c.0.s8 %v2491
    %v2493 = vperm.slane %v2485, %v2492
    %v2494 = vrot.slane %v2489, 4
    %v2495 = vsel %vm237, %v2494, %v2477
    %v2496 = vrot.slane %v2477, 4
    %v2497 = vsel %vm237, %v2489, %v2496
    %v2499 = vunpack.c.l.s4 1934713408
    %v2500 = vunpack.c.0.s8 %v2499
    %v2501 = vperm.slane %v2495, %v2500
    %v2503 = vunpack.c.l.s4 1934713408
    %v2504 = vunpack.c.0.s8 %v2503
    %v2505 = vperm.slane %v2497, %v2504
    %v2506 = vrot.slane %v2493, 4
    %v2507 = vsel %vm237, %v2506, %v2481
    %v2508 = vrot.slane %v2481, 4
    %v2509 = vsel %vm237, %v2493, %v2508
    %v2511 = vunpack.c.l.s4 1934713408
    %v2512 = vunpack.c.0.s8 %v2511
    %v2513 = vperm.slane %v2507, %v2512
    %v2515 = vunpack.c.l.s4 1934713408
    %v2516 = vunpack.c.0.s8 %v2515
    %v2517 = vperm.slane %v2509, %v2516
    %v2518 = vrot.slane %v2501, 4
    %v2519 = vsel %vm237, 0.0, %v2518
    %v2520 = vrot.slane %v2505, 4
    %v2521 = vsel %vm237, 0.0, %v2520
    %v2522 = vrot.slane %v2513, 4
    %v2523 = vsel %vm237, 0.0, %v2522
    %v2524 = vrot.slane %v2517, 4
    %v2525 = vsel %vm237, 0.0, %v2524
    %v2526 = vrot.slane %v2457, 4
    %v2527 = vsel %vm237, %v2526, %v2449
    %v2528 = vrot.slane %v2449, 4
    %v2529 = vsel %vm237, %v2457, %v2528
    %v2531 = vunpack.c.l.s4 1983009808
    %v2532 = vunpack.c.0.s8 %v2531
    %v2533 = vperm.slane %v2527, %v2532
    %v2535 = vunpack.c.l.s4 1983009808
    %v2536 = vunpack.c.0.s8 %v2535
    %v2537 = vperm.slane %v2529, %v2536
    %v2538 = vrot.slane %v2461, 4
    %v2539 = vsel %vm237, %v2538, %v2453
    %v2540 = vrot.slane %v2453, 4
    %v2541 = vsel %vm237, %v2461, %v2540
    %v2543 = vunpack.c.l.s4 1983009808
    %v2544 = vunpack.c.0.s8 %v2543
    %v2545 = vperm.slane %v2539, %v2544
    %v2547 = vunpack.c.l.s4 1983009808
    %v2548 = vunpack.c.0.s8 %v2547
    %v2549 = vperm.slane %v2541, %v2548
    %v2550 = vrot.slane %v2545, 4
    %v2551 = vsel %vm237, %v2550, %v2533
    %v2552 = vrot.slane %v2533, 4
    %v2553 = vsel %vm237, %v2545, %v2552
    %v2555 = vunpack.c.l.s4 1934713408
    %v2556 = vunpack.c.0.s8 %v2555
    %v2557 = vperm.slane %v2551, %v2556
    %v2559 = vunpack.c.l.s4 1934713408
    %v2560 = vunpack.c.0.s8 %v2559
    %v2561 = vperm.slane %v2553, %v2560
    %v2562 = vrot.slane %v2549, 4
    %v2563 = vsel %vm237, %v2562, %v2537
    %v2564 = vrot.slane %v2537, 4
    %v2565 = vsel %vm237, %v2549, %v2564
    %v2567 = vunpack.c.l.s4 1934713408
    %v2568 = vunpack.c.0.s8 %v2567
    %v2569 = vperm.slane %v2563, %v2568
    %v2571 = vunpack.c.l.s4 1934713408
    %v2572 = vunpack.c.0.s8 %v2571
    %v2573 = vperm.slane %v2565, %v2572
    %v2574 = vrot.slane %v2557, 4
    %v2575 = vsel %vm237, 0.0, %v2574
    %v2576 = vrot.slane %v2561, 4
    %v2577 = vsel %vm237, 0.0, %v2576
    %v2578 = vrot.slane %v2569, 4
    %v2579 = vsel %vm237, 0.0, %v2578
    %v2580 = vrot.slane %v2573, 4
    %v2581 = vsel %vm237, 0.0, %v2580
    %v2582 = vsel %vm237, %v2520, %v2501
    %v2584 = vunpack.c.l.s4 1983009808
    %v2585 = vunpack.c.0.s8 %v2584
    %v2586 = vperm.slane %v2582, %v2585
    %v2587 = vrot.slane %v2521, 4
    %v2588 = vsel %vm237, %v2587, %v2519
    %v2590 = vunpack.c.l.s4 1983009808
    %v2591 = vunpack.c.0.s8 %v2590
    %v2592 = vperm.slane %v2588, %v2591
    %v2593 = vsel %vm237, %v2524, %v2513
    %v2595 = vunpack.c.l.s4 1983009808
    %v2596 = vunpack.c.0.s8 %v2595
    %v2597 = vperm.slane %v2593, %v2596
    %v2598 = vrot.slane %v2525, 4
    %v2599 = vsel %vm237, %v2598, %v2523
    %v2601 = vunpack.c.l.s4 1983009808
    %v2602 = vunpack.c.0.s8 %v2601
    %v2603 = vperm.slane %v2599, %v2602
    %v2604 = vrot.slane %v2592, 4
    %v2605 = vsel %vm237, %v2604, %v2586
    %v2606 = vrot.slane %v2586, 4
    %v2607 = vsel %vm237, %v2592, %v2606
    %v2609 = vunpack.c.l.s4 1934713408
    %v2610 = vunpack.c.0.s8 %v2609
    %v2611 = vperm.slane %v2605, %v2610
    %v2613 = vunpack.c.l.s4 1934713408
    %v2614 = vunpack.c.0.s8 %v2613
    %v2615 = vperm.slane %v2607, %v2614
    %v2616 = vrot.slane %v2603, 4
    %v2617 = vsel %vm237, %v2616, %v2597
    %v2618 = vrot.slane %v2597, 4
    %v2619 = vsel %vm237, %v2603, %v2618
    %v2621 = vunpack.c.l.s4 1934713408
    %v2622 = vunpack.c.0.s8 %v2621
    %v2623 = vperm.slane %v2617, %v2622
    %v2625 = vunpack.c.l.s4 1934713408
    %v2626 = vunpack.c.0.s8 %v2625
    %v2627 = vperm.slane %v2619, %v2626
    %v2628 = vrot.slane %v2623, 4
    %v2629 = vsel %vm237, %v2628, %v2611
    %v2630 = vrot.slane %v2611, 4
    %v2631 = vsel %vm237, %v2623, %v2630
    %v2632 = vrot.slane %v2627, 4
    %v2633 = vsel %vm237, %v2632, %v2615
    %v2634 = vrot.slane %v2615, 4
    %v2635 = vsel %vm237, %v2627, %v2634
    %v2636 = vsel %vm237, %v2576, %v2557
    %v2638 = vunpack.c.l.s4 1983009808
    %v2639 = vunpack.c.0.s8 %v2638
    %v2640 = vperm.slane %v2636, %v2639
    %v2641 = vrot.slane %v2577, 4
    %v2642 = vsel %vm237, %v2641, %v2575
    %v2644 = vunpack.c.l.s4 1983009808
    %v2645 = vunpack.c.0.s8 %v2644
    %v2646 = vperm.slane %v2642, %v2645
    %v2647 = vsel %vm237, %v2580, %v2569
    %v2649 = vunpack.c.l.s4 1983009808
    %v2650 = vunpack.c.0.s8 %v2649
    %v2651 = vperm.slane %v2647, %v2650
    %v2652 = vrot.slane %v2581, 4
    %v2653 = vsel %vm237, %v2652, %v2579
    %v2655 = vunpack.c.l.s4 1983009808
    %v2656 = vunpack.c.0.s8 %v2655
    %v2657 = vperm.slane %v2653, %v2656
    %v2658 = vrot.slane %v2646, 4
    %v2659 = vsel %vm237, %v2658, %v2640
    %v2660 = vrot.slane %v2640, 4
    %v2661 = vsel %vm237, %v2646, %v2660
    %v2663 = vunpack.c.l.s4 1934713408
    %v2664 = vunpack.c.0.s8 %v2663
    %v2665 = vperm.slane %v2659, %v2664
    %v2667 = vunpack.c.l.s4 1934713408
    %v2668 = vunpack.c.0.s8 %v2667
    %v2669 = vperm.slane %v2661, %v2668
    %v2670 = vrot.slane %v2657, 4
    %v2671 = vsel %vm237, %v2670, %v2651
    %v2672 = vrot.slane %v2651, 4
    %v2673 = vsel %vm237, %v2657, %v2672
    %v2675 = vunpack.c.l.s4 1934713408
    %v2676 = vunpack.c.0.s8 %v2675
    %v2677 = vperm.slane %v2671, %v2676
    %v2679 = vunpack.c.l.s4 1934713408
    %v2680 = vunpack.c.0.s8 %v2679
    %v2681 = vperm.slane %v2673, %v2680
    %v2682 = vrot.slane %v2677, 4
    %v2683 = vsel %vm237, %v2682, %v2665
    %v2684 = vrot.slane %v2665, 4
    %v2685 = vsel %vm237, %v2677, %v2684
    %v2686 = vrot.slane %v2681, 4
    %v2687 = vsel %vm237, %v2686, %v2669
    %v2688 = vrot.slane %v2669, 4
    %v2689 = vsel %vm237, %v2681, %v2688
    %v2691 = vsel %vm945, %v2145, 0
    %v2694 = vsel %vm945, %v2385, 0
    %2696 = vmatpush.xpose.msra.mxu0 0.0
    %2697 = vmatpush.xpose.msra.mxu0 0.0
    %2698 = vmatpush.xpose.msra.mxu0 0.0
    %2699 = vmatpush.xpose.msra.mxu0 0.0
    %2700 = vmatpush.xpose.msra.mxu0 0.0
    %2701 = vmatpush.xpose.msra.mxu0 0.0
    %2702 = vmatpush.xpose.msra.mxu0 0.0
    %2703 = vmatpush.xpose.msra.mxu0 0.0
    %2704 = vmatpush.xpose.msra.mxu0 0.0
    %2705 = vmatpush.xpose.msra.mxu0 0.0
    %2706 = vmatpush.xpose.msra.mxu0 0.0
    %2707 = vmatpush.xpose.msra.mxu0 0.0
    %2708 = vmatpush.xpose.msra.mxu0 0.0
    %2709 = vmatpush.xpose.msra.mxu0 0.0
    %2710 = vmatpush.xpose.msra.mxu0 0.0
    %2711 = vmatpush.xpose.msra.mxu0 %v2694
    %2712 = vmatmul.f32.gmra.mxu0 %v2691
    %v2713 = vpop.f32.mrf.mxu0
    %v2714 = vadd.f32 0.0, %v2713
    %2715 = vdwg.mxu0
    %v2717 = vsel %vm945, %v2199, 0
    %v2720 = vsel %vm945, %v2439, 0
    %2722 = vmatpush.xpose.msra.mxu0 0.0
    %2723 = vmatpush.xpose.msra.mxu0 0.0
    %2724 = vmatpush.xpose.msra.mxu0 0.0
    %2725 = vmatpush.xpose.msra.mxu0 0.0
    %2726 = vmatpush.xpose.msra.mxu0 0.0
    %2727 = vmatpush.xpose.msra.mxu0 0.0
    %2728 = vmatpush.xpose.msra.mxu0 0.0
    %2729 = vmatpush.xpose.msra.mxu0 0.0
    %2730 = vmatpush.xpose.msra.mxu0 0.0
    %2731 = vmatpush.xpose.msra.mxu0 0.0
    %2732 = vmatpush.xpose.msra.mxu0 0.0
    %2733 = vmatpush.xpose.msra.mxu0 0.0
    %2734 = vmatpush.xpose.msra.mxu0 0.0
    %2735 = vmatpush.xpose.msra.mxu0 0.0
    %2736 = vmatpush.xpose.msra.mxu0 0.0
    %2737 = vmatpush.xpose.msra.mxu0 %v2720
    %2738 = vmatmul.f32.gmra.mxu0 %v2717
    %v2739 = vpop.f32.mrf.mxu0
    %v2740 = vadd.f32 0.0, %v2739
    %2741 = vdwg.mxu0
    %v2743 = vsel %vm945, %v2147, 0
    %v2746 = vsel %vm945, %v2387, 0
    %2748 = vmatpush.xpose.msra.mxu0 0.0
    %2749 = vmatpush.xpose.msra.mxu0 0.0
    %2750 = vmatpush.xpose.msra.mxu0 0.0
    %2751 = vmatpush.xpose.msra.mxu0 0.0
    %2752 = vmatpush.xpose.msra.mxu0 0.0
    %2753 = vmatpush.xpose.msra.mxu0 0.0
    %2754 = vmatpush.xpose.msra.mxu0 0.0
    %2755 = vmatpush.xpose.msra.mxu0 0.0
    %2756 = vmatpush.xpose.msra.mxu0 0.0
    %2757 = vmatpush.xpose.msra.mxu0 0.0
    %2758 = vmatpush.xpose.msra.mxu0 0.0
    %2759 = vmatpush.xpose.msra.mxu0 0.0
    %2760 = vmatpush.xpose.msra.mxu0 0.0
    %2761 = vmatpush.xpose.msra.mxu0 0.0
    %2762 = vmatpush.xpose.msra.mxu0 0.0
    %2763 = vmatpush.xpose.msra.mxu0 %v2746
    %2764 = vmatmul.f32.gmra.mxu0 %v2743
    %v2765 = vpop.f32.mrf.mxu0
    %v2766 = vadd.f32 0.0, %v2765
    %2767 = vdwg.mxu0
    %v2769 = vsel %vm945, %v2201, 0
    %v2772 = vsel %vm945, %v2441, 0
    %2774 = vmatpush.xpose.msra.mxu0 0.0
    %2775 = vmatpush.xpose.msra.mxu0 0.0
    %2776 = vmatpush.xpose.msra.mxu0 0.0
    %2777 = vmatpush.xpose.msra.mxu0 0.0
    %2778 = vmatpush.xpose.msra.mxu0 0.0
    %2779 = vmatpush.xpose.msra.mxu0 0.0
    %2780 = vmatpush.xpose.msra.mxu0 0.0
    %2781 = vmatpush.xpose.msra.mxu0 0.0
    %2782 = vmatpush.xpose.msra.mxu0 0.0
    %2783 = vmatpush.xpose.msra.mxu0 0.0
    %2784 = vmatpush.xpose.msra.mxu0 0.0
    %2785 = vmatpush.xpose.msra.mxu0 0.0
    %2786 = vmatpush.xpose.msra.mxu0 0.0
    %2787 = vmatpush.xpose.msra.mxu0 0.0
    %2788 = vmatpush.xpose.msra.mxu0 0.0
    %2789 = vmatpush.xpose.msra.mxu0 %v2772
    %2790 = vmatmul.f32.gmra.mxu0 %v2769
    %v2791 = vpop.f32.mrf.mxu0
    %v2792 = vadd.f32 0.0, %v2791
    %2793 = vdwg.mxu0
    %v2795 = vsel %vm945, %v2149, 0
    %v2798 = vsel %vm945, %v2389, 0
    %2800 = vmatpush.xpose.msra.mxu0 0.0
    %2801 = vmatpush.xpose.msra.mxu0 0.0
    %2802 = vmatpush.xpose.msra.mxu0 0.0
    %2803 = vmatpush.xpose.msra.mxu0 0.0
    %2804 = vmatpush.xpose.msra.mxu0 0.0
    %2805 = vmatpush.xpose.msra.mxu0 0.0
    %2806 = vmatpush.xpose.msra.mxu0 0.0
    %2807 = vmatpush.xpose.msra.mxu0 0.0
    %2808 = vmatpush.xpose.msra.mxu0 0.0
    %2809 = vmatpush.xpose.msra.mxu0 0.0
    %2810 = vmatpush.xpose.msra.mxu0 0.0
    %2811 = vmatpush.xpose.msra.mxu0 0.0
    %2812 = vmatpush.xpose.msra.mxu0 0.0
    %2813 = vmatpush.xpose.msra.mxu0 0.0
    %2814 = vmatpush.xpose.msra.mxu0 0.0
    %2815 = vmatpush.xpose.msra.mxu0 %v2798
    %2816 = vmatmul.f32.gmra.mxu0 %v2795
    %v2817 = vpop.f32.mrf.mxu0
    %v2818 = vadd.f32 0.0, %v2817
    %2819 = vdwg.mxu0
    %v2821 = vsel %vm945, %v2203, 0
    %v2824 = vsel %vm945, %v2443, 0
    %2826 = vmatpush.xpose.msra.mxu0 0.0
    %2827 = vmatpush.xpose.msra.mxu0 0.0
    %2828 = vmatpush.xpose.msra.mxu0 0.0
    %2829 = vmatpush.xpose.msra.mxu0 0.0
    %2830 = vmatpush.xpose.msra.mxu0 0.0
    %2831 = vmatpush.xpose.msra.mxu0 0.0
    %2832 = vmatpush.xpose.msra.mxu0 0.0
    %2833 = vmatpush.xpose.msra.mxu0 0.0
    %2834 = vmatpush.xpose.msra.mxu0 0.0
    %2835 = vmatpush.xpose.msra.mxu0 0.0
    %2836 = vmatpush.xpose.msra.mxu0 0.0
    %2837 = vmatpush.xpose.msra.mxu0 0.0
    %2838 = vmatpush.xpose.msra.mxu0 0.0
    %2839 = vmatpush.xpose.msra.mxu0 0.0
    %2840 = vmatpush.xpose.msra.mxu0 0.0
    %2841 = vmatpush.xpose.msra.mxu0 %v2824
    %2842 = vmatmul.f32.gmra.mxu0 %v2821
    %v2843 = vpop.f32.mrf.mxu0
    %v2844 = vadd.f32 0.0, %v2843
    %2845 = vdwg.mxu0
    %v2847 = vsel %vm945, %v2151, 0
    %v2850 = vsel %vm945, %v2391, 0
    %2852 = vmatpush.xpose.msra.mxu0 0.0
    %2853 = vmatpush.xpose.msra.mxu0 0.0
    %2854 = vmatpush.xpose.msra.mxu0 0.0
    %2855 = vmatpush.xpose.msra.mxu0 0.0
    %2856 = vmatpush.xpose.msra.mxu0 0.0
    %2857 = vmatpush.xpose.msra.mxu0 0.0
    %2858 = vmatpush.xpose.msra.mxu0 0.0
    %2859 = vmatpush.xpose.msra.mxu0 0.0
    %2860 = vmatpush.xpose.msra.mxu0 0.0
    %2861 = vmatpush.xpose.msra.mxu0 0.0
    %2862 = vmatpush.xpose.msra.mxu0 0.0
    %2863 = vmatpush.xpose.msra.mxu0 0.0
    %2864 = vmatpush.xpose.msra.mxu0 0.0
    %2865 = vmatpush.xpose.msra.mxu0 0.0
    %2866 = vmatpush.xpose.msra.mxu0 0.0
    %2867 = vmatpush.xpose.msra.mxu0 %v2850
    %2868 = vmatmul.f32.gmra.mxu0 %v2847
    %v2869 = vpop.f32.mrf.mxu0
    %v2870 = vadd.f32 0.0, %v2869
    %2871 = vdwg.mxu0
    %v2873 = vsel %vm945, %v2205, 0
    %v2876 = vsel %vm945, %v2445, 0
    %2878 = vmatpush.xpose.msra.mxu0 0.0
    %2879 = vmatpush.xpose.msra.mxu0 0.0
    %2880 = vmatpush.xpose.msra.mxu0 0.0
    %2881 = vmatpush.xpose.msra.mxu0 0.0
    %2882 = vmatpush.xpose.msra.mxu0 0.0
    %2883 = vmatpush.xpose.msra.mxu0 0.0
    %2884 = vmatpush.xpose.msra.mxu0 0.0
    %2885 = vmatpush.xpose.msra.mxu0 0.0
    %2886 = vmatpush.xpose.msra.mxu0 0.0
    %2887 = vmatpush.xpose.msra.mxu0 0.0
    %2888 = vmatpush.xpose.msra.mxu0 0.0
    %2889 = vmatpush.xpose.msra.mxu0 0.0
    %2890 = vmatpush.xpose.msra.mxu0 0.0
    %2891 = vmatpush.xpose.msra.mxu0 0.0
    %2892 = vmatpush.xpose.msra.mxu0 0.0
    %2893 = vmatpush.xpose.msra.mxu0 %v2876
    %2894 = vmatmul.f32.gmra.mxu0 %v2873
    %v2895 = vpop.f32.mrf.mxu0
    %v2896 = vadd.f32 0.0, %v2895
    %2897 = vdwg.mxu0
    %v2898 = vadd.f32 %v2714, %v177
    %v2899 = vadd.f32 %v2740, %v177
    %v2900 = vadd.f32 %v2766, %v177
    %v2901 = vadd.f32 %v2792, %v177
    %v2902 = vadd.f32 %v2818, %v177
    %v2903 = vadd.f32 %v2844, %v177
    %v2904 = vadd.f32 %v2870, %v177
    %v2905 = vadd.f32 %v2896, %v177
    %v2906 = vsel %vm945, %v2898, -inf
    %2907 = vmax.xlane.f32.xlu0 %v2906
    %v2908 = vpop.xlane.xlu0 %2907
    %v2909 = vsel %vm945, %v2899, -inf
    %2910 = vmax.xlane.f32.xlu0 %v2909
    %v2911 = vpop.xlane.xlu0 %2910
    %v2912 = vsel %vm945, %v2900, -inf
    %2913 = vmax.xlane.f32.xlu0 %v2912
    %v2914 = vpop.xlane.xlu0 %2913
    %v2915 = vsel %vm945, %v2901, -inf
    %2916 = vmax.xlane.f32.xlu0 %v2915
    %v2917 = vpop.xlane.xlu0 %2916
    %v2918 = vsel %vm945, %v2902, -inf
    %2919 = vmax.xlane.f32.xlu0 %v2918
    %v2920 = vpop.xlane.xlu0 %2919
    %v2921 = vsel %vm945, %v2903, -inf
    %2922 = vmax.xlane.f32.xlu0 %v2921
    %v2923 = vpop.xlane.xlu0 %2922
    %v2924 = vsel %vm945, %v2904, -inf
    %2925 = vmax.xlane.f32.xlu0 %v2924
    %v2926 = vpop.xlane.xlu0 %2925
    %v2927 = vsel %vm945, %v2905, -inf
    %2928 = vmax.xlane.f32.xlu0 %v2927
    %v2929 = vpop.xlane.xlu0 %2928
    %v2930 = vsub.f32 %v2898, %v2908
    %v2931 = vsub.f32 %v2899, %v2911
    %v2932 = vsub.f32 %v2900, %v2914
    %v2933 = vsub.f32 %v2901, %v2917
    %v2934 = vsub.f32 %v2902, %v2920
    %v2935 = vsub.f32 %v2903, %v2923
    %v2936 = vsub.f32 %v2904, %v2926
    %v2937 = vsub.f32 %v2905, %v2929
    %v2938 = vmul.f32 %v2930, 1.442695
    %v2939 = vpow.pop %v2938
    %v2940 = vmul.f32 %v2931, 1.442695
    %v2941 = vpow.pop %v2940
    %v2942 = vmul.f32 %v2932, 1.442695
    %v2943 = vpow.pop %v2942
    %v2944 = vmul.f32 %v2933, 1.442695
    %v2945 = vpow.pop %v2944
    %v2946 = vmul.f32 %v2934, 1.442695
    %v2947 = vpow.pop %v2946
    %v2948 = vmul.f32 %v2935, 1.442695
    %v2949 = vpow.pop %v2948
    %v2950 = vmul.f32 %v2936, 1.442695
    %v2951 = vpow.pop %v2950
    %v2952 = vmul.f32 %v2937, 1.442695
    %v2953 = vpow.pop %v2952
    %v2954 = vsel %vm945, %v2939, 0.0
    %2955 = vadd.xlane.f32.xlu0 %v2954
    %v2956 = vpop.xlane.xlu0 %2955
    %v2957 = vsel %vm945, %v2941, 0.0
    %2958 = vadd.xlane.f32.xlu0 %v2957
    %v2959 = vpop.xlane.xlu0 %2958
    %v2960 = vsel %vm945, %v2943, 0.0
    %2961 = vadd.xlane.f32.xlu0 %v2960
    %v2962 = vpop.xlane.xlu0 %2961
    %v2963 = vsel %vm945, %v2945, 0.0
    %2964 = vadd.xlane.f32.xlu0 %v2963
    %v2965 = vpop.xlane.xlu0 %2964
    %v2966 = vsel %vm945, %v2947, 0.0
    %2967 = vadd.xlane.f32.xlu0 %v2966
    %v2968 = vpop.xlane.xlu0 %2967
    %v2969 = vsel %vm945, %v2949, 0.0
    %2970 = vadd.xlane.f32.xlu0 %v2969
    %v2971 = vpop.xlane.xlu0 %2970
    %v2972 = vsel %vm945, %v2951, 0.0
    %2973 = vadd.xlane.f32.xlu0 %v2972
    %v2974 = vpop.xlane.xlu0 %2973
    %v2975 = vsel %vm945, %v2953, 0.0
    %2976 = vadd.xlane.f32.xlu0 %v2975
    %v2977 = vpop.xlane.xlu0 %2976
    %v2978 = vrcp.pop %v2956
    %v2979 = vmul.f32 %v2956, %v2978
    %v2980 = vsub.f32 1.0, %v2979
    %v2981 = vmul.f32 %v2978, %v2980
    %v2982 = vadd.f32 %v2978, %v2981
    %vm2983 = vweird.f32 %v2956
    %vm2984 = vweird.f32 %v2978
    %vm2985 = vmor %vm2983, %vm2984
    %v2986 = vsel %vm2985, %v2978, %v2982
    %v2987 = vand.u32 2147483647, %v2956
    %vm2988 = vcmp.eq.f32.partialorder %v2987, 8.507059e+37
    %v2989 = vand.u32 %v2956, 2147483648
    %v2990 = vor.u32 1.1754944e-38, %v2989
    %v2991 = vsel %vm2988, %v2990, %v2986
    %v2992 = vrcp.pop %v2959
    %v2993 = vmul.f32 %v2959, %v2992
    %v2994 = vsub.f32 1.0, %v2993
    %v2995 = vmul.f32 %v2992, %v2994
    %v2996 = vadd.f32 %v2992, %v2995
    %vm2997 = vweird.f32 %v2959
    %vm2998 = vweird.f32 %v2992
    %vm2999 = vmor %vm2997, %vm2998
    %v3000 = vsel %vm2999, %v2992, %v2996
    %v3001 = vand.u32 2147483647, %v2959
    %vm3002 = vcmp.eq.f32.partialorder %v3001, 8.507059e+37
    %v3003 = vand.u32 %v2959, 2147483648
    %v3004 = vor.u32 1.1754944e-38, %v3003
    %v3005 = vsel %vm3002, %v3004, %v3000
    %v3006 = vrcp.pop %v2962
    %v3007 = vmul.f32 %v2962, %v3006
    %v3008 = vsub.f32 1.0, %v3007
    %v3009 = vmul.f32 %v3006, %v3008
    %v3010 = vadd.f32 %v3006, %v3009
    %vm3011 = vweird.f32 %v2962
    %vm3012 = vweird.f32 %v3006
    %vm3013 = vmor %vm3011, %vm3012
    %v3014 = vsel %vm3013, %v3006, %v3010
    %v3015 = vand.u32 2147483647, %v2962
    %vm3016 = vcmp.eq.f32.partialorder %v3015, 8.507059e+37
    %v3017 = vand.u32 %v2962, 2147483648
    %v3018 = vor.u32 1.1754944e-38, %v3017
    %v3019 = vsel %vm3016, %v3018, %v3014
    %v3020 = vrcp.pop %v2965
    %v3021 = vmul.f32 %v2965, %v3020
    %v3022 = vsub.f32 1.0, %v3021
    %v3023 = vmul.f32 %v3020, %v3022
    %v3024 = vadd.f32 %v3020, %v3023
    %vm3025 = vweird.f32 %v2965
    %vm3026 = vweird.f32 %v3020
    %vm3027 = vmor %vm3025, %vm3026
    %v3028 = vsel %vm3027, %v3020, %v3024
    %v3029 = vand.u32 2147483647, %v2965
    %vm3030 = vcmp.eq.f32.partialorder %v3029, 8.507059e+37
    %v3031 = vand.u32 %v2965, 2147483648
    %v3032 = vor.u32 1.1754944e-38, %v3031
    %v3033 = vsel %vm3030, %v3032, %v3028
    %v3034 = vrcp.pop %v2968
    %v3035 = vmul.f32 %v2968, %v3034
    %v3036 = vsub.f32 1.0, %v3035
    %v3037 = vmul.f32 %v3034, %v3036
    %v3038 = vadd.f32 %v3034, %v3037
    %vm3039 = vweird.f32 %v2968
    %vm3040 = vweird.f32 %v3034
    %vm3041 = vmor %vm3039, %vm3040
    %v3042 = vsel %vm3041, %v3034, %v3038
    %v3043 = vand.u32 2147483647, %v2968
    %vm3044 = vcmp.eq.f32.partialorder %v3043, 8.507059e+37
    %v3045 = vand.u32 %v2968, 2147483648
    %v3046 = vor.u32 1.1754944e-38, %v3045
    %v3047 = vsel %vm3044, %v3046, %v3042
    %v3048 = vrcp.pop %v2971
    %v3049 = vmul.f32 %v2971, %v3048
    %v3050 = vsub.f32 1.0, %v3049
    %v3051 = vmul.f32 %v3048, %v3050
    %v3052 = vadd.f32 %v3048, %v3051
    %vm3053 = vweird.f32 %v2971
    %vm3054 = vweird.f32 %v3048
    %vm3055 = vmor %vm3053, %vm3054
    %v3056 = vsel %vm3055, %v3048, %v3052
    %v3057 = vand.u32 2147483647, %v2971
    %vm3058 = vcmp.eq.f32.partialorder %v3057, 8.507059e+37
    %v3059 = vand.u32 %v2971, 2147483648
    %v3060 = vor.u32 1.1754944e-38, %v3059
    %v3061 = vsel %vm3058, %v3060, %v3056
    %v3062 = vrcp.pop %v2974
    %v3063 = vmul.f32 %v2974, %v3062
    %v3064 = vsub.f32 1.0, %v3063
    %v3065 = vmul.f32 %v3062, %v3064
    %v3066 = vadd.f32 %v3062, %v3065
    %vm3067 = vweird.f32 %v2974
    %vm3068 = vweird.f32 %v3062
    %vm3069 = vmor %vm3067, %vm3068
    %v3070 = vsel %vm3069, %v3062, %v3066
    %v3071 = vand.u32 2147483647, %v2974
    %vm3072 = vcmp.eq.f32.partialorder %v3071, 8.507059e+37
    %v3073 = vand.u32 %v2974, 2147483648
    %v3074 = vor.u32 1.1754944e-38, %v3073
    %v3075 = vsel %vm3072, %v3074, %v3070
    %v3076 = vrcp.pop %v2977
    %v3077 = vmul.f32 %v2977, %v3076
    %v3078 = vsub.f32 1.0, %v3077
    %v3079 = vmul.f32 %v3076, %v3078
    %v3080 = vadd.f32 %v3076, %v3079
    %vm3081 = vweird.f32 %v2977
    %vm3082 = vweird.f32 %v3076
    %vm3083 = vmor %vm3081, %vm3082
    %v3084 = vsel %vm3083, %v3076, %v3080
    %v3085 = vand.u32 2147483647, %v2977
    %vm3086 = vcmp.eq.f32.partialorder %v3085, 8.507059e+37
    %v3087 = vand.u32 %v2977, 2147483648
    %v3088 = vor.u32 1.1754944e-38, %v3087
    %v3089 = vsel %vm3086, %v3088, %v3084
    %v3090 = vmul.f32 %v2939, %v2991
    %v3091 = vmul.f32 %v2941, %v3005
    %v3092 = vmul.f32 %v2943, %v3019
    %v3093 = vmul.f32 %v2945, %v3033
    %v3094 = vmul.f32 %v2947, %v3047
    %v3095 = vmul.f32 %v2949, %v3061
    %v3096 = vmul.f32 %v2951, %v3075
    %v3097 = vmul.f32 %v2953, %v3089
    %v3099 = vsel %vm945, %v3090, 0
    %3101 = vmatpush.msra.mxu0 0.0
    %3102 = vmatpush.msra.mxu0 0.0
    %3103 = vmatpush.msra.mxu0 0.0
    %3104 = vmatpush.msra.mxu0 0.0
    %3105 = vmatpush.msra.mxu0 0.0
    %3106 = vmatpush.msra.mxu0 0.0
    %3107 = vmatpush.msra.mxu0 0.0
    %3108 = vmatpush.msra.mxu0 0.0
    %3109 = vmatpush.msra.mxu0 0.0
    %3110 = vmatpush.msra.mxu0 0.0
    %3111 = vmatpush.msra.mxu0 0.0
    %3112 = vmatpush.msra.mxu0 0.0
    %3113 = vmatpush.msra.mxu0 0.0
    %3114 = vmatpush.msra.mxu0 0.0
    %3115 = vmatpush.msra.mxu0 0.0
    %3116 = vmatpush.msra.mxu0 %v2629
    %3117 = vmatmul.f32.gmra.mxu0 %v3099
    %v3118 = vpop.f32.mrf.mxu0
    %v3119 = vadd.f32 0.0, %v3118
    %3120 = vdwg.mxu0
    %v3122 = vsel %vm945, %v3091, 0
    %3124 = vmatpush.msra.mxu0 0.0
    %3125 = vmatpush.msra.mxu0 0.0
    %3126 = vmatpush.msra.mxu0 0.0
    %3127 = vmatpush.msra.mxu0 0.0
    %3128 = vmatpush.msra.mxu0 0.0
    %3129 = vmatpush.msra.mxu0 0.0
    %3130 = vmatpush.msra.mxu0 0.0
    %3131 = vmatpush.msra.mxu0 0.0
    %3132 = vmatpush.msra.mxu0 0.0
    %3133 = vmatpush.msra.mxu0 0.0
    %3134 = vmatpush.msra.mxu0 0.0
    %3135 = vmatpush.msra.mxu0 0.0
    %3136 = vmatpush.msra.mxu0 0.0
    %3137 = vmatpush.msra.mxu0 0.0
    %3138 = vmatpush.msra.mxu0 0.0
    %3139 = vmatpush.msra.mxu0 %v2683
    %3140 = vmatmul.f32.gmra.mxu0 %v3122
    %v3141 = vpop.f32.mrf.mxu0
    %v3142 = vadd.f32 0.0, %v3141
    %3143 = vdwg.mxu0
    %v3145 = vsel %vm945, %v3092, 0
    %3147 = vmatpush.msra.mxu0 0.0
    %3148 = vmatpush.msra.mxu0 0.0
    %3149 = vmatpush.msra.mxu0 0.0
    %3150 = vmatpush.msra.mxu0 0.0
    %3151 = vmatpush.msra.mxu0 0.0
    %3152 = vmatpush.msra.mxu0 0.0
    %3153 = vmatpush.msra.mxu0 0.0
    %3154 = vmatpush.msra.mxu0 0.0
    %3155 = vmatpush.msra.mxu0 0.0
    %3156 = vmatpush.msra.mxu0 0.0
    %3157 = vmatpush.msra.mxu0 0.0
    %3158 = vmatpush.msra.mxu0 0.0
    %3159 = vmatpush.msra.mxu0 0.0
    %3160 = vmatpush.msra.mxu0 0.0
    %3161 = vmatpush.msra.mxu0 0.0
    %3162 = vmatpush.msra.mxu0 %v2631
    %3163 = vmatmul.f32.gmra.mxu0 %v3145
    %v3164 = vpop.f32.mrf.mxu0
    %v3165 = vadd.f32 0.0, %v3164
    %3166 = vdwg.mxu0
    %v3168 = vsel %vm945, %v3093, 0
    %3170 = vmatpush.msra.mxu0 0.0
    %3171 = vmatpush.msra.mxu0 0.0
    %3172 = vmatpush.msra.mxu0 0.0
    %3173 = vmatpush.msra.mxu0 0.0
    %3174 = vmatpush.msra.mxu0 0.0
    %3175 = vmatpush.msra.mxu0 0.0
    %3176 = vmatpush.msra.mxu0 0.0
    %3177 = vmatpush.msra.mxu0 0.0
    %3178 = vmatpush.msra.mxu0 0.0
    %3179 = vmatpush.msra.mxu0 0.0
    %3180 = vmatpush.msra.mxu0 0.0
    %3181 = vmatpush.msra.mxu0 0.0
    %3182 = vmatpush.msra.mxu0 0.0
    %3183 = vmatpush.msra.mxu0 0.0
    %3184 = vmatpush.msra.mxu0 0.0
    %3185 = vmatpush.msra.mxu0 %v2685
    %3186 = vmatmul.f32.gmra.mxu0 %v3168
    %v3187 = vpop.f32.mrf.mxu0
    %v3188 = vadd.f32 0.0, %v3187
    %3189 = vdwg.mxu0
    %v3191 = vsel %vm945, %v3094, 0
    %3193 = vmatpush.msra.mxu0 0.0
    %3194 = vmatpush.msra.mxu0 0.0
    %3195 = vmatpush.msra.mxu0 0.0
    %3196 = vmatpush.msra.mxu0 0.0
    %3197 = vmatpush.msra.mxu0 0.0
    %3198 = vmatpush.msra.mxu0 0.0
    %3199 = vmatpush.msra.mxu0 0.0
    %3200 = vmatpush.msra.mxu0 0.0
    %3201 = vmatpush.msra.mxu0 0.0
    %3202 = vmatpush.msra.mxu0 0.0
    %3203 = vmatpush.msra.mxu0 0.0
    %3204 = vmatpush.msra.mxu0 0.0
    %3205 = vmatpush.msra.mxu0 0.0
    %3206 = vmatpush.msra.mxu0 0.0
    %3207 = vmatpush.msra.mxu0 0.0
    %3208 = vmatpush.msra.mxu0 %v2633
    %3209 = vmatmul.f32.gmra.mxu0 %v3191
    %v3210 = vpop.f32.mrf.mxu0
    %v3211 = vadd.f32 0.0, %v3210
    %3212 = vdwg.mxu0
    %v3214 = vsel %vm945, %v3095, 0
    %3216 = vmatpush.msra.mxu0 0.0
    %3217 = vmatpush.msra.mxu0 0.0
    %3218 = vmatpush.msra.mxu0 0.0
    %3219 = vmatpush.msra.mxu0 0.0
    %3220 = vmatpush.msra.mxu0 0.0
    %3221 = vmatpush.msra.mxu0 0.0
    %3222 = vmatpush.msra.mxu0 0.0
    %3223 = vmatpush.msra.mxu0 0.0
    %3224 = vmatpush.msra.mxu0 0.0
    %3225 = vmatpush.msra.mxu0 0.0
    %3226 = vmatpush.msra.mxu0 0.0
    %3227 = vmatpush.msra.mxu0 0.0
    %3228 = vmatpush.msra.mxu0 0.0
    %3229 = vmatpush.msra.mxu0 0.0
    %3230 = vmatpush.msra.mxu0 0.0
    %3231 = vmatpush.msra.mxu0 %v2687
    %3232 = vmatmul.f32.gmra.mxu0 %v3214
    %v3233 = vpop.f32.mrf.mxu0
    %v3234 = vadd.f32 0.0, %v3233
    %3235 = vdwg.mxu0
    %v3237 = vsel %vm945, %v3096, 0
    %3239 = vmatpush.msra.mxu0 0.0
    %3240 = vmatpush.msra.mxu0 0.0
    %3241 = vmatpush.msra.mxu0 0.0
    %3242 = vmatpush.msra.mxu0 0.0
    %3243 = vmatpush.msra.mxu0 0.0
    %3244 = vmatpush.msra.mxu0 0.0
    %3245 = vmatpush.msra.mxu0 0.0
    %3246 = vmatpush.msra.mxu0 0.0
    %3247 = vmatpush.msra.mxu0 0.0
    %3248 = vmatpush.msra.mxu0 0.0
    %3249 = vmatpush.msra.mxu0 0.0
    %3250 = vmatpush.msra.mxu0 0.0
    %3251 = vmatpush.msra.mxu0 0.0
    %3252 = vmatpush.msra.mxu0 0.0
    %3253 = vmatpush.msra.mxu0 0.0
    %3254 = vmatpush.msra.mxu0 %v2635
    %3255 = vmatmul.f32.gmra.mxu0 %v3237
    %v3256 = vpop.f32.mrf.mxu0
    %v3257 = vadd.f32 0.0, %v3256
    %3258 = vdwg.mxu0
    %v3260 = vsel %vm945, %v3097, 0
    %3262 = vmatpush.msra.mxu0 0.0
    %3263 = vmatpush.msra.mxu0 0.0
    %3264 = vmatpush.msra.mxu0 0.0
    %3265 = vmatpush.msra.mxu0 0.0
    %3266 = vmatpush.msra.mxu0 0.0
    %3267 = vmatpush.msra.mxu0 0.0
    %3268 = vmatpush.msra.mxu0 0.0
    %3269 = vmatpush.msra.mxu0 0.0
    %3270 = vmatpush.msra.mxu0 0.0
    %3271 = vmatpush.msra.mxu0 0.0
    %3272 = vmatpush.msra.mxu0 0.0
    %3273 = vmatpush.msra.mxu0 0.0
    %3274 = vmatpush.msra.mxu0 0.0
    %3275 = vmatpush.msra.mxu0 0.0
    %3276 = vmatpush.msra.mxu0 0.0
    %3277 = vmatpush.msra.mxu0 %v2689
    %3278 = vmatmul.f32.gmra.mxu0 %v3260
    %v3279 = vpop.f32.mrf.mxu0
    %v3280 = vadd.f32 0.0, %v3279
    %3281 = vdwg.mxu0
    %v3282 = vrot.slane %v3211, 4
    %v3283 = vsel %vm237, %v3282, %v3119
    %v3284 = vrot.slane %v3119, 4
    %v3285 = vsel %vm237, %v3211, %v3284
    %v3287 = vunpack.c.l.s4 1983009808
    %v3288 = vunpack.c.0.s8 %v3287
    %v3289 = vperm.slane %v3283, %v3288
    %v3291 = vunpack.c.l.s4 1983009808
    %v3292 = vunpack.c.0.s8 %v3291
    %v3293 = vperm.slane %v3285, %v3292
    %v3294 = vrot.slane %v3257, 4
    %v3295 = vsel %vm237, %v3294, %v3165
    %v3296 = vrot.slane %v3165, 4
    %v3297 = vsel %vm237, %v3257, %v3296
    %v3299 = vunpack.c.l.s4 1983009808
    %v3300 = vunpack.c.0.s8 %v3299
    %v3301 = vperm.slane %v3295, %v3300
    %v3303 = vunpack.c.l.s4 1983009808
    %v3304 = vunpack.c.0.s8 %v3303
    %v3305 = vperm.slane %v3297, %v3304
    %v3306 = vrot.slane %v3301, 4
    %v3307 = vsel %vm237, %v3306, %v3289
    %v3308 = vrot.slane %v3289, 4
    %v3309 = vsel %vm237, %v3301, %v3308
    %v3311 = vunpack.c.l.s4 1934713408
    %v3312 = vunpack.c.0.s8 %v3311
    %v3313 = vperm.slane %v3307, %v3312
    %v3315 = vunpack.c.l.s4 1934713408
    %v3316 = vunpack.c.0.s8 %v3315
    %v3317 = vperm.slane %v3309, %v3316
    %v3318 = vrot.slane %v3305, 4
    %v3319 = vsel %vm237, %v3318, %v3293
    %v3320 = vrot.slane %v3293, 4
    %v3321 = vsel %vm237, %v3305, %v3320
    %v3323 = vunpack.c.l.s4 1934713408
    %v3324 = vunpack.c.0.s8 %v3323
    %v3325 = vperm.slane %v3319, %v3324
    %v3327 = vunpack.c.l.s4 1934713408
    %v3328 = vunpack.c.0.s8 %v3327
    %v3329 = vperm.slane %v3321, %v3328
    %v3330 = vrot.slane %v3313, 4
    %v3331 = vsel %vm237, 0.0, %v3330
    %v3332 = vrot.slane %v3317, 4
    %v3333 = vsel %vm237, 0.0, %v3332
    %v3334 = vrot.slane %v3325, 4
    %v3335 = vsel %vm237, 0.0, %v3334
    %v3336 = vrot.slane %v3329, 4
    %v3337 = vsel %vm237, 0.0, %v3336
    %v3338 = vrot.slane %v3234, 4
    %v3339 = vsel %vm237, %v3338, %v3142
    %v3340 = vrot.slane %v3142, 4
    %v3341 = vsel %vm237, %v3234, %v3340
    %v3343 = vunpack.c.l.s4 1983009808
    %v3344 = vunpack.c.0.s8 %v3343
    %v3345 = vperm.slane %v3339, %v3344
    %v3347 = vunpack.c.l.s4 1983009808
    %v3348 = vunpack.c.0.s8 %v3347
    %v3349 = vperm.slane %v3341, %v3348
    %v3350 = vrot.slane %v3280, 4
    %v3351 = vsel %vm237, %v3350, %v3188
    %v3352 = vrot.slane %v3188, 4
    %v3353 = vsel %vm237, %v3280, %v3352
    %v3355 = vunpack.c.l.s4 1983009808
    %v3356 = vunpack.c.0.s8 %v3355
    %v3357 = vperm.slane %v3351, %v3356
    %v3359 = vunpack.c.l.s4 1983009808
    %v3360 = vunpack.c.0.s8 %v3359
    %v3361 = vperm.slane %v3353, %v3360
    %v3362 = vrot.slane %v3357, 4
    %v3363 = vsel %vm237, %v3362, %v3345
    %v3364 = vrot.slane %v3345, 4
    %v3365 = vsel %vm237, %v3357, %v3364
    %v3367 = vunpack.c.l.s4 1934713408
    %v3368 = vunpack.c.0.s8 %v3367
    %v3369 = vperm.slane %v3363, %v3368
    %v3371 = vunpack.c.l.s4 1934713408
    %v3372 = vunpack.c.0.s8 %v3371
    %v3373 = vperm.slane %v3365, %v3372
    %v3374 = vrot.slane %v3361, 4
    %v3375 = vsel %vm237, %v3374, %v3349
    %v3376 = vrot.slane %v3349, 4
    %v3377 = vsel %vm237, %v3361, %v3376
    %v3379 = vunpack.c.l.s4 1934713408
    %v3380 = vunpack.c.0.s8 %v3379
    %v3381 = vperm.slane %v3375, %v3380
    %v3383 = vunpack.c.l.s4 1934713408
    %v3384 = vunpack.c.0.s8 %v3383
    %v3385 = vperm.slane %v3377, %v3384
    %v3386 = vrot.slane %v3369, 4
    %v3387 = vsel %vm237, 0.0, %v3386
    %v3388 = vrot.slane %v3373, 4
    %v3389 = vsel %vm237, 0.0, %v3388
    %v3390 = vrot.slane %v3381, 4
    %v3391 = vsel %vm237, 0.0, %v3390
    %v3392 = vrot.slane %v3385, 4
    %v3393 = vsel %vm237, 0.0, %v3392
    %v3394 = vsel %vm237, %v3332, %v3313
    %v3396 = vunpack.c.l.s4 1983009808
    %v3397 = vunpack.c.0.s8 %v3396
    %v3398 = vperm.slane %v3394, %v3397
    %v3399 = vrot.slane %v3333, 4
    %v3400 = vsel %vm237, %v3399, %v3331
    %v3402 = vunpack.c.l.s4 1983009808
    %v3403 = vunpack.c.0.s8 %v3402
    %v3404 = vperm.slane %v3400, %v3403
    %v3405 = vsel %vm237, %v3336, %v3325
    %v3407 = vunpack.c.l.s4 1983009808
    %v3408 = vunpack.c.0.s8 %v3407
    %v3409 = vperm.slane %v3405, %v3408
    %v3410 = vrot.slane %v3337, 4
    %v3411 = vsel %vm237, %v3410, %v3335
    %v3413 = vunpack.c.l.s4 1983009808
    %v3414 = vunpack.c.0.s8 %v3413
    %v3415 = vperm.slane %v3411, %v3414
    %v3416 = vrot.slane %v3404, 4
    %v3417 = vsel %vm237, %v3416, %v3398
    %v3418 = vrot.slane %v3398, 4
    %v3419 = vsel %vm237, %v3404, %v3418
    %v3421 = vunpack.c.l.s4 1934713408
    %v3422 = vunpack.c.0.s8 %v3421
    %v3423 = vperm.slane %v3417, %v3422
    %v3425 = vunpack.c.l.s4 1934713408
    %v3426 = vunpack.c.0.s8 %v3425
    %v3427 = vperm.slane %v3419, %v3426
    %v3428 = vrot.slane %v3415, 4
    %v3429 = vsel %vm237, %v3428, %v3409
    %v3430 = vrot.slane %v3409, 4
    %v3431 = vsel %vm237, %v3415, %v3430
    %v3433 = vunpack.c.l.s4 1934713408
    %v3434 = vunpack.c.0.s8 %v3433
    %v3435 = vperm.slane %v3429, %v3434
    %v3437 = vunpack.c.l.s4 1934713408
    %v3438 = vunpack.c.0.s8 %v3437
    %v3439 = vperm.slane %v3431, %v3438
    %v3440 = vrot.slane %v3435, 4
    %v3441 = vsel %vm237, %v3440, %v3423
    %v3442 = vrot.slane %v3423, 4
    %v3443 = vsel %vm237, %v3435, %v3442
    %v3444 = vrot.slane %v3439, 4
    %v3445 = vsel %vm237, %v3444, %v3427
    %v3446 = vrot.slane %v3427, 4
    %v3447 = vsel %vm237, %v3439, %v3446
    %v3448 = vsel %vm237, %v3388, %v3369
    %v3450 = vunpack.c.l.s4 1983009808
    %v3451 = vunpack.c.0.s8 %v3450
    %v3452 = vperm.slane %v3448, %v3451
    %v3453 = vrot.slane %v3389, 4
    %v3454 = vsel %vm237, %v3453, %v3387
    %v3456 = vunpack.c.l.s4 1983009808
    %v3457 = vunpack.c.0.s8 %v3456
    %v3458 = vperm.slane %v3454, %v3457
    %v3459 = vsel %vm237, %v3392, %v3381
    %v3461 = vunpack.c.l.s4 1983009808
    %v3462 = vunpack.c.0.s8 %v3461
    %v3463 = vperm.slane %v3459, %v3462
    %v3464 = vrot.slane %v3393, 4
    %v3465 = vsel %vm237, %v3464, %v3391
    %v3467 = vunpack.c.l.s4 1983009808
    %v3468 = vunpack.c.0.s8 %v3467
    %v3469 = vperm.slane %v3465, %v3468
    %v3470 = vrot.slane %v3458, 4
    %v3471 = vsel %vm237, %v3470, %v3452
    %v3472 = vrot.slane %v3452, 4
    %v3473 = vsel %vm237, %v3458, %v3472
    %v3475 = vunpack.c.l.s4 1934713408
    %v3476 = vunpack.c.0.s8 %v3475
    %v3477 = vperm.slane %v3471, %v3476
    %v3479 = vunpack.c.l.s4 1934713408
    %v3480 = vunpack.c.0.s8 %v3479
    %v3481 = vperm.slane %v3473, %v3480
    %v3482 = vrot.slane %v3469, 4
    %v3483 = vsel %vm237, %v3482, %v3463
    %v3484 = vrot.slane %v3463, 4
    %v3485 = vsel %vm237, %v3469, %v3484
    %v3487 = vunpack.c.l.s4 1934713408
    %v3488 = vunpack.c.0.s8 %v3487
    %v3489 = vperm.slane %v3483, %v3488
    %v3491 = vunpack.c.l.s4 1934713408
    %v3492 = vunpack.c.0.s8 %v3491
    %v3493 = vperm.slane %v3485, %v3492
    %v3494 = vrot.slane %v3489, 4
    %v3495 = vsel %vm237, %v3494, %v3477
    %v3496 = vrot.slane %v3477, 4
    %v3497 = vsel %vm237, %v3489, %v3496
    %v3498 = vrot.slane %v3493, 4
    %v3499 = vsel %vm237, %v3498, %v3481
    %v3500 = vrot.slane %v3481, 4
    %v3501 = vsel %vm237, %v3493, %v3500
    %3504 = vrot.lane.b32.xlu0 %v3443, 8
    %v3505 = vpop.permute.xlu0 %3504
    %3506 = vrot.lane.b32.xlu0 %v3497, 8
    %v3507 = vpop.permute.xlu0 %3506
    %3512 = vrot.lane.b32.xlu0 %v3445, 16
    %v3513 = vpop.permute.xlu0 %3512
    %3514 = vrot.lane.b32.xlu0 %v3499, 16
    %v3515 = vpop.permute.xlu0 %3514
    %3520 = vrot.lane.b32.xlu0 %v3447, 24
    %v3521 = vpop.permute.xlu0 %3520
    %3522 = vrot.lane.b32.xlu0 %v3501, 24
    %v3523 = vpop.permute.xlu0 %3522
    %v3526 = vsel %vm945, %v3441, %v3505
    %v3527 = vsel %vm945, %v3495, %v3507
    %v3528 = vsel %vm1784, %v3526, %v3513
    %v3529 = vsel %vm1784, %v3527, %v3515
    %v3530 = vsel %vm1787, %v3528, %v3521
    %v3531 = vsel %vm1787, %v3529, %v3523
    %v3532 = vld [vmem:[#allocation10] sm:$0xff]
    %v3533 = vld [vmem:[#allocation10 + $0x8] sm:$0xff]
    %v3534 = vld [vmem:[#allocation10 + $0x10] sm:$0xff]
    %v3535 = vld [vmem:[#allocation10 + $0x18] sm:$0xff]
    %v3536 = vld [vmem:[%s14] sm:$0x1]
    %v3538 = vperm.slane %v3536, 0
    %v3541 = vsel %vm186, %v3530, 0
    %v3544 = vsel %vm186, %v3531, 0
    %3546 = vmatpush.msra.mxu0 0.0
    %3547 = vmatpush.msra.mxu0 0.0
    %3548 = vmatpush.msra.mxu0 0.0
    %3549 = vmatpush.msra.mxu0 0.0
    %3550 = vmatpush.msra.mxu0 0.0
    %3551 = vmatpush.msra.mxu0 0.0
    %3552 = vmatpush.msra.mxu0 0.0
    %3553 = vmatpush.msra.mxu0 0.0
    %3554 = vmatpush.msra.mxu0 0.0
    %3555 = vmatpush.msra.mxu0 0.0
    %3556 = vmatpush.msra.mxu0 0.0
    %3557 = vmatpush.msra.mxu0 0.0
    %3558 = vmatpush.msra.mxu0 %v3535
    %3559 = vmatpush.msra.mxu0 %v3534
    %3560 = vmatpush.msra.mxu0 %v3533
    %3561 = vmatpush.msra.mxu0 %v3532
    %3562 = vmatmul.f32.gmra.mxu0 %v3541
    %v3563 = vpop.f32.mrf.mxu0
    %v3564 = vadd.f32 %v3538, %v3563
    %3565 = vmatmul.f32.gmra.mxu0 %v3544
    %v3566 = vpop.f32.mrf.mxu0
    %v3567 = vadd.f32 %v3538, %v3566
    %3568 = vdwg.mxu0
    %v3569 = vadd.f32 %v1890, %v3564
    %v3570 = vadd.f32 %v1891, %v3567
    %v3571 = vld [vmem:[%s15] sm:$0x1]
    %v3572 = vld [vmem:[%s16] sm:$0x1]
    %v3573 = vsel %vm186, %v3569, 0.0
    %3574 = vadd.xlane.f32.xlu0 %v3573
    %v3575 = vpop.xlane.xlu0 %3574
    %v3576 = vsel %vm186, %v3570, 0.0
    %3577 = vadd.xlane.f32.xlu0 %v3576
    %v3578 = vpop.xlane.xlu0 %3577
    %v3579 = vmul.f32 %v3575, %v1843
    %v3580 = vmul.f32 %v3578, %v1843
    %v3581 = vsub.f32 %v3569, %v3579
    %v3582 = vsub.f32 %v3570, %v3580
    %v3583 = vmul.f32 %v3581, %v3581
    %v3584 = vmul.f32 %v3582, %v3582
    %v3585 = vsel %vm186, %v3583, 0.0
    %3586 = vadd.xlane.f32.xlu0 %v3585
    %v3587 = vpop.xlane.xlu0 %3586
    %v3588 = vsel %vm186, %v3584, 0.0
    %3589 = vadd.xlane.f32.xlu0 %v3588
    %v3590 = vpop.xlane.xlu0 %3589
    %v3591 = vmul.f32 %v3587, %v1843
    %v3592 = vmul.f32 %v3590, %v1843
    %v3593 = vadd.f32 %v3591, 1e-05
    %v3594 = vadd.f32 %v3592, 1e-05
    %v3595 = vrsqrt.pop %v3593
    %v3596 = vmul.f32 %v3595, %v3593
    %v3597 = vmul.f32 %v3596, %v3595
    %v3598 = vmul.f32 0.5, %v3597
    %v3599 = vsub.f32 1.5, %v3598
    %v3600 = vmul.f32 %v3595, %v3599
    %vm3601 = vweird.f32 %v3593
    %vm3602 = vweird.f32 %v3595
    %vm3603 = vmor %vm3601, %vm3602
    %v3604 = vsel %vm3603, %v3595, %v3600
    %v3605 = vrsqrt.pop %v3594
    %v3606 = vmul.f32 %v3605, %v3594
    %v3607 = vmul.f32 %v3606, %v3605
    %v3608 = vmul.f32 0.5, %v3607
    %v3609 = vsub.f32 1.5, %v3608
    %v3610 = vmul.f32 %v3605, %v3609
    %vm3611 = vweird.f32 %v3594
    %vm3612 = vweird.f32 %v3605
    %vm3613 = vmor %vm3611, %vm3612
    %v3614 = vsel %vm3613, %v3605, %v3610
    %v3615 = vmul.f32 %v3581, %v3604
    %v3616 = vmul.f32 %v3582, %v3614
    %v3618 = vperm.slane %v3571, 0
    %v3620 = vmul.f32 %v3615, %v3618
    %v3621 = vmul.f32 %v3616, %v3618
    %v3623 = vperm.slane %v3572, 0
    %v3625 = vadd.f32 %v3620, %v3623
    %v3626 = vadd.f32 %v3621, %v3623
    %v3627 = vld [vmem:[#allocation11] sm:$0xff]
    %v3628 = vld [vmem:[#allocation11 + $0x8] sm:$0xff]
    %v3629 = vld [vmem:[#allocation11 + $0x10] sm:$0xff]
    %v3630 = vld [vmem:[#allocation11 + $0x18] sm:$0xff]
    %v3631 = vld [vmem:[%s18] sm:$0x1]
    %v3633 = vperm.slane %v3631, 0
    %v3636 = vsel %vm186, %v3625, 0
    %v3639 = vsel %vm186, %v3626, 0
    %3641 = vmatpush.msra.mxu0 0.0
    %3642 = vmatpush.msra.mxu0 0.0
    %3643 = vmatpush.msra.mxu0 0.0
    %3644 = vmatpush.msra.mxu0 0.0
    %3645 = vmatpush.msra.mxu0 0.0
    %3646 = vmatpush.msra.mxu0 0.0
    %3647 = vmatpush.msra.mxu0 0.0
    %3648 = vmatpush.msra.mxu0 0.0
    %3649 = vmatpush.msra.mxu0 0.0
    %3650 = vmatpush.msra.mxu0 0.0
    %3651 = vmatpush.msra.mxu0 0.0
    %3652 = vmatpush.msra.mxu0 0.0
    %3653 = vmatpush.msra.mxu0 %v3630
    %3654 = vmatpush.msra.mxu0 %v3629
    %3655 = vmatpush.msra.mxu0 %v3628
    %3656 = vmatpush.msra.mxu0 %v3627
    %3657 = vmatmul.f32.gmra.mxu0 %v3636
    %v3658 = vpop.f32.mrf.mxu0
    %v3659 = vadd.f32 %v3633, %v3658
    %3660 = vmatmul.f32.gmra.mxu0 %v3639
    %v3661 = vpop.f32.mrf.mxu0
    %v3662 = vadd.f32 %v3633, %v3661
    %3663 = vdwg.mxu0
    %v3664 = vmax.f32 %v3659, 0.0
    %v3665 = vmax.f32 %v3662, 0.0
    %v3666 = vld [vmem:[%s19] sm:$0xff]
    %v3667 = vld [vmem:[%s19 + $0x8] sm:$0xff]
    %v3668 = vld [vmem:[%s19 + $0x10] sm:$0xff]
    %v3669 = vld [vmem:[%s19 + $0x18] sm:$0xff]
    %v3670 = vld [vmem:[%s19 + $0x20] sm:$0xff]
    %v3671 = vld [vmem:[%s19 + $0x28] sm:$0xff]
    %v3672 = vld [vmem:[%s19 + $0x30] sm:$0xff]
    %v3673 = vld [vmem:[%s19 + $0x38] sm:$0xff]
    %v3674 = vld [vmem:[%s20] sm:$0x1]
    %v3676 = vperm.slane %v3674, 0
    %vm3678 = vcmask 523264
    %v3680 = vsel %vm3678, %v3664, 0
    %v3683 = vsel %vm3678, %v3665, 0
    %3685 = vmatpush.msra.mxu0 0.0
    %3686 = vmatpush.msra.mxu0 0.0
    %3687 = vmatpush.msra.mxu0 0.0
    %3688 = vmatpush.msra.mxu0 0.0
    %3689 = vmatpush.msra.mxu0 0.0
    %3690 = vmatpush.msra.mxu0 0.0
    %3691 = vmatpush.msra.mxu0 0.0
    %3692 = vmatpush.msra.mxu0 0.0
    %3693 = vmatpush.msra.mxu0 %v3673
    %3694 = vmatpush.msra.mxu0 %v3672
    %3695 = vmatpush.msra.mxu0 %v3671
    %3696 = vmatpush.msra.mxu0 %v3670
    %3697 = vmatpush.msra.mxu0 %v3669
    %3698 = vmatpush.msra.mxu0 %v3668
    %3699 = vmatpush.msra.mxu0 %v3667
    %3700 = vmatpush.msra.mxu0 %v3666
    %3701 = vmatmul.f32.gmra.mxu0 %v3680
    %v3702 = vpop.f32.mrf.mxu0
    %v3703 = vadd.f32 %v3676, %v3702
    %3704 = vmatmul.f32.gmra.mxu0 %v3683
    %v3705 = vpop.f32.mrf.mxu0
    %v3706 = vadd.f32 %v3676, %v3705
    %3707 = vdwg.mxu0
    %v3708 = vadd.f32 %v3625, %v3703
    %v3709 = vadd.f32 %v3626, %v3706
    %v3710 = vld [vmem:[%s21] sm:$0x1]
    %v3711 = vld [vmem:[%s22] sm:$0x1]
    %v3712 = vsel %vm186, %v3708, 0.0
    %3713 = vadd.xlane.f32.xlu0 %v3712
    %v3714 = vpop.xlane.xlu0 %3713
    %v3715 = vsel %vm186, %v3709, 0.0
    %3716 = vadd.xlane.f32.xlu0 %v3715
    %v3717 = vpop.xlane.xlu0 %3716
    %v3718 = vmul.f32 %v3714, %v1843
    %v3719 = vmul.f32 %v3717, %v1843
    %v3720 = vsub.f32 %v3708, %v3718
    %v3721 = vsub.f32 %v3709, %v3719
    %v3722 = vmul.f32 %v3720, %v3720
    %v3723 = vmul.f32 %v3721, %v3721
    %v3724 = vsel %vm186, %v3722, 0.0
    %3725 = vadd.xlane.f32.xlu0 %v3724
    %v3726 = vpop.xlane.xlu0 %3725
    %v3727 = vsel %vm186, %v3723, 0.0
    %3728 = vadd.xlane.f32.xlu0 %v3727
    %v3729 = vpop.xlane.xlu0 %3728
    %v3730 = vmul.f32 %v3726, %v1843
    %v3731 = vmul.f32 %v3729, %v1843
    %v3732 = vadd.f32 %v3730, 1e-05
    %v3733 = vadd.f32 %v3731, 1e-05
    %v3734 = vrsqrt.pop %v3732
    %v3735 = vmul.f32 %v3734, %v3732
    %v3736 = vmul.f32 %v3735, %v3734
    %v3737 = vmul.f32 0.5, %v3736
    %v3738 = vsub.f32 1.5, %v3737
    %v3739 = vmul.f32 %v3734, %v3738
    %vm3740 = vweird.f32 %v3732
    %vm3741 = vweird.f32 %v3734
    %vm3742 = vmor %vm3740, %vm3741
    %v3743 = vsel %vm3742, %v3734, %v3739
    %v3744 = vrsqrt.pop %v3733
    %v3745 = vmul.f32 %v3744, %v3733
    %v3746 = vmul.f32 %v3745, %v3744
    %v3747 = vmul.f32 0.5, %v3746
    %v3748 = vsub.f32 1.5, %v3747
    %v3749 = vmul.f32 %v3744, %v3748
    %vm3750 = vweird.f32 %v3733
    %vm3751 = vweird.f32 %v3744
    %vm3752 = vmor %vm3750, %vm3751
    %v3753 = vsel %vm3752, %v3744, %v3749
    %v3754 = vmul.f32 %v3720, %v3743
    %v3755 = vmul.f32 %v3721, %v3753
    %v3757 = vperm.slane %v3710, 0
    %v3759 = vmul.f32 %v3754, %v3757
    %v3760 = vmul.f32 %v3755, %v3757
    %v3762 = vperm.slane %v3711, 0
    %v3764 = vadd.f32 %v3759, %v3762
    %v3765 = vadd.f32 %v3760, %v3762
    %3766 = vst.msk [vmem:[#allocation13] sm:$0xff] %vm186, %v3764
    %3767 = vst.msk [vmem:[#allocation13 + $0x8] sm:$0xff] %vm186, %v3765
    // Predicated region
    $region118: #{tpu_custom_call.1} parent=1 // pred_check
      _
    $region119: #{tpu_custom_call.1} parent=1 // pred_check_branch
      %3769 = sbr.rel (0) target = $region121
    $region120: #{tpu_custom_call.1} parent=1 // pred_region
      %3771 = vsyncadd [#allocation4], 0
      %s3772 = sshll.u32 [#allocation13], 4
      %s3773 = int_to_ptr.vmem [resolvable:$true] %s3772
      %s3774 = sshll.u32 %s23, 4
      %s3775 = int_to_ptr.hbm [resolvable:$true] %s3774
      %3780 = dma.vmem_to_hbm [thread:$0]  %s3773, 256, %s3775, [#allocation4], 128, 128, 8
    $region121: #{tpu_custom_call.1} parent=1 // pred_fallthru
      _
    // Predicated region
    $region122: #{tpu_custom_call.1} parent=1 // pred_check
      _
    $region123: #{tpu_custom_call.1} parent=1 // pred_check_branch
      %3782 = sbr.rel (0) target = $region125
    $region124: #{tpu_custom_call.1} parent=1 // pred_region
      %3784 = dma.done [#allocation4], 256
    $region125: #{tpu_custom_call.1} parent=1 // pred_fallthru
      _
    %3785 = vsyncpa [#allocation3], 1
    %3786 = vsyncpa [#allocation6], 1
    %3787 = vsyncpa [#allocation9], 1
    %3788 = vsyncpa [#allocation12], 1
    %3789 = vsyncpa [#allocation4], 1

</llo_original>
